<compile_context>
chip_gen: v5e
topology: v5e:2x2
jax: 0.10.0
libtpu: 0.0.40
codegen_flags: <defaults>
</compile_context>

<pallas_src>
import functools

import numpy as np

import jax
import jax.numpy as jnp
from jax import lax
from jax.experimental import pallas as pl
from jax.experimental.pallas import tpu as pltpu


# =============================================================================
# Config (small, deterministic synthetic setup)
# =============================================================================
BATCH = 2
DIM = 32                              # C
NUM_HEADS = 4
HEAD_DIM = DIM // NUM_HEADS           # Ch = 8
H_SIZE, W_SIZE = 8, 8
SEQ = 1 + H_SIZE * W_SIZE             # N = 65 (class token + H*W patches)
WINDOW = {3: 2, 5: 1, 7: 1}           # shared CRPE: window size -> #heads (sums to NUM_HEADS)
KMAX = max(WINDOW)                    # all depthwise kernels zero-embedded into KMAX x KMAX
QKV_BIAS = True
SCALE = HEAD_DIM ** (-0.5)
PROJ_DROP = 0.0                       # inference: nn.Dropout is identity


# =============================================================================
# Fused Pallas kernel: qkv linear -> factorized attention + CRPE -> proj linear
# Whole batch in one grid step; heads fused on lanes, batch fused where useful.
# =============================================================================
def _fused_attn_crpe_kernel(
    x_ref, wqkv_ref, bqkv_ref, wproj_ref, bproj_ref, cw_ref, cb_ref, mask_ref,
    o_ref, vpad_ref, *, b, n, h, w, c, kmax
):
    bn = b * n
    hw = h * w
    bc = b * c
    pad = (kmax - 1) // 2

    # ---- qkv projection: one [B*N, 3C] bf16 MXU matmul (f32 accumulate) ------
    x_bf = x_ref[...].astype(jnp.bfloat16)                          # [130, 32]
    qkv = (jnp.dot(x_bf, wqkv_ref[...], preferred_element_type=jnp.float32)
           + bqkv_ref[...])                                         # [130, 96]
    q = qkv[:, 0:c]                                                 # heads fused on lanes
    k = qkv[:, c:2 * c]
    v = qkv[:, 2 * c:3 * c]

    # ---- per-batch softmax over tokens via row masks (no sublane slicing) ----
    row = lax.broadcasted_iota(jnp.int32, (bn, c), 0)
    m0 = (row < n).astype(jnp.float32)                              # batch-0 rows
    m1 = 1.0 - m0                                                   # batch-1 rows
    k_max = jnp.max(k, axis=0, keepdims=True)                       # shared shift (softmax-invariant)
    k_exp = jnp.exp(k - k_max)
    d0 = jnp.sum(k_exp * m0, axis=0, keepdims=True)                 # per-batch denominators
    d1 = jnp.sum(k_exp * m1, axis=0, keepdims=True)
    k_sm = k_exp / (m0 * d0 + m1 * d1)                              # exact divide

    # ---- factorized attention: masked k_sm^T @ v per batch + block-diag mask -
    # (the attention `scale` is folded into the mask offline; CRPE uses raw q)
    v_bf = v.astype(jnp.bfloat16)
    f0 = lax.dot_general((k_sm * m0).astype(jnp.bfloat16), v_bf,
                         (((0,), (0,)), ((), ())),
                         preferred_element_type=jnp.float32)        # [C, C]
    f1 = lax.dot_general((k_sm * m1).astype(jnp.bfloat16), v_bf,
                         (((0,), (0,)), ((), ())),
                         preferred_element_type=jnp.float32)
    mask = mask_ref[...]
    q_bf = q.astype(jnp.bfloat16)
    fa0 = jnp.dot(q_bf, (f0 * mask).astype(jnp.bfloat16),
                  preferred_element_type=jnp.float32)
    fa1 = jnp.dot(q_bf, (f1 * mask).astype(jnp.bfloat16),
                  preferred_element_type=jnp.float32)
    fa = jnp.where(m0 > 0.5, fa0, fa1)                              # [130, 32]

    # ---- output projection of the factorized-attn term: one dense store ------
    wproj = wproj_ref[...]
    out = (jnp.dot(fa.astype(jnp.bfloat16), wproj,
                   preferred_element_type=jnp.float32) + bproj_ref[...])
    o_ref[...] = out

    # ---- CRPE: depthwise conv on image tokens, batch fused on the lane axis --
    # (the +1 class-token offset forces one sublane shift per batch, done once)
    q_img = jnp.concatenate([q[1:1 + hw, :], q[n + 1:n + 1 + hw, :]],
                            axis=1).reshape(h, w, bc)               # [8, 8, 64]
    v_img = jnp.concatenate([v[1:1 + hw, :], v[n + 1:n + 1 + hw, :]],
                            axis=1).reshape(h, w, bc)

    # padded conv input in a sublane-aligned VMEM scratch (zero border + interior)
    vpad_ref[...] = jnp.zeros_like(vpad_ref)
    vpad_ref[pad:pad + h, pad:pad + w, :] = v_img

    conv = jnp.broadcast_to(cb_ref[...], (h, w, bc))                # start from bias
    for dx in range(kmax):                                          # W (sublane) shift hoisted
        v_col = vpad_ref[:, dx:dx + w, :]                           # 1 misaligned slice per dx
        for dy in range(kmax):                                      # leading-dim slice: cheap
            conv = conv + v_col[dy:dy + h] * cw_ref[dy * kmax + dx]
    crpe = (q_img * conv).reshape(hw, bc)                           # [64, B*C]

    # ---- project CRPE separately (linearity) and add into image-token rows ---
    crpe_p0 = jnp.dot(crpe[:, 0:c].astype(jnp.bfloat16), wproj,
                      preferred_element_type=jnp.float32)
    crpe_p1 = jnp.dot(crpe[:, c:bc].astype(jnp.bfloat16), wproj,
                      preferred_element_type=jnp.float32)
    o_ref[1:1 + hw, :] = o_ref[1:1 + hw, :] + crpe_p0
    o_ref[n + 1:n + 1 + hw, :] = o_ref[n + 1:n + 1 + hw, :] + crpe_p1


# =============================================================================
# Wrapper
# =============================================================================
def factor_attn_conv_rel_pos_enc(x, size, params):
    """Pallas forward of FactorAttnConvRelPosEnc.  x: [B, N, C], N == 1 + H*W."""
    b, n, c = x.shape
    h, w = size
    bn = b * n
    bc = b * c
    pad_w = ((w + KMAX - 1 + 7) // 8) * 8    # sublane-aligned padded width

    kernel = functools.partial(_fused_attn_crpe_kernel,
                               b=b, n=n, h=h, w=w, c=c, kmax=KMAX)
    out_flat = pl.pallas_call(
        kernel,
        grid=(1,),                                                   # single step: whole batch
        in_specs=[
            pl.BlockSpec((bn, c), lambda i: (0, 0)),                 # x, batch-stacked
            pl.BlockSpec((c, 3 * c), lambda i: (0, 0)),              # w_qkv (bf16)
            pl.BlockSpec((1, 3 * c), lambda i: (0, 0)),              # b_qkv
            pl.BlockSpec((c, c), lambda i: (0, 0)),                  # w_proj (bf16)
            pl.BlockSpec((1, c), lambda i: (0, 0)),                  # b_proj
            pl.BlockSpec((KMAX * KMAX, w, bc), lambda i: (0, 0, 0)), # packed conv weights
            pl.BlockSpec((w, bc), lambda i: (0, 0)),                 # packed conv bias
            pl.BlockSpec((c, c), lambda i: (0, 0)),                  # block-diag mask * scale
        ],
        out_specs=pl.BlockSpec((bn, c), lambda i: (0, 0)),
        out_shape=jax.ShapeDtypeStruct((bn, c), jnp.float32),
        scratch_shapes=[pltpu.VMEM((h + KMAX - 1, pad_w, bc), jnp.float32)],
        compiler_params=pltpu.CompilerParams(dimension_semantics=("arbitrary",)),
    )(
        x.reshape(bn, c),                                            # free contiguous reshape
        params["w_qkv_bf16"], params["b_qkv_2d"],
        params["w_proj_bf16"], params["b_proj_2d"],
        params["crpe_w_packed"], params["crpe_b_packed"],
        params["attn_mask"],
    )
    return out_flat.reshape(b, n, c)


# =============================================================================
# Deterministic parameter init (shapes from the module's __init__)
# =============================================================================
def init_params(key):
    ks = jax.random.split(key, 8)
    params = {
        # nn.Linear stores [out, in]; we store the equivalent [in, out] matrix.
        "w_qkv": 0.08 * jax.random.normal(ks[0], (DIM, 3 * DIM), jnp.float32),
        "b_qkv": (0.02 * jax.random.normal(ks[1], (3 * DIM,), jnp.float32)
                  if QKV_BIAS else jnp.zeros((3 * DIM,), jnp.float32)),
        "w_proj": 0.08 * jax.random.normal(ks[2], (DIM, DIM), jnp.float32),
        "b_proj": 0.02 * jax.random.normal(ks[3], (DIM,), jnp.float32),
    }
    # shared CRPE: one depthwise Conv2d per window size, weight [split*Ch, 1, win, win]
    ck = jax.random.split(ks[4], 2 * len(WINDOW))
    for i, (win, split) in enumerate(WINDOW.items()):
        params[f"crpe_w_{win}"] = 0.1 * jax.random.normal(
            ck[2 * i], (split * HEAD_DIM, 1, win, win), jnp.float32
        )
        params[f"crpe_b_{win}"] = 0.02 * jax.random.normal(
            ck[2 * i + 1], (split * HEAD_DIM,), jnp.float32
        )

    # --- offline packing for the fused kernel --------------------------------
    # (a) bf16 MXU operands (f32 accumulation inside the kernel), 2-D biases.
    params["w_qkv_bf16"] = params["w_qkv"].astype(jnp.bfloat16)
    params["w_proj_bf16"] = params["w_proj"].astype(jnp.bfloat16)
    params["b_qkv_2d"] = params["b_qkv"][None, :]
    params["b_proj_2d"] = params["b_proj"][None, :]

    # (b) Per-head conv kernels zero-embedded into KMAX x KMAX ("same" padding
    # keeps this numerically identical), heads fused along the channel axis,
    # taps flattened to the leading axis, pre-replicated over the W sublane
    # axis and tiled over batch lanes -> [KMAX*KMAX, W, B*C] (no in-kernel
    # sublane broadcast per tap).
    w_heads, b_heads = [], []
    for win, split in WINDOW.items():
        pad_e = (KMAX - win) // 2
        wgt = params[f"crpe_w_{win}"][:, 0]                         # [split*Ch, win, win]
        bias = params[f"crpe_b_{win}"]
        for s in range(split):
            wh = wgt[s * HEAD_DIM:(s + 1) * HEAD_DIM]               # [Ch, win, win]
            wh = jnp.pad(wh, ((0, 0), (pad_e, pad_e), (pad_e, pad_e)))
            w_heads.append(jnp.transpose(wh, (1, 2, 0)))            # [KMAX, KMAX, Ch]
            b_heads.append(bias[s * HEAD_DIM:(s + 1) * HEAD_DIM])
    w_hwc = jnp.concatenate(w_heads, axis=-1)                       # [KMAX, KMAX, C]
    b_c = jnp.concatenate(b_heads)                                  # [C]
    w_taps = jnp.tile(w_hwc.reshape(KMAX * KMAX, DIM), (1, BATCH))  # [49, B*C]
    params["crpe_w_packed"] = jnp.tile(w_taps[:, None, :], (1, W_SIZE, 1))       # [49, W, B*C]
    params["crpe_b_packed"] = jnp.tile(jnp.tile(b_c, BATCH)[None, :], (W_SIZE, 1))  # [W, B*C]

    # (c) Block-diagonal head mask (Ch x Ch blocks) with the attention scale
    # folded in offline (cannot fold into q: CRPE uses un-scaled q).
    head_id = jnp.arange(DIM) // HEAD_DIM
    params["attn_mask"] = jnp.where(
        head_id[:, None] == head_id[None, :], SCALE, 0.0
    ).astype(jnp.float32)                                           # [C, C]
    return params


# =============================================================================
# Pure-JAX reference (mirrors the PyTorch forward, incl. NCHW grouped convs)
# =============================================================================
def reference_forward(x, size, params):
    b, n, c = x.shape
    h, w = size
    ch = c // NUM_HEADS
    scale = ch ** (-0.5)
    qkv = x @ params["w_qkv"] + params["b_qkv"]
    qkv = qkv.reshape(b, n, 3, NUM_HEADS, ch).transpose(2, 0, 3, 1, 4)
    q, k, v = qkv[0], qkv[1], qkv[2]                                 # [B, heads, N, Ch]
    k_sm = jax.nn.softmax(k, axis=2)
    factor = jnp.einsum("bhnc,bhnd->bhcd", k_sm, v)
    factor_att = jnp.einsum("bhnc,bhcd->bhnd", q, factor)
    # CRPE (PyTorch semantics)
    q_img = q[:, :, 1:, :]
    v_img = v[:, :, 1:, :]
    v_nchw = v_img.transpose(0, 1, 3, 2).reshape(b, NUM_HEADS * ch, h, w)
    outs, start = [], 0
    for win, split in WINDOW.items():
        gch = split * ch
        seg = v_nchw[:, start:start + gch]
        conv = lax.conv_general_dilated(
            seg, params[f"crpe_w_{win}"], (1, 1), [(win // 2, win // 2)] * 2,
            feature_group_count=gch, dimension_numbers=("NCHW", "OIHW", "NCHW"),
        ) + params[f"crpe_b_{win}"][None, :, None, None]
        outs.append(conv)
        start += gch
    conv_v = jnp.concatenate(outs, axis=1).reshape(b, NUM_HEADS, ch, h * w).transpose(0, 1, 3, 2)
    ev = q_img * conv_v
    crpe = jnp.pad(ev, ((0, 0), (0, 0), (1, 0), (0, 0)))
    out = scale * factor_att + crpe                                  # [B, heads, N, Ch]
    out = out.transpose(0, 2, 1, 3).reshape(b, n, c)
    out = out @ params["w_proj"] + params["b_proj"]
    return out


# =============================================================================
if __name__ == "__main__":
    key = jax.random.PRNGKey(0)
    k_param, k_x = jax.random.split(key)
    params = init_params(k_param)
    x = jax.random.normal(k_x, (BATCH, SEQ, DIM), jnp.float32)

    out = factor_attn_conv_rel_pos_enc(x, (H_SIZE, W_SIZE), params)
    out = jax.block_until_ready(out)

    ref = jax.block_until_ready(reference_forward(x, (H_SIZE, W_SIZE), params))

    out_np = np.asarray(out)
    ref_np = np.asarray(ref)
    if (
        out_np.shape == ref_np.shape
        and np.all(np.isfinite(out_np))
        and np.allclose(out_np, ref_np, atol=2e-2, rtol=2e-2)
    ):
        print("KERNEL_OK")
    else:
        print("MISMATCH: max abs diff =", float(np.max(np.abs(out_np - ref_np))))
</pallas_src>

<mosaic_0001>
module attributes {stable_mosaic.version = 11 : i64} {
  func.func @_fused_attn_crpe_kernel(%arg0: i32, %arg1: memref<130x32xf32, #tpu.memory_space<vmem>>, %arg2: memref<32x96xbf16, #tpu.memory_space<vmem>>, %arg3: memref<1x96xf32, #tpu.memory_space<vmem>>, %arg4: memref<32x32xbf16, #tpu.memory_space<vmem>>, %arg5: memref<1x32xf32, #tpu.memory_space<vmem>>, %arg6: memref<49x8x64xf32, #tpu.memory_space<vmem>>, %arg7: memref<8x64xf32, #tpu.memory_space<vmem>>, %arg8: memref<32x32xf32, #tpu.memory_space<vmem>>, %arg9: memref<130x32xf32, #tpu.memory_space<vmem>>, %arg10: memref<14x16x64xf32, #tpu.memory_space<vmem>>) attributes {dimension_semantics = [#tpu.dimension_semantics<arbitrary>], iteration_bounds = array<i64: 1>, scalar_prefetch = 0 : i64, scratch_operands = 1 : i64, tpu.core_type = #tpu.core_type<tc>, window_params = [{pipeline_mode = #tpu.pipeline_mode<synchronous>, transform_indices = @transform_0, window_bounds = array<i64: 130, 32>}, {pipeline_mode = #tpu.pipeline_mode<synchronous>, transform_indices = @transform_1, window_bounds = array<i64: 32, 96>}, {pipeline_mode = #tpu.pipeline_mode<synchronous>, transform_indices = @transform_2, window_bounds = array<i64: 1, 96>}, {pipeline_mode = #tpu.pipeline_mode<synchronous>, transform_indices = @transform_3, window_bounds = array<i64: 32, 32>}, {pipeline_mode = #tpu.pipeline_mode<synchronous>, transform_indices = @transform_4, window_bounds = array<i64: 1, 32>}, {pipeline_mode = #tpu.pipeline_mode<synchronous>, transform_indices = @transform_5, window_bounds = array<i64: 49, 8, 64>}, {pipeline_mode = #tpu.pipeline_mode<synchronous>, transform_indices = @transform_6, window_bounds = array<i64: 8, 64>}, {pipeline_mode = #tpu.pipeline_mode<synchronous>, transform_indices = @transform_7, window_bounds = array<i64: 32, 32>}, {pipeline_mode = #tpu.pipeline_mode<synchronous>, transform_indices = @transform_8, window_bounds = array<i64: 130, 32>}]} {
    %c0 = arith.constant 0 : index
    %c0_0 = arith.constant 0 : index
    %0 = vector.load %arg1[%c0, %c0_0] : memref<130x32xf32, #tpu.memory_space<vmem>>, vector<130x32xf32>
    %1 = arith.truncf %0 : vector<130x32xf32> to vector<130x32xbf16>
    %c0_1 = arith.constant 0 : index
    %c0_2 = arith.constant 0 : index
    %2 = vector.load %arg2[%c0_1, %c0_2] : memref<32x96xbf16, #tpu.memory_space<vmem>>, vector<32x96xbf16>
    %cst = arith.constant dense<0.000000e+00> : vector<130x96xf32>
    %3 = tpu.matmul %1, %2, %cst {dimension_numbers = #tpu.dot_dimension_numbers<[1], [0], [0], [1], [0, 0, 1, 1], [], []>} : vector<130x32xbf16>, vector<32x96xbf16>, vector<130x96xf32> -> vector<130x96xf32>
    %c0_3 = arith.constant 0 : index
    %c0_4 = arith.constant 0 : index
    %4 = vector.load %arg3[%c0_3, %c0_4] : memref<1x96xf32, #tpu.memory_space<vmem>>, vector<1x96xf32>
    %5 = vector.broadcast %4 : vector<1x96xf32> to vector<130x96xf32>
    %6 = arith.addf %3, %5 : vector<130x96xf32>
    %7 = vector.extract_strided_slice %6 {offsets = [0, 0], sizes = [130, 32], strides = [1, 1]} : vector<130x96xf32> to vector<130x32xf32>
    %8 = vector.extract_strided_slice %6 {offsets = [0, 32], sizes = [130, 32], strides = [1, 1]} : vector<130x96xf32> to vector<130x32xf32>
    %9 = vector.extract_strided_slice %6 {offsets = [0, 64], sizes = [130, 32], strides = [1, 1]} : vector<130x96xf32> to vector<130x32xf32>
    %10 = tpu.iota {dimensions = array<i32: 0>} : vector<130x32xi32>
    %c65_i32 = arith.constant 65 : i32
    %11 = vector.broadcast %c65_i32 : i32 to vector<130x32xi32>
    %12 = arith.cmpi slt, %10, %11 : vector<130x32xi32>
    %13 = arith.extui %12 : vector<130x32xi1> to vector<130x32xi32>
    %14 = arith.sitofp %13 : vector<130x32xi32> to vector<130x32xf32>
    %cst_5 = arith.constant 1.000000e+00 : f32
    %15 = vector.broadcast %cst_5 : f32 to vector<130x32xf32>
    %16 = arith.subf %15, %14 : vector<130x32xf32>
    %cst_6 = arith.constant dense<0xFF800000> : vector<32xf32>
    %17 = vector.multi_reduction <maximumf>, %8, %cst_6 [0] : vector<130x32xf32> to vector<32xf32>
    %18 = vector.shape_cast %17 : vector<32xf32> to vector<1x32xf32>
    %19 = vector.broadcast %18 : vector<1x32xf32> to vector<130x32xf32>
    %20 = arith.subf %8, %19 : vector<130x32xf32>
    %21 = math.exp %20 : vector<130x32xf32>
    %22 = arith.mulf %21, %14 : vector<130x32xf32>
    %cst_7 = arith.constant dense<0.000000e+00> : vector<32xf32>
    %23 = vector.multi_reduction <add>, %22, %cst_7 [0] : vector<130x32xf32> to vector<32xf32>
    %24 = vector.shape_cast %23 : vector<32xf32> to vector<1x32xf32>
    %25 = arith.mulf %21, %16 : vector<130x32xf32>
    %cst_8 = arith.constant dense<0.000000e+00> : vector<32xf32>
    %26 = vector.multi_reduction <add>, %25, %cst_8 [0] : vector<130x32xf32> to vector<32xf32>
    %27 = vector.shape_cast %26 : vector<32xf32> to vector<1x32xf32>
    %28 = vector.broadcast %24 : vector<1x32xf32> to vector<130x32xf32>
    %29 = arith.mulf %14, %28 : vector<130x32xf32>
    %30 = vector.broadcast %27 : vector<1x32xf32> to vector<130x32xf32>
    %31 = arith.mulf %16, %30 : vector<130x32xf32>
    %32 = arith.addf %29, %31 : vector<130x32xf32>
    %33 = arith.divf %21, %32 : vector<130x32xf32>
    %34 = arith.truncf %9 : vector<130x32xf32> to vector<130x32xbf16>
    %35 = arith.mulf %33, %14 : vector<130x32xf32>
    %36 = arith.truncf %35 : vector<130x32xf32> to vector<130x32xbf16>
    %cst_9 = arith.constant dense<0.000000e+00> : vector<32x32xf32>
    %37 = tpu.matmul %36, %34, %cst_9 {dimension_numbers = #tpu.dot_dimension_numbers<[0], [0], [1], [1], [0, 1, 1, 1], [], []>} : vector<130x32xbf16>, vector<130x32xbf16>, vector<32x32xf32> -> vector<32x32xf32>
    %38 = arith.mulf %33, %16 : vector<130x32xf32>
    %39 = arith.truncf %38 : vector<130x32xf32> to vector<130x32xbf16>
    %cst_10 = arith.constant dense<0.000000e+00> : vector<32x32xf32>
    %40 = tpu.matmul %39, %34, %cst_10 {dimension_numbers = #tpu.dot_dimension_numbers<[0], [0], [1], [1], [0, 1, 1, 1], [], []>} : vector<130x32xbf16>, vector<130x32xbf16>, vector<32x32xf32> -> vector<32x32xf32>
    %c0_11 = arith.constant 0 : index
    %c0_12 = arith.constant 0 : index
    %41 = vector.load %arg8[%c0_11, %c0_12] : memref<32x32xf32, #tpu.memory_space<vmem>>, vector<32x32xf32>
    %42 = arith.truncf %7 : vector<130x32xf32> to vector<130x32xbf16>
    %43 = arith.mulf %37, %41 : vector<32x32xf32>
    %44 = arith.truncf %43 : vector<32x32xf32> to vector<32x32xbf16>
    %cst_13 = arith.constant dense<0.000000e+00> : vector<130x32xf32>
    %45 = tpu.matmul %42, %44, %cst_13 {dimension_numbers = #tpu.dot_dimension_numbers<[1], [0], [0], [1], [0, 0, 1, 1], [], []>} : vector<130x32xbf16>, vector<32x32xbf16>, vector<130x32xf32> -> vector<130x32xf32>
    %46 = arith.mulf %40, %41 : vector<32x32xf32>
    %47 = arith.truncf %46 : vector<32x32xf32> to vector<32x32xbf16>
    %cst_14 = arith.constant dense<0.000000e+00> : vector<130x32xf32>
    %48 = tpu.matmul %42, %47, %cst_14 {dimension_numbers = #tpu.dot_dimension_numbers<[1], [0], [0], [1], [0, 0, 1, 1], [], []>} : vector<130x32xbf16>, vector<32x32xbf16>, vector<130x32xf32> -> vector<130x32xf32>
    %cst_15 = arith.constant 5.000000e-01 : f32
    %49 = vector.broadcast %cst_15 : f32 to vector<130x32xf32>
    %50 = arith.cmpf ogt, %14, %49 : vector<130x32xf32>
    %51 = arith.select %50, %45, %48 : vector<130x32xi1>, vector<130x32xf32>
    %c0_16 = arith.constant 0 : index
    %c0_17 = arith.constant 0 : index
    %52 = vector.load %arg4[%c0_16, %c0_17] : memref<32x32xbf16, #tpu.memory_space<vmem>>, vector<32x32xbf16>
    %53 = arith.truncf %51 : vector<130x32xf32> to vector<130x32xbf16>
    %cst_18 = arith.constant dense<0.000000e+00> : vector<130x32xf32>
    %54 = tpu.matmul %53, %52, %cst_18 {dimension_numbers = #tpu.dot_dimension_numbers<[1], [0], [0], [1], [0, 0, 1, 1], [], []>} : vector<130x32xbf16>, vector<32x32xbf16>, vector<130x32xf32> -> vector<130x32xf32>
    %c0_19 = arith.constant 0 : index
    %c0_20 = arith.constant 0 : index
    %55 = vector.load %arg5[%c0_19, %c0_20] : memref<1x32xf32, #tpu.memory_space<vmem>>, vector<1x32xf32>
    %56 = vector.broadcast %55 : vector<1x32xf32> to vector<130x32xf32>
    %57 = arith.addf %54, %56 : vector<130x32xf32>
    %c0_21 = arith.constant 0 : index
    %c0_22 = arith.constant 0 : index
    %58 = vector.load %arg9[%c0_21, %c0_22] : memref<130x32xf32, #tpu.memory_space<vmem>>, vector<130x32xf32>
    tpu.vector_store %arg9[%c0_21, %c0_22], %57 {strides = array<i32>} : memref<130x32xf32, #tpu.memory_space<vmem>>, vector<130x32xf32>,
    %59 = vector.extract_strided_slice %7 {offsets = [1, 0], sizes = [64, 32], strides = [1, 1]} : vector<130x32xf32> to vector<64x32xf32>
    %60 = vector.extract_strided_slice %7 {offsets = [66, 0], sizes = [64, 32], strides = [1, 1]} : vector<130x32xf32> to vector<64x32xf32>
    %61 = tpu.concatenate %59, %60 in 1 : vector<64x32xf32>, vector<64x32xf32> -> vector<64x64xf32>
    %62 = vector.shape_cast %61 : vector<64x64xf32> to vector<8x8x64xf32>
    %63 = vector.extract_strided_slice %9 {offsets = [1, 0], sizes = [64, 32], strides = [1, 1]} : vector<130x32xf32> to vector<64x32xf32>
    %64 = vector.extract_strided_slice %9 {offsets = [66, 0], sizes = [64, 32], strides = [1, 1]} : vector<130x32xf32> to vector<64x32xf32>
    %65 = tpu.concatenate %63, %64 in 1 : vector<64x32xf32>, vector<64x32xf32> -> vector<64x64xf32>
    %66 = vector.shape_cast %65 : vector<64x64xf32> to vector<8x8x64xf32>
    %cst_23 = arith.constant 0.000000e+00 : f32
    %67 = vector.broadcast %cst_23 : f32 to vector<14x16x64xf32>
    %c0_24 = arith.constant 0 : index
    %c0_25 = arith.constant 0 : index
    %c0_26 = arith.constant 0 : index
    %68 = vector.load %arg10[%c0_24, %c0_25, %c0_26] : memref<14x16x64xf32, #tpu.memory_space<vmem>>, vector<14x16x64xf32>
    tpu.vector_store %arg10[%c0_24, %c0_25, %c0_26], %67 {strides = array<i32>} : memref<14x16x64xf32, #tpu.memory_space<vmem>>, vector<14x16x64xf32>,
    %c3 = arith.constant 3 : index
    %c3_27 = arith.constant 3 : index
    %c0_28 = arith.constant 0 : index
    %69 = vector.load %arg10[%c3, %c3_27, %c0_28] : memref<14x16x64xf32, #tpu.memory_space<vmem>>, vector<8x8x64xf32>
    tpu.vector_store %arg10[%c3, %c3_27, %c0_28], %66 {strides = array<i32>} : memref<14x16x64xf32, #tpu.memory_space<vmem>>, vector<8x8x64xf32>,
    %c0_29 = arith.constant 0 : index
    %c0_30 = arith.constant 0 : index
    %70 = vector.load %arg7[%c0_29, %c0_30] : memref<8x64xf32, #tpu.memory_space<vmem>>, vector<8x64xf32>
    %71 = vector.shape_cast %70 : vector<8x64xf32> to vector<1x8x64xf32>
    %72 = vector.broadcast %71 : vector<1x8x64xf32> to vector<8x8x64xf32>
    %c0_31 = arith.constant 0 : index
    %c0_32 = arith.constant 0 : index
    %c0_33 = arith.constant 0 : index
    %73 = vector.load %arg10[%c0_31, %c0_32, %c0_33] : memref<14x16x64xf32, #tpu.memory_space<vmem>>, vector<14x8x64xf32>
    %74 = vector.extract_strided_slice %73 {offsets = [0, 0, 0], sizes = [8, 8, 64], strides = [1, 1, 1]} : vector<14x8x64xf32> to vector<8x8x64xf32>
    %c0_34 = arith.constant 0 : index
    %c0_35 = arith.constant 0 : index
    %c0_36 = arith.constant 0 : index
    %75 = vector.load %arg6[%c0_34, %c0_35, %c0_36] : memref<49x8x64xf32, #tpu.memory_space<vmem>>, vector<1x8x64xf32>
    %76 = vector.shape_cast %75 : vector<1x8x64xf32> to vector<8x64xf32>
    %77 = vector.shape_cast %76 : vector<8x64xf32> to vector<1x8x64xf32>
    %78 = vector.broadcast %77 : vector<1x8x64xf32> to vector<8x8x64xf32>
    %79 = arith.mulf %74, %78 : vector<8x8x64xf32>
    %80 = arith.addf %72, %79 : vector<8x8x64xf32>
    %81 = vector.extract_strided_slice %73 {offsets = [1, 0, 0], sizes = [8, 8, 64], strides = [1, 1, 1]} : vector<14x8x64xf32> to vector<8x8x64xf32>
    %c7 = arith.constant 7 : index
    %c0_37 = arith.constant 0 : index
    %c0_38 = arith.constant 0 : index
    %82 = vector.load %arg6[%c7, %c0_37, %c0_38] : memref<49x8x64xf32, #tpu.memory_space<vmem>>, vector<1x8x64xf32>
    %83 = vector.shape_cast %82 : vector<1x8x64xf32> to vector<8x64xf32>
    %84 = vector.shape_cast %83 : vector<8x64xf32> to vector<1x8x64xf32>
    %85 = vector.broadcast %84 : vector<1x8x64xf32> to vector<8x8x64xf32>
    %86 = arith.mulf %81, %85 : vector<8x8x64xf32>
    %87 = arith.addf %80, %86 : vector<8x8x64xf32>
    %88 = vector.extract_strided_slice %73 {offsets = [2, 0, 0], sizes = [8, 8, 64], strides = [1, 1, 1]} : vector<14x8x64xf32> to vector<8x8x64xf32>
    %c14 = arith.constant 14 : index
    %c0_39 = arith.constant 0 : index
    %c0_40 = arith.constant 0 : index
    %89 = vector.load %arg6[%c14, %c0_39, %c0_40] : memref<49x8x64xf32, #tpu.memory_space<vmem>>, vector<1x8x64xf32>
    %90 = vector.shape_cast %89 : vector<1x8x64xf32> to vector<8x64xf32>
    %91 = vector.shape_cast %90 : vector<8x64xf32> to vector<1x8x64xf32>
    %92 = vector.broadcast %91 : vector<1x8x64xf32> to vector<8x8x64xf32>
    %93 = arith.mulf %88, %92 : vector<8x8x64xf32>
    %94 = arith.addf %87, %93 : vector<8x8x64xf32>
    %95 = vector.extract_strided_slice %73 {offsets = [3, 0, 0], sizes = [8, 8, 64], strides = [1, 1, 1]} : vector<14x8x64xf32> to vector<8x8x64xf32>
    %c21 = arith.constant 21 : index
    %c0_41 = arith.constant 0 : index
    %c0_42 = arith.constant 0 : index
    %96 = vector.load %arg6[%c21, %c0_41, %c0_42] : memref<49x8x64xf32, #tpu.memory_space<vmem>>, vector<1x8x64xf32>
    %97 = vector.shape_cast %96 : vector<1x8x64xf32> to vector<8x64xf32>
    %98 = vector.shape_cast %97 : vector<8x64xf32> to vector<1x8x64xf32>
    %99 = vector.broadcast %98 : vector<1x8x64xf32> to vector<8x8x64xf32>
    %100 = arith.mulf %95, %99 : vector<8x8x64xf32>
    %101 = arith.addf %94, %100 : vector<8x8x64xf32>
    %102 = vector.extract_strided_slice %73 {offsets = [4, 0, 0], sizes = [8, 8, 64], strides = [1, 1, 1]} : vector<14x8x64xf32> to vector<8x8x64xf32>
    %c28 = arith.constant 28 : index
    %c0_43 = arith.constant 0 : index
    %c0_44 = arith.constant 0 : index
    %103 = vector.load %arg6[%c28, %c0_43, %c0_44] : memref<49x8x64xf32, #tpu.memory_space<vmem>>, vector<1x8x64xf32>
    %104 = vector.shape_cast %103 : vector<1x8x64xf32> to vector<8x64xf32>
    %105 = vector.shape_cast %104 : vector<8x64xf32> to vector<1x8x64xf32>
    %106 = vector.broadcast %105 : vector<1x8x64xf32> to vector<8x8x64xf32>
    %107 = arith.mulf %102, %106 : vector<8x8x64xf32>
    %108 = arith.addf %101, %107 : vector<8x8x64xf32>
    %109 = vector.extract_strided_slice %73 {offsets = [5, 0, 0], sizes = [8, 8, 64], strides = [1, 1, 1]} : vector<14x8x64xf32> to vector<8x8x64xf32>
    %c35 = arith.constant 35 : index
    %c0_45 = arith.constant 0 : index
    %c0_46 = arith.constant 0 : index
    %110 = vector.load %arg6[%c35, %c0_45, %c0_46] : memref<49x8x64xf32, #tpu.memory_space<vmem>>, vector<1x8x64xf32>
    %111 = vector.shape_cast %110 : vector<1x8x64xf32> to vector<8x64xf32>
    %112 = vector.shape_cast %111 : vector<8x64xf32> to vector<1x8x64xf32>
    %113 = vector.broadcast %112 : vector<1x8x64xf32> to vector<8x8x64xf32>
    %114 = arith.mulf %109, %113 : vector<8x8x64xf32>
    %115 = arith.addf %108, %114 : vector<8x8x64xf32>
    %116 = vector.extract_strided_slice %73 {offsets = [6, 0, 0], sizes = [8, 8, 64], strides = [1, 1, 1]} : vector<14x8x64xf32> to vector<8x8x64xf32>
    %c42 = arith.constant 42 : index
    %c0_47 = arith.constant 0 : index
    %c0_48 = arith.constant 0 : index
    %117 = vector.load %arg6[%c42, %c0_47, %c0_48] : memref<49x8x64xf32, #tpu.memory_space<vmem>>, vector<1x8x64xf32>
    %118 = vector.shape_cast %117 : vector<1x8x64xf32> to vector<8x64xf32>
    %119 = vector.shape_cast %118 : vector<8x64xf32> to vector<1x8x64xf32>
    %120 = vector.broadcast %119 : vector<1x8x64xf32> to vector<8x8x64xf32>
    %121 = arith.mulf %116, %120 : vector<8x8x64xf32>
    %122 = arith.addf %115, %121 : vector<8x8x64xf32>
    %c0_49 = arith.constant 0 : index
    %c1 = arith.constant 1 : index
    %c0_50 = arith.constant 0 : index
    %123 = vector.load %arg10[%c0_49, %c1, %c0_50] : memref<14x16x64xf32, #tpu.memory_space<vmem>>, vector<14x8x64xf32>
    %124 = vector.extract_strided_slice %123 {offsets = [0, 0, 0], sizes = [8, 8, 64], strides = [1, 1, 1]} : vector<14x8x64xf32> to vector<8x8x64xf32>
    %c1_51 = arith.constant 1 : index
    %c0_52 = arith.constant 0 : index
    %c0_53 = arith.constant 0 : index
    %125 = vector.load %arg6[%c1_51, %c0_52, %c0_53] : memref<49x8x64xf32, #tpu.memory_space<vmem>>, vector<1x8x64xf32>
    %126 = vector.shape_cast %125 : vector<1x8x64xf32> to vector<8x64xf32>
    %127 = vector.shape_cast %126 : vector<8x64xf32> to vector<1x8x64xf32>
    %128 = vector.broadcast %127 : vector<1x8x64xf32> to vector<8x8x64xf32>
    %129 = arith.mulf %124, %128 : vector<8x8x64xf32>
    %130 = arith.addf %122, %129 : vector<8x8x64xf32>
    %131 = vector.extract_strided_slice %123 {offsets = [1, 0, 0], sizes = [8, 8, 64], strides = [1, 1, 1]} : vector<14x8x64xf32> to vector<8x8x64xf32>
    %c8 = arith.constant 8 : index
    %c0_54 = arith.constant 0 : index
    %c0_55 = arith.constant 0 : index
    %132 = vector.load %arg6[%c8, %c0_54, %c0_55] : memref<49x8x64xf32, #tpu.memory_space<vmem>>, vector<1x8x64xf32>
    %133 = vector.shape_cast %132 : vector<1x8x64xf32> to vector<8x64xf32>
    %134 = vector.shape_cast %133 : vector<8x64xf32> to vector<1x8x64xf32>
    %135 = vector.broadcast %134 : vector<1x8x64xf32> to vector<8x8x64xf32>
    %136 = arith.mulf %131, %135 : vector<8x8x64xf32>
    %137 = arith.addf %130, %136 : vector<8x8x64xf32>
    %138 = vector.extract_strided_slice %123 {offsets = [2, 0, 0], sizes = [8, 8, 64], strides = [1, 1, 1]} : vector<14x8x64xf32> to vector<8x8x64xf32>
    %c15 = arith.constant 15 : index
    %c0_56 = arith.constant 0 : index
    %c0_57 = arith.constant 0 : index
    %139 = vector.load %arg6[%c15, %c0_56, %c0_57] : memref<49x8x64xf32, #tpu.memory_space<vmem>>, vector<1x8x64xf32>
    %140 = vector.shape_cast %139 : vector<1x8x64xf32> to vector<8x64xf32>
    %141 = vector.shape_cast %140 : vector<8x64xf32> to vector<1x8x64xf32>
    %142 = vector.broadcast %141 : vector<1x8x64xf32> to vector<8x8x64xf32>
    %143 = arith.mulf %138, %142 : vector<8x8x64xf32>
    %144 = arith.addf %137, %143 : vector<8x8x64xf32>
    %145 = vector.extract_strided_slice %123 {offsets = [3, 0, 0], sizes = [8, 8, 64], strides = [1, 1, 1]} : vector<14x8x64xf32> to vector<8x8x64xf32>
    %c22 = arith.constant 22 : index
    %c0_58 = arith.constant 0 : index
    %c0_59 = arith.constant 0 : index
    %146 = vector.load %arg6[%c22, %c0_58, %c0_59] : memref<49x8x64xf32, #tpu.memory_space<vmem>>, vector<1x8x64xf32>
    %147 = vector.shape_cast %146 : vector<1x8x64xf32> to vector<8x64xf32>
    %148 = vector.shape_cast %147 : vector<8x64xf32> to vector<1x8x64xf32>
    %149 = vector.broadcast %148 : vector<1x8x64xf32> to vector<8x8x64xf32>
    %150 = arith.mulf %145, %149 : vector<8x8x64xf32>
    %151 = arith.addf %144, %150 : vector<8x8x64xf32>
    %152 = vector.extract_strided_slice %123 {offsets = [4, 0, 0], sizes = [8, 8, 64], strides = [1, 1, 1]} : vector<14x8x64xf32> to vector<8x8x64xf32>
    %c29 = arith.constant 29 : index
    %c0_60 = arith.constant 0 : index
    %c0_61 = arith.constant 0 : index
    %153 = vector.load %arg6[%c29, %c0_60, %c0_61] : memref<49x8x64xf32, #tpu.memory_space<vmem>>, vector<1x8x64xf32>
    %154 = vector.shape_cast %153 : vector<1x8x64xf32> to vector<8x64xf32>
    %155 = vector.shape_cast %154 : vector<8x64xf32> to vector<1x8x64xf32>
    %156 = vector.broadcast %155 : vector<1x8x64xf32> to vector<8x8x64xf32>
    %157 = arith.mulf %152, %156 : vector<8x8x64xf32>
    %158 = arith.addf %151, %157 : vector<8x8x64xf32>
    %159 = vector.extract_strided_slice %123 {offsets = [5, 0, 0], sizes = [8, 8, 64], strides = [1, 1, 1]} : vector<14x8x64xf32> to vector<8x8x64xf32>
    %c36 = arith.constant 36 : index
    %c0_62 = arith.constant 0 : index
    %c0_63 = arith.constant 0 : index
    %160 = vector.load %arg6[%c36, %c0_62, %c0_63] : memref<49x8x64xf32, #tpu.memory_space<vmem>>, vector<1x8x64xf32>
    %161 = vector.shape_cast %160 : vector<1x8x64xf32> to vector<8x64xf32>
    %162 = vector.shape_cast %161 : vector<8x64xf32> to vector<1x8x64xf32>
    %163 = vector.broadcast %162 : vector<1x8x64xf32> to vector<8x8x64xf32>
    %164 = arith.mulf %159, %163 : vector<8x8x64xf32>
    %165 = arith.addf %158, %164 : vector<8x8x64xf32>
    %166 = vector.extract_strided_slice %123 {offsets = [6, 0, 0], sizes = [8, 8, 64], strides = [1, 1, 1]} : vector<14x8x64xf32> to vector<8x8x64xf32>
    %c43 = arith.constant 43 : index
    %c0_64 = arith.constant 0 : index
    %c0_65 = arith.constant 0 : index
    %167 = vector.load %arg6[%c43, %c0_64, %c0_65] : memref<49x8x64xf32, #tpu.memory_space<vmem>>, vector<1x8x64xf32>
    %168 = vector.shape_cast %167 : vector<1x8x64xf32> to vector<8x64xf32>
    %169 = vector.shape_cast %168 : vector<8x64xf32> to vector<1x8x64xf32>
    %170 = vector.broadcast %169 : vector<1x8x64xf32> to vector<8x8x64xf32>
    %171 = arith.mulf %166, %170 : vector<8x8x64xf32>
    %172 = arith.addf %165, %171 : vector<8x8x64xf32>
    %c0_66 = arith.constant 0 : index
    %c2 = arith.constant 2 : index
    %c0_67 = arith.constant 0 : index
    %173 = vector.load %arg10[%c0_66, %c2, %c0_67] : memref<14x16x64xf32, #tpu.memory_space<vmem>>, vector<14x8x64xf32>
    %174 = vector.extract_strided_slice %173 {offsets = [0, 0, 0], sizes = [8, 8, 64], strides = [1, 1, 1]} : vector<14x8x64xf32> to vector<8x8x64xf32>
    %c2_68 = arith.constant 2 : index
    %c0_69 = arith.constant 0 : index
    %c0_70 = arith.constant 0 : index
    %175 = vector.load %arg6[%c2_68, %c0_69, %c0_70] : memref<49x8x64xf32, #tpu.memory_space<vmem>>, vector<1x8x64xf32>
    %176 = vector.shape_cast %175 : vector<1x8x64xf32> to vector<8x64xf32>
    %177 = vector.shape_cast %176 : vector<8x64xf32> to vector<1x8x64xf32>
    %178 = vector.broadcast %177 : vector<1x8x64xf32> to vector<8x8x64xf32>
    %179 = arith.mulf %174, %178 : vector<8x8x64xf32>
    %180 = arith.addf %172, %179 : vector<8x8x64xf32>
    %181 = vector.extract_strided_slice %173 {offsets = [1, 0, 0], sizes = [8, 8, 64], strides = [1, 1, 1]} : vector<14x8x64xf32> to vector<8x8x64xf32>
    %c9 = arith.constant 9 : index
    %c0_71 = arith.constant 0 : index
    %c0_72 = arith.constant 0 : index
    %182 = vector.load %arg6[%c9, %c0_71, %c0_72] : memref<49x8x64xf32, #tpu.memory_space<vmem>>, vector<1x8x64xf32>
    %183 = vector.shape_cast %182 : vector<1x8x64xf32> to vector<8x64xf32>
    %184 = vector.shape_cast %183 : vector<8x64xf32> to vector<1x8x64xf32>
    %185 = vector.broadcast %184 : vector<1x8x64xf32> to vector<8x8x64xf32>
    %186 = arith.mulf %181, %185 : vector<8x8x64xf32>
    %187 = arith.addf %180, %186 : vector<8x8x64xf32>
    %188 = vector.extract_strided_slice %173 {offsets = [2, 0, 0], sizes = [8, 8, 64], strides = [1, 1, 1]} : vector<14x8x64xf32> to vector<8x8x64xf32>
    %c16 = arith.constant 16 : index
    %c0_73 = arith.constant 0 : index
    %c0_74 = arith.constant 0 : index
    %189 = vector.load %arg6[%c16, %c0_73, %c0_74] : memref<49x8x64xf32, #tpu.memory_space<vmem>>, vector<1x8x64xf32>
    %190 = vector.shape_cast %189 : vector<1x8x64xf32> to vector<8x64xf32>
    %191 = vector.shape_cast %190 : vector<8x64xf32> to vector<1x8x64xf32>
    %192 = vector.broadcast %191 : vector<1x8x64xf32> to vector<8x8x64xf32>
    %193 = arith.mulf %188, %192 : vector<8x8x64xf32>
    %194 = arith.addf %187, %193 : vector<8x8x64xf32>
    %195 = vector.extract_strided_slice %173 {offsets = [3, 0, 0], sizes = [8, 8, 64], strides = [1, 1, 1]} : vector<14x8x64xf32> to vector<8x8x64xf32>
    %c23 = arith.constant 23 : index
    %c0_75 = arith.constant 0 : index
    %c0_76 = arith.constant 0 : index
    %196 = vector.load %arg6[%c23, %c0_75, %c0_76] : memref<49x8x64xf32, #tpu.memory_space<vmem>>, vector<1x8x64xf32>
    %197 = vector.shape_cast %196 : vector<1x8x64xf32> to vector<8x64xf32>
    %198 = vector.shape_cast %197 : vector<8x64xf32> to vector<1x8x64xf32>
    %199 = vector.broadcast %198 : vector<1x8x64xf32> to vector<8x8x64xf32>
    %200 = arith.mulf %195, %199 : vector<8x8x64xf32>
    %201 = arith.addf %194, %200 : vector<8x8x64xf32>
    %202 = vector.extract_strided_slice %173 {offsets = [4, 0, 0], sizes = [8, 8, 64], strides = [1, 1, 1]} : vector<14x8x64xf32> to vector<8x8x64xf32>
    %c30 = arith.constant 30 : index
    %c0_77 = arith.constant 0 : index
    %c0_78 = arith.constant 0 : index
    %203 = vector.load %arg6[%c30, %c0_77, %c0_78] : memref<49x8x64xf32, #tpu.memory_space<vmem>>, vector<1x8x64xf32>
    %204 = vector.shape_cast %203 : vector<1x8x64xf32> to vector<8x64xf32>
    %205 = vector.shape_cast %204 : vector<8x64xf32> to vector<1x8x64xf32>
    %206 = vector.broadcast %205 : vector<1x8x64xf32> to vector<8x8x64xf32>
    %207 = arith.mulf %202, %206 : vector<8x8x64xf32>
    %208 = arith.addf %201, %207 : vector<8x8x64xf32>
    %209 = vector.extract_strided_slice %173 {offsets = [5, 0, 0], sizes = [8, 8, 64], strides = [1, 1, 1]} : vector<14x8x64xf32> to vector<8x8x64xf32>
    %c37 = arith.constant 37 : index
    %c0_79 = arith.constant 0 : index
    %c0_80 = arith.constant 0 : index
    %210 = vector.load %arg6[%c37, %c0_79, %c0_80] : memref<49x8x64xf32, #tpu.memory_space<vmem>>, vector<1x8x64xf32>
    %211 = vector.shape_cast %210 : vector<1x8x64xf32> to vector<8x64xf32>
    %212 = vector.shape_cast %211 : vector<8x64xf32> to vector<1x8x64xf32>
    %213 = vector.broadcast %212 : vector<1x8x64xf32> to vector<8x8x64xf32>
    %214 = arith.mulf %209, %213 : vector<8x8x64xf32>
    %215 = arith.addf %208, %214 : vector<8x8x64xf32>
    %216 = vector.extract_strided_slice %173 {offsets = [6, 0, 0], sizes = [8, 8, 64], strides = [1, 1, 1]} : vector<14x8x64xf32> to vector<8x8x64xf32>
    %c44 = arith.constant 44 : index
    %c0_81 = arith.constant 0 : index
    %c0_82 = arith.constant 0 : index
    %217 = vector.load %arg6[%c44, %c0_81, %c0_82] : memref<49x8x64xf32, #tpu.memory_space<vmem>>, vector<1x8x64xf32>
    %218 = vector.shape_cast %217 : vector<1x8x64xf32> to vector<8x64xf32>
    %219 = vector.shape_cast %218 : vector<8x64xf32> to vector<1x8x64xf32>
    %220 = vector.broadcast %219 : vector<1x8x64xf32> to vector<8x8x64xf32>
    %221 = arith.mulf %216, %220 : vector<8x8x64xf32>
    %222 = arith.addf %215, %221 : vector<8x8x64xf32>
    %c0_83 = arith.constant 0 : index
    %c3_84 = arith.constant 3 : index
    %c0_85 = arith.constant 0 : index
    %223 = vector.load %arg10[%c0_83, %c3_84, %c0_85] : memref<14x16x64xf32, #tpu.memory_space<vmem>>, vector<14x8x64xf32>
    %224 = vector.extract_strided_slice %223 {offsets = [0, 0, 0], sizes = [8, 8, 64], strides = [1, 1, 1]} : vector<14x8x64xf32> to vector<8x8x64xf32>
    %c3_86 = arith.constant 3 : index
    %c0_87 = arith.constant 0 : index
    %c0_88 = arith.constant 0 : index
    %225 = vector.load %arg6[%c3_86, %c0_87, %c0_88] : memref<49x8x64xf32, #tpu.memory_space<vmem>>, vector<1x8x64xf32>
    %226 = vector.shape_cast %225 : vector<1x8x64xf32> to vector<8x64xf32>
    %227 = vector.shape_cast %226 : vector<8x64xf32> to vector<1x8x64xf32>
    %228 = vector.broadcast %227 : vector<1x8x64xf32> to vector<8x8x64xf32>
    %229 = arith.mulf %224, %228 : vector<8x8x64xf32>
    %230 = arith.addf %222, %229 : vector<8x8x64xf32>
    %231 = vector.extract_strided_slice %223 {offsets = [1, 0, 0], sizes = [8, 8, 64], strides = [1, 1, 1]} : vector<14x8x64xf32> to vector<8x8x64xf32>
    %c10 = arith.constant 10 : index
    %c0_89 = arith.constant 0 : index
    %c0_90 = arith.constant 0 : index
    %232 = vector.load %arg6[%c10, %c0_89, %c0_90] : memref<49x8x64xf32, #tpu.memory_space<vmem>>, vector<1x8x64xf32>
    %233 = vector.shape_cast %232 : vector<1x8x64xf32> to vector<8x64xf32>
    %234 = vector.shape_cast %233 : vector<8x64xf32> to vector<1x8x64xf32>
    %235 = vector.broadcast %234 : vector<1x8x64xf32> to vector<8x8x64xf32>
    %236 = arith.mulf %231, %235 : vector<8x8x64xf32>
    %237 = arith.addf %230, %236 : vector<8x8x64xf32>
    %238 = vector.extract_strided_slice %223 {offsets = [2, 0, 0], sizes = [8, 8, 64], strides = [1, 1, 1]} : vector<14x8x64xf32> to vector<8x8x64xf32>
    %c17 = arith.constant 17 : index
    %c0_91 = arith.constant 0 : index
    %c0_92 = arith.constant 0 : index
    %239 = vector.load %arg6[%c17, %c0_91, %c0_92] : memref<49x8x64xf32, #tpu.memory_space<vmem>>, vector<1x8x64xf32>
    %240 = vector.shape_cast %239 : vector<1x8x64xf32> to vector<8x64xf32>
    %241 = vector.shape_cast %240 : vector<8x64xf32> to vector<1x8x64xf32>
    %242 = vector.broadcast %241 : vector<1x8x64xf32> to vector<8x8x64xf32>
    %243 = arith.mulf %238, %242 : vector<8x8x64xf32>
    %244 = arith.addf %237, %243 : vector<8x8x64xf32>
    %245 = vector.extract_strided_slice %223 {offsets = [3, 0, 0], sizes = [8, 8, 64], strides = [1, 1, 1]} : vector<14x8x64xf32> to vector<8x8x64xf32>
    %c24 = arith.constant 24 : index
    %c0_93 = arith.constant 0 : index
    %c0_94 = arith.constant 0 : index
    %246 = vector.load %arg6[%c24, %c0_93, %c0_94] : memref<49x8x64xf32, #tpu.memory_space<vmem>>, vector<1x8x64xf32>
    %247 = vector.shape_cast %246 : vector<1x8x64xf32> to vector<8x64xf32>
    %248 = vector.shape_cast %247 : vector<8x64xf32> to vector<1x8x64xf32>
    %249 = vector.broadcast %248 : vector<1x8x64xf32> to vector<8x8x64xf32>
    %250 = arith.mulf %245, %249 : vector<8x8x64xf32>
    %251 = arith.addf %244, %250 : vector<8x8x64xf32>
    %252 = vector.extract_strided_slice %223 {offsets = [4, 0, 0], sizes = [8, 8, 64], strides = [1, 1, 1]} : vector<14x8x64xf32> to vector<8x8x64xf32>
    %c31 = arith.constant 31 : index
    %c0_95 = arith.constant 0 : index
    %c0_96 = arith.constant 0 : index
    %253 = vector.load %arg6[%c31, %c0_95, %c0_96] : memref<49x8x64xf32, #tpu.memory_space<vmem>>, vector<1x8x64xf32>
    %254 = vector.shape_cast %253 : vector<1x8x64xf32> to vector<8x64xf32>
    %255 = vector.shape_cast %254 : vector<8x64xf32> to vector<1x8x64xf32>
    %256 = vector.broadcast %255 : vector<1x8x64xf32> to vector<8x8x64xf32>
    %257 = arith.mulf %252, %256 : vector<8x8x64xf32>
    %258 = arith.addf %251, %257 : vector<8x8x64xf32>
    %259 = vector.extract_strided_slice %223 {offsets = [5, 0, 0], sizes = [8, 8, 64], strides = [1, 1, 1]} : vector<14x8x64xf32> to vector<8x8x64xf32>
    %c38 = arith.constant 38 : index
    %c0_97 = arith.constant 0 : index
    %c0_98 = arith.constant 0 : index
    %260 = vector.load %arg6[%c38, %c0_97, %c0_98] : memref<49x8x64xf32, #tpu.memory_space<vmem>>, vector<1x8x64xf32>
    %261 = vector.shape_cast %260 : vector<1x8x64xf32> to vector<8x64xf32>
    %262 = vector.shape_cast %261 : vector<8x64xf32> to vector<1x8x64xf32>
    %263 = vector.broadcast %262 : vector<1x8x64xf32> to vector<8x8x64xf32>
    %264 = arith.mulf %259, %263 : vector<8x8x64xf32>
    %265 = arith.addf %258, %264 : vector<8x8x64xf32>
    %266 = vector.extract_strided_slice %223 {offsets = [6, 0, 0], sizes = [8, 8, 64], strides = [1, 1, 1]} : vector<14x8x64xf32> to vector<8x8x64xf32>
    %c45 = arith.constant 45 : index
    %c0_99 = arith.constant 0 : index
    %c0_100 = arith.constant 0 : index
    %267 = vector.load %arg6[%c45, %c0_99, %c0_100] : memref<49x8x64xf32, #tpu.memory_space<vmem>>, vector<1x8x64xf32>
    %268 = vector.shape_cast %267 : vector<1x8x64xf32> to vector<8x64xf32>
    %269 = vector.shape_cast %268 : vector<8x64xf32> to vector<1x8x64xf32>
    %270 = vector.broadcast %269 : vector<1x8x64xf32> to vector<8x8x64xf32>
    %271 = arith.mulf %266, %270 : vector<8x8x64xf32>
    %272 = arith.addf %265, %271 : vector<8x8x64xf32>
    %c0_101 = arith.constant 0 : index
    %c4 = arith.constant 4 : index
    %c0_102 = arith.constant 0 : index
    %273 = vector.load %arg10[%c0_101, %c4, %c0_102] : memref<14x16x64xf32, #tpu.memory_space<vmem>>, vector<14x8x64xf32>
    %274 = vector.extract_strided_slice %273 {offsets = [0, 0, 0], sizes = [8, 8, 64], strides = [1, 1, 1]} : vector<14x8x64xf32> to vector<8x8x64xf32>
    %c4_103 = arith.constant 4 : index
    %c0_104 = arith.constant 0 : index
    %c0_105 = arith.constant 0 : index
    %275 = vector.load %arg6[%c4_103, %c0_104, %c0_105] : memref<49x8x64xf32, #tpu.memory_space<vmem>>, vector<1x8x64xf32>
    %276 = vector.shape_cast %275 : vector<1x8x64xf32> to vector<8x64xf32>
    %277 = vector.shape_cast %276 : vector<8x64xf32> to vector<1x8x64xf32>
    %278 = vector.broadcast %277 : vector<1x8x64xf32> to vector<8x8x64xf32>
    %279 = arith.mulf %274, %278 : vector<8x8x64xf32>
    %280 = arith.addf %272, %279 : vector<8x8x64xf32>
    %281 = vector.extract_strided_slice %273 {offsets = [1, 0, 0], sizes = [8, 8, 64], strides = [1, 1, 1]} : vector<14x8x64xf32> to vector<8x8x64xf32>
    %c11 = arith.constant 11 : index
    %c0_106 = arith.constant 0 : index
    %c0_107 = arith.constant 0 : index
    %282 = vector.load %arg6[%c11, %c0_106, %c0_107] : memref<49x8x64xf32, #tpu.memory_space<vmem>>, vector<1x8x64xf32>
    %283 = vector.shape_cast %282 : vector<1x8x64xf32> to vector<8x64xf32>
    %284 = vector.shape_cast %283 : vector<8x64xf32> to vector<1x8x64xf32>
    %285 = vector.broadcast %284 : vector<1x8x64xf32> to vector<8x8x64xf32>
    %286 = arith.mulf %281, %285 : vector<8x8x64xf32>
    %287 = arith.addf %280, %286 : vector<8x8x64xf32>
    %288 = vector.extract_strided_slice %273 {offsets = [2, 0, 0], sizes = [8, 8, 64], strides = [1, 1, 1]} : vector<14x8x64xf32> to vector<8x8x64xf32>
    %c18 = arith.constant 18 : index
    %c0_108 = arith.constant 0 : index
    %c0_109 = arith.constant 0 : index
    %289 = vector.load %arg6[%c18, %c0_108, %c0_109] : memref<49x8x64xf32, #tpu.memory_space<vmem>>, vector<1x8x64xf32>
    %290 = vector.shape_cast %289 : vector<1x8x64xf32> to vector<8x64xf32>
    %291 = vector.shape_cast %290 : vector<8x64xf32> to vector<1x8x64xf32>
    %292 = vector.broadcast %291 : vector<1x8x64xf32> to vector<8x8x64xf32>
    %293 = arith.mulf %288, %292 : vector<8x8x64xf32>
    %294 = arith.addf %287, %293 : vector<8x8x64xf32>
    %295 = vector.extract_strided_slice %273 {offsets = [3, 0, 0], sizes = [8, 8, 64], strides = [1, 1, 1]} : vector<14x8x64xf32> to vector<8x8x64xf32>
    %c25 = arith.constant 25 : index
    %c0_110 = arith.constant 0 : index
    %c0_111 = arith.constant 0 : index
    %296 = vector.load %arg6[%c25, %c0_110, %c0_111] : memref<49x8x64xf32, #tpu.memory_space<vmem>>, vector<1x8x64xf32>
    %297 = vector.shape_cast %296 : vector<1x8x64xf32> to vector<8x64xf32>
    %298 = vector.shape_cast %297 : vector<8x64xf32> to vector<1x8x64xf32>
    %299 = vector.broadcast %298 : vector<1x8x64xf32> to vector<8x8x64xf32>
    %300 = arith.mulf %295, %299 : vector<8x8x64xf32>
    %301 = arith.addf %294, %300 : vector<8x8x64xf32>
    %302 = vector.extract_strided_slice %273 {offsets = [4, 0, 0], sizes = [8, 8, 64], strides = [1, 1, 1]} : vector<14x8x64xf32> to vector<8x8x64xf32>
    %c32 = arith.constant 32 : index
    %c0_112 = arith.constant 0 : index
    %c0_113 = arith.constant 0 : index
    %303 = vector.load %arg6[%c32, %c0_112, %c0_113] : memref<49x8x64xf32, #tpu.memory_space<vmem>>, vector<1x8x64xf32>
    %304 = vector.shape_cast %303 : vector<1x8x64xf32> to vector<8x64xf32>
    %305 = vector.shape_cast %304 : vector<8x64xf32> to vector<1x8x64xf32>
    %306 = vector.broadcast %305 : vector<1x8x64xf32> to vector<8x8x64xf32>
    %307 = arith.mulf %302, %306 : vector<8x8x64xf32>
    %308 = arith.addf %301, %307 : vector<8x8x64xf32>
    %309 = vector.extract_strided_slice %273 {offsets = [5, 0, 0], sizes = [8, 8, 64], strides = [1, 1, 1]} : vector<14x8x64xf32> to vector<8x8x64xf32>
    %c39 = arith.constant 39 : index
    %c0_114 = arith.constant 0 : index
    %c0_115 = arith.constant 0 : index
    %310 = vector.load %arg6[%c39, %c0_114, %c0_115] : memref<49x8x64xf32, #tpu.memory_space<vmem>>, vector<1x8x64xf32>
    %311 = vector.shape_cast %310 : vector<1x8x64xf32> to vector<8x64xf32>
    %312 = vector.shape_cast %311 : vector<8x64xf32> to vector<1x8x64xf32>
    %313 = vector.broadcast %312 : vector<1x8x64xf32> to vector<8x8x64xf32>
    %314 = arith.mulf %309, %313 : vector<8x8x64xf32>
    %315 = arith.addf %308, %314 : vector<8x8x64xf32>
    %316 = vector.extract_strided_slice %273 {offsets = [6, 0, 0], sizes = [8, 8, 64], strides = [1, 1, 1]} : vector<14x8x64xf32> to vector<8x8x64xf32>
    %c46 = arith.constant 46 : index
    %c0_116 = arith.constant 0 : index
    %c0_117 = arith.constant 0 : index
    %317 = vector.load %arg6[%c46, %c0_116, %c0_117] : memref<49x8x64xf32, #tpu.memory_space<vmem>>, vector<1x8x64xf32>
    %318 = vector.shape_cast %317 : vector<1x8x64xf32> to vector<8x64xf32>
    %319 = vector.shape_cast %318 : vector<8x64xf32> to vector<1x8x64xf32>
    %320 = vector.broadcast %319 : vector<1x8x64xf32> to vector<8x8x64xf32>
    %321 = arith.mulf %316, %320 : vector<8x8x64xf32>
    %322 = arith.addf %315, %321 : vector<8x8x64xf32>
    %c0_118 = arith.constant 0 : index
    %c5 = arith.constant 5 : index
    %c0_119 = arith.constant 0 : index
    %323 = vector.load %arg10[%c0_118, %c5, %c0_119] : memref<14x16x64xf32, #tpu.memory_space<vmem>>, vector<14x8x64xf32>
    %324 = vector.extract_strided_slice %323 {offsets = [0, 0, 0], sizes = [8, 8, 64], strides = [1, 1, 1]} : vector<14x8x64xf32> to vector<8x8x64xf32>
    %c5_120 = arith.constant 5 : index
    %c0_121 = arith.constant 0 : index
    %c0_122 = arith.constant 0 : index
    %325 = vector.load %arg6[%c5_120, %c0_121, %c0_122] : memref<49x8x64xf32, #tpu.memory_space<vmem>>, vector<1x8x64xf32>
    %326 = vector.shape_cast %325 : vector<1x8x64xf32> to vector<8x64xf32>
    %327 = vector.shape_cast %326 : vector<8x64xf32> to vector<1x8x64xf32>
    %328 = vector.broadcast %327 : vector<1x8x64xf32> to vector<8x8x64xf32>
    %329 = arith.mulf %324, %328 : vector<8x8x64xf32>
    %330 = arith.addf %322, %329 : vector<8x8x64xf32>
    %331 = vector.extract_strided_slice %323 {offsets = [1, 0, 0], sizes = [8, 8, 64], strides = [1, 1, 1]} : vector<14x8x64xf32> to vector<8x8x64xf32>
    %c12 = arith.constant 12 : index
    %c0_123 = arith.constant 0 : index
    %c0_124 = arith.constant 0 : index
    %332 = vector.load %arg6[%c12, %c0_123, %c0_124] : memref<49x8x64xf32, #tpu.memory_space<vmem>>, vector<1x8x64xf32>
    %333 = vector.shape_cast %332 : vector<1x8x64xf32> to vector<8x64xf32>
    %334 = vector.shape_cast %333 : vector<8x64xf32> to vector<1x8x64xf32>
    %335 = vector.broadcast %334 : vector<1x8x64xf32> to vector<8x8x64xf32>
    %336 = arith.mulf %331, %335 : vector<8x8x64xf32>
    %337 = arith.addf %330, %336 : vector<8x8x64xf32>
    %338 = vector.extract_strided_slice %323 {offsets = [2, 0, 0], sizes = [8, 8, 64], strides = [1, 1, 1]} : vector<14x8x64xf32> to vector<8x8x64xf32>
    %c19 = arith.constant 19 : index
    %c0_125 = arith.constant 0 : index
    %c0_126 = arith.constant 0 : index
    %339 = vector.load %arg6[%c19, %c0_125, %c0_126] : memref<49x8x64xf32, #tpu.memory_space<vmem>>, vector<1x8x64xf32>
    %340 = vector.shape_cast %339 : vector<1x8x64xf32> to vector<8x64xf32>
    %341 = vector.shape_cast %340 : vector<8x64xf32> to vector<1x8x64xf32>
    %342 = vector.broadcast %341 : vector<1x8x64xf32> to vector<8x8x64xf32>
    %343 = arith.mulf %338, %342 : vector<8x8x64xf32>
    %344 = arith.addf %337, %343 : vector<8x8x64xf32>
    %345 = vector.extract_strided_slice %323 {offsets = [3, 0, 0], sizes = [8, 8, 64], strides = [1, 1, 1]} : vector<14x8x64xf32> to vector<8x8x64xf32>
    %c26 = arith.constant 26 : index
    %c0_127 = arith.constant 0 : index
    %c0_128 = arith.constant 0 : index
    %346 = vector.load %arg6[%c26, %c0_127, %c0_128] : memref<49x8x64xf32, #tpu.memory_space<vmem>>, vector<1x8x64xf32>
    %347 = vector.shape_cast %346 : vector<1x8x64xf32> to vector<8x64xf32>
    %348 = vector.shape_cast %347 : vector<8x64xf32> to vector<1x8x64xf32>
    %349 = vector.broadcast %348 : vector<1x8x64xf32> to vector<8x8x64xf32>
    %350 = arith.mulf %345, %349 : vector<8x8x64xf32>
    %351 = arith.addf %344, %350 : vector<8x8x64xf32>
    %352 = vector.extract_strided_slice %323 {offsets = [4, 0, 0], sizes = [8, 8, 64], strides = [1, 1, 1]} : vector<14x8x64xf32> to vector<8x8x64xf32>
    %c33 = arith.constant 33 : index
    %c0_129 = arith.constant 0 : index
    %c0_130 = arith.constant 0 : index
    %353 = vector.load %arg6[%c33, %c0_129, %c0_130] : memref<49x8x64xf32, #tpu.memory_space<vmem>>, vector<1x8x64xf32>
    %354 = vector.shape_cast %353 : vector<1x8x64xf32> to vector<8x64xf32>
    %355 = vector.shape_cast %354 : vector<8x64xf32> to vector<1x8x64xf32>
    %356 = vector.broadcast %355 : vector<1x8x64xf32> to vector<8x8x64xf32>
    %357 = arith.mulf %352, %356 : vector<8x8x64xf32>
    %358 = arith.addf %351, %357 : vector<8x8x64xf32>
    %359 = vector.extract_strided_slice %323 {offsets = [5, 0, 0], sizes = [8, 8, 64], strides = [1, 1, 1]} : vector<14x8x64xf32> to vector<8x8x64xf32>
    %c40 = arith.constant 40 : index
    %c0_131 = arith.constant 0 : index
    %c0_132 = arith.constant 0 : index
    %360 = vector.load %arg6[%c40, %c0_131, %c0_132] : memref<49x8x64xf32, #tpu.memory_space<vmem>>, vector<1x8x64xf32>
    %361 = vector.shape_cast %360 : vector<1x8x64xf32> to vector<8x64xf32>
    %362 = vector.shape_cast %361 : vector<8x64xf32> to vector<1x8x64xf32>
    %363 = vector.broadcast %362 : vector<1x8x64xf32> to vector<8x8x64xf32>
    %364 = arith.mulf %359, %363 : vector<8x8x64xf32>
    %365 = arith.addf %358, %364 : vector<8x8x64xf32>
    %366 = vector.extract_strided_slice %323 {offsets = [6, 0, 0], sizes = [8, 8, 64], strides = [1, 1, 1]} : vector<14x8x64xf32> to vector<8x8x64xf32>
    %c47 = arith.constant 47 : index
    %c0_133 = arith.constant 0 : index
    %c0_134 = arith.constant 0 : index
    %367 = vector.load %arg6[%c47, %c0_133, %c0_134] : memref<49x8x64xf32, #tpu.memory_space<vmem>>, vector<1x8x64xf32>
    %368 = vector.shape_cast %367 : vector<1x8x64xf32> to vector<8x64xf32>
    %369 = vector.shape_cast %368 : vector<8x64xf32> to vector<1x8x64xf32>
    %370 = vector.broadcast %369 : vector<1x8x64xf32> to vector<8x8x64xf32>
    %371 = arith.mulf %366, %370 : vector<8x8x64xf32>
    %372 = arith.addf %365, %371 : vector<8x8x64xf32>
    %c0_135 = arith.constant 0 : index
    %c6 = arith.constant 6 : index
    %c0_136 = arith.constant 0 : index
    %373 = vector.load %arg10[%c0_135, %c6, %c0_136] : memref<14x16x64xf32, #tpu.memory_space<vmem>>, vector<14x8x64xf32>
    %374 = vector.extract_strided_slice %373 {offsets = [0, 0, 0], sizes = [8, 8, 64], strides = [1, 1, 1]} : vector<14x8x64xf32> to vector<8x8x64xf32>
    %c6_137 = arith.constant 6 : index
    %c0_138 = arith.constant 0 : index
    %c0_139 = arith.constant 0 : index
    %375 = vector.load %arg6[%c6_137, %c0_138, %c0_139] : memref<49x8x64xf32, #tpu.memory_space<vmem>>, vector<1x8x64xf32>
    %376 = vector.shape_cast %375 : vector<1x8x64xf32> to vector<8x64xf32>
    %377 = vector.shape_cast %376 : vector<8x64xf32> to vector<1x8x64xf32>
    %378 = vector.broadcast %377 : vector<1x8x64xf32> to vector<8x8x64xf32>
    %379 = arith.mulf %374, %378 : vector<8x8x64xf32>
    %380 = arith.addf %372, %379 : vector<8x8x64xf32>
    %381 = vector.extract_strided_slice %373 {offsets = [1, 0, 0], sizes = [8, 8, 64], strides = [1, 1, 1]} : vector<14x8x64xf32> to vector<8x8x64xf32>
    %c13 = arith.constant 13 : index
    %c0_140 = arith.constant 0 : index
    %c0_141 = arith.constant 0 : index
    %382 = vector.load %arg6[%c13, %c0_140, %c0_141] : memref<49x8x64xf32, #tpu.memory_space<vmem>>, vector<1x8x64xf32>
    %383 = vector.shape_cast %382 : vector<1x8x64xf32> to vector<8x64xf32>
    %384 = vector.shape_cast %383 : vector<8x64xf32> to vector<1x8x64xf32>
    %385 = vector.broadcast %384 : vector<1x8x64xf32> to vector<8x8x64xf32>
    %386 = arith.mulf %381, %385 : vector<8x8x64xf32>
    %387 = arith.addf %380, %386 : vector<8x8x64xf32>
    %388 = vector.extract_strided_slice %373 {offsets = [2, 0, 0], sizes = [8, 8, 64], strides = [1, 1, 1]} : vector<14x8x64xf32> to vector<8x8x64xf32>
    %c20 = arith.constant 20 : index
    %c0_142 = arith.constant 0 : index
    %c0_143 = arith.constant 0 : index
    %389 = vector.load %arg6[%c20, %c0_142, %c0_143] : memref<49x8x64xf32, #tpu.memory_space<vmem>>, vector<1x8x64xf32>
    %390 = vector.shape_cast %389 : vector<1x8x64xf32> to vector<8x64xf32>
    %391 = vector.shape_cast %390 : vector<8x64xf32> to vector<1x8x64xf32>
    %392 = vector.broadcast %391 : vector<1x8x64xf32> to vector<8x8x64xf32>
    %393 = arith.mulf %388, %392 : vector<8x8x64xf32>
    %394 = arith.addf %387, %393 : vector<8x8x64xf32>
    %395 = vector.extract_strided_slice %373 {offsets = [3, 0, 0], sizes = [8, 8, 64], strides = [1, 1, 1]} : vector<14x8x64xf32> to vector<8x8x64xf32>
    %c27 = arith.constant 27 : index
    %c0_144 = arith.constant 0 : index
    %c0_145 = arith.constant 0 : index
    %396 = vector.load %arg6[%c27, %c0_144, %c0_145] : memref<49x8x64xf32, #tpu.memory_space<vmem>>, vector<1x8x64xf32>
    %397 = vector.shape_cast %396 : vector<1x8x64xf32> to vector<8x64xf32>
    %398 = vector.shape_cast %397 : vector<8x64xf32> to vector<1x8x64xf32>
    %399 = vector.broadcast %398 : vector<1x8x64xf32> to vector<8x8x64xf32>
    %400 = arith.mulf %395, %399 : vector<8x8x64xf32>
    %401 = arith.addf %394, %400 : vector<8x8x64xf32>
    %402 = vector.extract_strided_slice %373 {offsets = [4, 0, 0], sizes = [8, 8, 64], strides = [1, 1, 1]} : vector<14x8x64xf32> to vector<8x8x64xf32>
    %c34 = arith.constant 34 : index
    %c0_146 = arith.constant 0 : index
    %c0_147 = arith.constant 0 : index
    %403 = vector.load %arg6[%c34, %c0_146, %c0_147] : memref<49x8x64xf32, #tpu.memory_space<vmem>>, vector<1x8x64xf32>
    %404 = vector.shape_cast %403 : vector<1x8x64xf32> to vector<8x64xf32>
    %405 = vector.shape_cast %404 : vector<8x64xf32> to vector<1x8x64xf32>
    %406 = vector.broadcast %405 : vector<1x8x64xf32> to vector<8x8x64xf32>
    %407 = arith.mulf %402, %406 : vector<8x8x64xf32>
    %408 = arith.addf %401, %407 : vector<8x8x64xf32>
    %409 = vector.extract_strided_slice %373 {offsets = [5, 0, 0], sizes = [8, 8, 64], strides = [1, 1, 1]} : vector<14x8x64xf32> to vector<8x8x64xf32>
    %c41 = arith.constant 41 : index
    %c0_148 = arith.constant 0 : index
    %c0_149 = arith.constant 0 : index
    %410 = vector.load %arg6[%c41, %c0_148, %c0_149] : memref<49x8x64xf32, #tpu.memory_space<vmem>>, vector<1x8x64xf32>
    %411 = vector.shape_cast %410 : vector<1x8x64xf32> to vector<8x64xf32>
    %412 = vector.shape_cast %411 : vector<8x64xf32> to vector<1x8x64xf32>
    %413 = vector.broadcast %412 : vector<1x8x64xf32> to vector<8x8x64xf32>
    %414 = arith.mulf %409, %413 : vector<8x8x64xf32>
    %415 = arith.addf %408, %414 : vector<8x8x64xf32>
    %416 = vector.extract_strided_slice %373 {offsets = [6, 0, 0], sizes = [8, 8, 64], strides = [1, 1, 1]} : vector<14x8x64xf32> to vector<8x8x64xf32>
    %c48 = arith.constant 48 : index
    %c0_150 = arith.constant 0 : index
    %c0_151 = arith.constant 0 : index
    %417 = vector.load %arg6[%c48, %c0_150, %c0_151] : memref<49x8x64xf32, #tpu.memory_space<vmem>>, vector<1x8x64xf32>
    %418 = vector.shape_cast %417 : vector<1x8x64xf32> to vector<8x64xf32>
    %419 = vector.shape_cast %418 : vector<8x64xf32> to vector<1x8x64xf32>
    %420 = vector.broadcast %419 : vector<1x8x64xf32> to vector<8x8x64xf32>
    %421 = arith.mulf %416, %420 : vector<8x8x64xf32>
    %422 = arith.addf %415, %421 : vector<8x8x64xf32>
    %423 = arith.mulf %62, %422 : vector<8x8x64xf32>
    %424 = vector.shape_cast %423 : vector<8x8x64xf32> to vector<64x64xf32>
    %425 = vector.extract_strided_slice %424 {offsets = [0, 0], sizes = [64, 32], strides = [1, 1]} : vector<64x64xf32> to vector<64x32xf32>
    %426 = arith.truncf %425 : vector<64x32xf32> to vector<64x32xbf16>
    %cst_152 = arith.constant dense<0.000000e+00> : vector<64x32xf32>
    %427 = tpu.matmul %426, %52, %cst_152 {dimension_numbers = #tpu.dot_dimension_numbers<[1], [0], [0], [1], [0, 0, 1, 1], [], []>} : vector<64x32xbf16>, vector<32x32xbf16>, vector<64x32xf32> -> vector<64x32xf32>
    %428 = vector.extract_strided_slice %424 {offsets = [0, 32], sizes = [64, 32], strides = [1, 1]} : vector<64x64xf32> to vector<64x32xf32>
    %429 = arith.truncf %428 : vector<64x32xf32> to vector<64x32xbf16>
    %cst_153 = arith.constant dense<0.000000e+00> : vector<64x32xf32>
    %430 = tpu.matmul %429, %52, %cst_153 {dimension_numbers = #tpu.dot_dimension_numbers<[1], [0], [0], [1], [0, 0, 1, 1], [], []>} : vector<64x32xbf16>, vector<32x32xbf16>, vector<64x32xf32> -> vector<64x32xf32>
    %c1_154 = arith.constant 1 : index
    %c0_155 = arith.constant 0 : index
    %431 = vector.load %arg9[%c1_154, %c0_155] : memref<130x32xf32, #tpu.memory_space<vmem>>, vector<64x32xf32>
    %432 = arith.addf %431, %427 : vector<64x32xf32>
    %c1_156 = arith.constant 1 : index
    %c0_157 = arith.constant 0 : index
    %433 = vector.load %arg9[%c1_156, %c0_157] : memref<130x32xf32, #tpu.memory_space<vmem>>, vector<64x32xf32>
    tpu.vector_store %arg9[%c1_156, %c0_157], %432 {strides = array<i32>} : memref<130x32xf32, #tpu.memory_space<vmem>>, vector<64x32xf32>,
    %c66 = arith.constant 66 : index
    %c0_158 = arith.constant 0 : index
    %434 = vector.load %arg9[%c66, %c0_158] : memref<130x32xf32, #tpu.memory_space<vmem>>, vector<64x32xf32>
    %435 = arith.addf %434, %430 : vector<64x32xf32>
    %c66_159 = arith.constant 66 : index
    %c0_160 = arith.constant 0 : index
    %436 = vector.load %arg9[%c66_159, %c0_160] : memref<130x32xf32, #tpu.memory_space<vmem>>, vector<64x32xf32>
    tpu.vector_store %arg9[%c66_159, %c0_160], %435 {strides = array<i32>} : memref<130x32xf32, #tpu.memory_space<vmem>>, vector<64x32xf32>,
    return
  }
  func.func @transform_0(%arg0: i32) -> (i32, i32) {
    %c0_i32 = arith.constant 0 : i32
    %c0_i32_0 = arith.constant 0 : i32
    %c0_i32_1 = arith.constant 0 : i32
    return %c0_i32, %c0_i32_0 : i32, i32
  }
  func.func @transform_1(%arg0: i32) -> (i32, i32) {
    %c0_i32 = arith.constant 0 : i32
    %c0_i32_0 = arith.constant 0 : i32
    %c0_i32_1 = arith.constant 0 : i32
    return %c0_i32, %c0_i32_0 : i32, i32
  }
  func.func @transform_2(%arg0: i32) -> (i32, i32) {
    %c0_i32 = arith.constant 0 : i32
    %c0_i32_0 = arith.constant 0 : i32
    %c0_i32_1 = arith.constant 0 : i32
    return %c0_i32, %c0_i32_0 : i32, i32
  }
  func.func @transform_3(%arg0: i32) -> (i32, i32) {
    %c0_i32 = arith.constant 0 : i32
    %c0_i32_0 = arith.constant 0 : i32
    %c0_i32_1 = arith.constant 0 : i32
    return %c0_i32, %c0_i32_0 : i32, i32
  }
  func.func @transform_4(%arg0: i32) -> (i32, i32) {
    %c0_i32 = arith.constant 0 : i32
    %c0_i32_0 = arith.constant 0 : i32
    %c0_i32_1 = arith.constant 0 : i32
    return %c0_i32, %c0_i32_0 : i32, i32
  }
  func.func @transform_5(%arg0: i32) -> (i32, i32, i32) {
    %c0_i32 = arith.constant 0 : i32
    %c0_i32_0 = arith.constant 0 : i32
    %c0_i32_1 = arith.constant 0 : i32
    %c0_i32_2 = arith.constant 0 : i32
    return %c0_i32, %c0_i32_0, %c0_i32_1 : i32, i32, i32
  }
  func.func @transform_6(%arg0: i32) -> (i32, i32) {
    %c0_i32 = arith.constant 0 : i32
    %c0_i32_0 = arith.constant 0 : i32
    %c0_i32_1 = arith.constant 0 : i32
    return %c0_i32, %c0_i32_0 : i32, i32
  }
  func.func @transform_7(%arg0: i32) -> (i32, i32) {
    %c0_i32 = arith.constant 0 : i32
    %c0_i32_0 = arith.constant 0 : i32
    %c0_i32_1 = arith.constant 0 : i32
    return %c0_i32, %c0_i32_0 : i32, i32
  }
  func.func @transform_8(%arg0: i32) -> (i32, i32) {
    %c0_i32 = arith.constant 0 : i32
    %c0_i32_0 = arith.constant 0 : i32
    %c0_i32_1 = arith.constant 0 : i32
    return %c0_i32, %c0_i32_0 : i32, i32
  }
}

</mosaic_0001>

<llo_original>
// kernel: tpu_custom_call.1
$region0: #{tpu_custom_call.1}
  #allocation0 [shape = 'u32[]', space=smem, size = 0x4, offset = 0x4, fixed_abs, tag = 'smem constant byte address 0x4 - core index']
  #allocation1 [shape = 'u32[72,128]{1,0:T(1,128)}', space=vmem, size = 0x9000, scoped, tag = 'internal scratch']
  #allocation2 [shape = 'f32[14,16,64]{2,1,0:T(8,128)}', space=vmem, size = 0x1c000, scoped, tag = 'scratch operand']
  %s0 = inlined_call_operand.vmem [shape: f32[130,32], index: 0, kind: input, shape index: {}]
  %s1 = inlined_call_operand.vmem [shape: bf16[32,96], index: 1, kind: input, shape index: {}]
  %s2 = inlined_call_operand.vmem [shape: f32[1,96], index: 2, kind: input, shape index: {}]
  %s3 = inlined_call_operand.vmem [shape: bf16[32,32], index: 3, kind: input, shape index: {}]
  %s4 = inlined_call_operand.vmem [shape: f32[1,32], index: 4, kind: input, shape index: {}]
  %s5 = inlined_call_operand.hbm [shape: f32[49,8,64], index: 5, kind: input, shape index: {}]
  %s6 = inlined_call_operand.vmem [shape: f32[8,64], index: 6, kind: input, shape index: {}]
  %s7 = inlined_call_operand.vmem [shape: f32[32,32], index: 7, kind: input, shape index: {}]
  %s8 = inlined_call_operand.vmem [shape: f32[130,32], index: 8, kind: output, shape index: {}]
  %s9 = sld [smem:[#allocation0]]
  $region46: #{tpu_custom_call.1} parent=0
    _
  %s11 = ssub.s32 1, %s9
  %s12 = scalar_select 0, %s11, %s9
  $region1: #{tpu_custom_call.1} parent=0
    #allocation3 [shape = 'u8[200704]{0}', space=vmem, size = 0x31000, scoped, tag = 'input window, operand 5, single buffered']
    #allocation4 [shape = 's32[1]{0}', space=sflag, size = 0x4, scoped, tag = 'scoped memory for tpu_custom_call.1']
    %13 = vsyncpa [#allocation4], 0
    // Predicated region
    $region2: #{tpu_custom_call.1} parent=1 // pred_check
      _
    $region3: #{tpu_custom_call.1} parent=1 // pred_check_branch
      %15 = sbr.rel (0) target = $region5
    $region4: #{tpu_custom_call.1} parent=1 // pred_region
      _
    $region5: #{tpu_custom_call.1} parent=1 // pred_fallthru
      _
    // Predicated region
    $region6: #{tpu_custom_call.1} parent=1 // pred_check
      _
    $region7: #{tpu_custom_call.1} parent=1 // pred_check_branch
      %17 = sbr.rel (0) target = $region9
    $region8: #{tpu_custom_call.1} parent=1 // pred_region
      _
    $region9: #{tpu_custom_call.1} parent=1 // pred_fallthru
      _
    // Predicated region
    $region10: #{tpu_custom_call.1} parent=1 // pred_check
      _
    $region11: #{tpu_custom_call.1} parent=1 // pred_check_branch
      %19 = sbr.rel (0) target = $region13
    $region12: #{tpu_custom_call.1} parent=1 // pred_region
      _
    $region13: #{tpu_custom_call.1} parent=1 // pred_fallthru
      _
    // Predicated region
    $region14: #{tpu_custom_call.1} parent=1 // pred_check
      _
    $region15: #{tpu_custom_call.1} parent=1 // pred_check_branch
      %21 = sbr.rel (0) target = $region17
    $region16: #{tpu_custom_call.1} parent=1 // pred_region
      _
    $region17: #{tpu_custom_call.1} parent=1 // pred_fallthru
      _
    // Predicated region
    $region18: #{tpu_custom_call.1} parent=1 // pred_check
      _
    $region19: #{tpu_custom_call.1} parent=1 // pred_check_branch
      %23 = sbr.rel (0) target = $region21
    $region20: #{tpu_custom_call.1} parent=1 // pred_region
      _
    $region21: #{tpu_custom_call.1} parent=1 // pred_fallthru
      _
    // Predicated region
    $region22: #{tpu_custom_call.1} parent=1 // pred_check
      _
    $region23: #{tpu_custom_call.1} parent=1 // pred_check_branch
      %25 = sbr.rel (0) target = $region25
    $region24: #{tpu_custom_call.1} parent=1 // pred_region
      %27 = vsyncadd [#allocation4], 0
      %s28 = sshll.u32 %s5, 4
      %s29 = int_to_ptr.hbm [resolvable:$true] %s28
      %s30 = sshll.u32 [#allocation3], 4
      %s31 = int_to_ptr.vmem [resolvable:$true] %s30
      %36 = dma.hbm_to_vmem [thread:$0]  %s29, 6272, %s31, [#allocation4], 128, 128, 8
    $region25: #{tpu_custom_call.1} parent=1 // pred_fallthru
      _
    // Predicated region
    $region26: #{tpu_custom_call.1} parent=1 // pred_check
      _
    $region27: #{tpu_custom_call.1} parent=1 // pred_check_branch
      %38 = sbr.rel (0) target = $region29
    $region28: #{tpu_custom_call.1} parent=1 // pred_region
      _
    $region29: #{tpu_custom_call.1} parent=1 // pred_fallthru
      _
    // Predicated region
    $region30: #{tpu_custom_call.1} parent=1 // pred_check
      _
    $region31: #{tpu_custom_call.1} parent=1 // pred_check_branch
      %40 = sbr.rel (0) target = $region33
    $region32: #{tpu_custom_call.1} parent=1 // pred_region
      _
    $region33: #{tpu_custom_call.1} parent=1 // pred_fallthru
      _
    // Predicated region
    $region34: #{tpu_custom_call.1} parent=1 // pred_check
      _
    $region35: #{tpu_custom_call.1} parent=1 // pred_check_branch
      %42 = sbr.rel (0) target = $region37
    $region36: #{tpu_custom_call.1} parent=1 // pred_region
      %44 = dma.done [#allocation4], 6272
    $region37: #{tpu_custom_call.1} parent=1 // pred_fallthru
      _
    %v46 = vld [vmem:[%s0] sm:$0xff]
    %v47 = vld [vmem:[%s0 + $0x8] sm:$0xff]
    %v48 = vld [vmem:[%s0 + $0x10] sm:$0xff]
    %v49 = vld [vmem:[%s0 + $0x18] sm:$0xff]
    %v50 = vld [vmem:[%s0 + $0x20] sm:$0xff]
    %v51 = vld [vmem:[%s0 + $0x28] sm:$0xff]
    %v52 = vld [vmem:[%s0 + $0x30] sm:$0xff]
    %v53 = vld [vmem:[%s0 + $0x38] sm:$0xff]
    %v54 = vld [vmem:[%s0 + $0x40] sm:$0xff]
    %v55 = vld [vmem:[%s0 + $0x48] sm:$0xff]
    %v56 = vld [vmem:[%s0 + $0x50] sm:$0xff]
    %v57 = vld [vmem:[%s0 + $0x58] sm:$0xff]
    %v58 = vld [vmem:[%s0 + $0x60] sm:$0xff]
    %v59 = vld [vmem:[%s0 + $0x68] sm:$0xff]
    %v60 = vld [vmem:[%s0 + $0x70] sm:$0xff]
    %v61 = vld [vmem:[%s0 + $0x78] sm:$0xff]
    %v62 = vld [vmem:[%s0 + $0x80] sm:$0x3]
    %v63 = vpack.c.bf16 %v47, %v46
    %v64 = vpack.c.bf16 %v49, %v48
    %v65 = vpack.c.bf16 %v51, %v50
    %v66 = vpack.c.bf16 %v53, %v52
    %v67 = vpack.c.bf16 %v55, %v54
    %v68 = vpack.c.bf16 %v57, %v56
    %v69 = vpack.c.bf16 %v59, %v58
    %v70 = vpack.c.bf16 %v61, %v60
    %v71 = vpack.c.bf16 %v62, %v62
    %v72 = vld [vmem:[%s1] sm:$0xf]
    %v73 = vld [vmem:[%s1 + $0x4] sm:$0xf]
    %v74 = vld [vmem:[%s1 + $0x8] sm:$0xf]
    %v75 = vld [vmem:[%s1 + $0xc] sm:$0xf]
    %v76 = vld [vmem:[%s2] sm:$0x1]
    %v78 = vperm.slane %v76, 0
    %v84 = vunpack.c.l.b16 %v72
    %v85 = vunpack.c.l.b16 %v73
    %v86 = vunpack.c.l.b16 %v74
    %v87 = vunpack.c.l.b16 %v75
    %v88 = vpack.c.b16 %v85, %v84
    %v89 = vpack.c.b16 %v87, %v86
    %vm92 = vcmask 261120
    %v94 = vsel %vm92, %v63, 0
    %v97 = vsel %vm92, %v64, 0
    %v100 = vsel %vm92, %v65, 0
    %v103 = vsel %vm92, %v66, 0
    %v106 = vsel %vm92, %v67, 0
    %v109 = vsel %vm92, %v68, 0
    %v112 = vsel %vm92, %v69, 0
    %v115 = vsel %vm92, %v70, 0
    %v118 = vsel %vm92, %v71, 0
    %120 = vmatpush.bf16.msra.mxu0 0
    %121 = vmatpush.bf16.msra.mxu0 0
    %122 = vmatpush.bf16.msra.mxu0 0
    %123 = vmatpush.bf16.msra.mxu0 0
    %124 = vmatpush.bf16.msra.mxu0 0
    %125 = vmatpush.bf16.msra.mxu0 0
    %126 = vmatpush.bf16.msra.mxu0 %v89
    %127 = vmatpush.bf16.msra.mxu0 %v88
    %128 = vmatmul.bf16.gmra.mxu0 %v94
    %v129 = vpop.f32.mrf.mxu0
    %v130 = vadd.f32 %v78, %v129
    %v131 = vpop.f32.mrf.mxu0
    %v132 = vadd.f32 %v78, %v131
    %133 = vmatmul.bf16.gmra.mxu0 %v97
    %v134 = vpop.f32.mrf.mxu0
    %v135 = vadd.f32 %v78, %v134
    %v136 = vpop.f32.mrf.mxu0
    %v137 = vadd.f32 %v78, %v136
    %138 = vmatmul.bf16.gmra.mxu0 %v100
    %v139 = vpop.f32.mrf.mxu0
    %v140 = vadd.f32 %v78, %v139
    %v141 = vpop.f32.mrf.mxu0
    %v142 = vadd.f32 %v78, %v141
    %143 = vmatmul.bf16.gmra.mxu0 %v103
    %v144 = vpop.f32.mrf.mxu0
    %v145 = vadd.f32 %v78, %v144
    %v146 = vpop.f32.mrf.mxu0
    %v147 = vadd.f32 %v78, %v146
    %148 = vmatmul.bf16.gmra.mxu0 %v106
    %v149 = vpop.f32.mrf.mxu0
    %v150 = vadd.f32 %v78, %v149
    %v151 = vpop.f32.mrf.mxu0
    %v152 = vadd.f32 %v78, %v151
    %153 = vmatmul.bf16.gmra.mxu0 %v109
    %v154 = vpop.f32.mrf.mxu0
    %v155 = vadd.f32 %v78, %v154
    %v156 = vpop.f32.mrf.mxu0
    %v157 = vadd.f32 %v78, %v156
    %158 = vmatmul.bf16.gmra.mxu0 %v112
    %v159 = vpop.f32.mrf.mxu0
    %v160 = vadd.f32 %v78, %v159
    %v161 = vpop.f32.mrf.mxu0
    %v162 = vadd.f32 %v78, %v161
    %163 = vmatmul.bf16.gmra.mxu0 %v115
    %v164 = vpop.f32.mrf.mxu0
    %v165 = vadd.f32 %v78, %v164
    %v166 = vpop.f32.mrf.mxu0
    %v167 = vadd.f32 %v78, %v166
    %168 = vmatmul.bf16.gmra.mxu0 %v118
    %v169 = vpop.f32.mrf.mxu0
    %v170 = vadd.f32 %v78, %v169
    %v171 = vpop.f32.mrf.mxu0
    %172 = vdwg.mxu0
    %v173 = vlaneseq
    %v174 = vshrl.u32 %v173, 7
    %v175 = vadd.s32 %v174, 8
    %v176 = vadd.s32 %v174, 16
    %v177 = vadd.s32 %v174, 24
    %v178 = vadd.s32 %v174, 32
    %v179 = vadd.s32 %v174, 40
    %v180 = vadd.s32 %v174, 48
    %v181 = vadd.s32 %v174, 56
    %v182 = vadd.s32 %v174, 64
    %v183 = vadd.s32 %v174, 72
    %v184 = vadd.s32 %v174, 80
    %v185 = vadd.s32 %v174, 88
    %v186 = vadd.s32 %v174, 96
    %v187 = vadd.s32 %v174, 104
    %v188 = vadd.s32 %v174, 112
    %v189 = vadd.s32 %v174, 120
    %v190 = vadd.s32 %v174, 128
    %vm191 = vcmp.lt.s32.totalorder %v174, 65
    %vm192 = vcmp.lt.s32.totalorder %v175, 65
    %vm193 = vcmp.lt.s32.totalorder %v176, 65
    %vm194 = vcmp.lt.s32.totalorder %v177, 65
    %vm195 = vcmp.lt.s32.totalorder %v178, 65
    %vm196 = vcmp.lt.s32.totalorder %v179, 65
    %vm197 = vcmp.lt.s32.totalorder %v180, 65
    %vm198 = vcmp.lt.s32.totalorder %v181, 65
    %vm199 = vcmp.lt.s32.totalorder %v182, 65
    %vm200 = vcmp.lt.s32.totalorder %v183, 65
    %vm201 = vcmp.lt.s32.totalorder %v184, 65
    %vm202 = vcmp.lt.s32.totalorder %v185, 65
    %vm203 = vcmp.lt.s32.totalorder %v186, 65
    %vm204 = vcmp.lt.s32.totalorder %v187, 65
    %vm205 = vcmp.lt.s32.totalorder %v188, 65
    %vm206 = vcmp.lt.s32.totalorder %v189, 65
    %vm207 = vcmp.lt.s32.totalorder %v190, 65
    %v208 = vsel %vm191, 1, 0
    %v209 = vsel %vm192, 1, 0
    %v210 = vsel %vm193, 1, 0
    %v211 = vsel %vm194, 1, 0
    %v212 = vsel %vm195, 1, 0
    %v213 = vsel %vm196, 1, 0
    %v214 = vsel %vm197, 1, 0
    %v215 = vsel %vm198, 1, 0
    %v216 = vsel %vm199, 1, 0
    %v217 = vsel %vm200, 1, 0
    %v218 = vsel %vm201, 1, 0
    %v219 = vsel %vm202, 1, 0
    %v220 = vsel %vm203, 1, 0
    %v221 = vsel %vm204, 1, 0
    %v222 = vsel %vm205, 1, 0
    %v223 = vsel %vm206, 1, 0
    %v224 = vsel %vm207, 1, 0
    %v225 = vcvt.s32.f32 %v208
    %v226 = vcvt.s32.f32 %v209
    %v227 = vcvt.s32.f32 %v210
    %v228 = vcvt.s32.f32 %v211
    %v229 = vcvt.s32.f32 %v212
    %v230 = vcvt.s32.f32 %v213
    %v231 = vcvt.s32.f32 %v214
    %v232 = vcvt.s32.f32 %v215
    %v233 = vcvt.s32.f32 %v216
    %v234 = vcvt.s32.f32 %v217
    %v235 = vcvt.s32.f32 %v218
    %v236 = vcvt.s32.f32 %v219
    %v237 = vcvt.s32.f32 %v220
    %v238 = vcvt.s32.f32 %v221
    %v239 = vcvt.s32.f32 %v222
    %v240 = vcvt.s32.f32 %v223
    %v241 = vcvt.s32.f32 %v224
    %v242 = vsub.f32 1.0, %v225
    %v243 = vsub.f32 1.0, %v226
    %v244 = vsub.f32 1.0, %v227
    %v245 = vsub.f32 1.0, %v228
    %v246 = vsub.f32 1.0, %v229
    %v247 = vsub.f32 1.0, %v230
    %v248 = vsub.f32 1.0, %v231
    %v249 = vsub.f32 1.0, %v232
    %v250 = vsub.f32 1.0, %v233
    %v251 = vsub.f32 1.0, %v234
    %v252 = vsub.f32 1.0, %v235
    %v253 = vsub.f32 1.0, %v236
    %v254 = vsub.f32 1.0, %v237
    %v255 = vsub.f32 1.0, %v238
    %v256 = vsub.f32 1.0, %v239
    %v257 = vsub.f32 1.0, %v240
    %v258 = vsub.f32 1.0, %v241
    %vm259 = vcmask 523520
    %v260 = vsel %vm259, %v130, -inf
    %v261 = vsel %vm259, %v132, -inf
    %v262 = vsel %vm259, %v135, -inf
    %v263 = vsel %vm259, %v137, -inf
    %v264 = vsel %vm259, %v140, -inf
    %v265 = vmax.f32 %v260, %v264
    %v266 = vsel %vm259, %v142, -inf
    %v267 = vmax.f32 %v261, %v266
    %v268 = vsel %vm259, %v145, -inf
    %v269 = vmax.f32 %v262, %v268
    %v270 = vsel %vm259, %v147, -inf
    %v271 = vmax.f32 %v263, %v270
    %v272 = vsel %vm259, %v150, -inf
    %v273 = vmax.f32 %v265, %v272
    %v274 = vsel %vm259, %v152, -inf
    %v275 = vmax.f32 %v267, %v274
    %v276 = vsel %vm259, %v155, -inf
    %v277 = vmax.f32 %v269, %v276
    %v278 = vsel %vm259, %v157, -inf
    %v279 = vmax.f32 %v271, %v278
    %v280 = vsel %vm259, %v160, -inf
    %v281 = vmax.f32 %v273, %v280
    %v282 = vsel %vm259, %v162, -inf
    %v283 = vmax.f32 %v275, %v282
    %v284 = vsel %vm259, %v165, -inf
    %v285 = vmax.f32 %v277, %v284
    %v286 = vsel %vm259, %v167, -inf
    %v287 = vmax.f32 %v279, %v286
    %vm288 = vcmask 517376
    %v289 = vsel %vm288, %v170, -inf
    %v290 = vmax.f32 %v281, %v289
    %v291 = vmax.f32 %v290, %v283
    %v292 = vmax.f32 %v285, %v287
    %v293 = vmax.f32 %v291, %v292
    %v294 = vrot.slane %v293, 4
    %v295 = vmax.f32 %v293, %v294
    %v296 = vrot.slane %v295, 2
    %v297 = vmax.f32 %v295, %v296
    %v298 = vrot.slane %v297, 1
    %v299 = vmax.f32 %v297, %v298
    %v300 = vsub.f32 %v130, %v299
    %v301 = vsub.f32 %v132, %v299
    %v302 = vsub.f32 %v135, %v299
    %v303 = vsub.f32 %v137, %v299
    %v304 = vsub.f32 %v140, %v299
    %v305 = vsub.f32 %v142, %v299
    %v306 = vsub.f32 %v145, %v299
    %v307 = vsub.f32 %v147, %v299
    %v308 = vsub.f32 %v150, %v299
    %v309 = vsub.f32 %v152, %v299
    %v310 = vsub.f32 %v155, %v299
    %v311 = vsub.f32 %v157, %v299
    %v312 = vsub.f32 %v160, %v299
    %v313 = vsub.f32 %v162, %v299
    %v314 = vsub.f32 %v165, %v299
    %v315 = vsub.f32 %v167, %v299
    %v316 = vsub.f32 %v170, %v299
    %v317 = vmul.f32 %v300, 1.442695
    %v318 = vpow.pop %v317
    %v319 = vmul.f32 %v301, 1.442695
    %v320 = vpow.pop %v319
    %v321 = vmul.f32 %v302, 1.442695
    %v322 = vpow.pop %v321
    %v323 = vmul.f32 %v303, 1.442695
    %v324 = vpow.pop %v323
    %v325 = vmul.f32 %v304, 1.442695
    %v326 = vpow.pop %v325
    %v327 = vmul.f32 %v305, 1.442695
    %v328 = vpow.pop %v327
    %v329 = vmul.f32 %v306, 1.442695
    %v330 = vpow.pop %v329
    %v331 = vmul.f32 %v307, 1.442695
    %v332 = vpow.pop %v331
    %v333 = vmul.f32 %v308, 1.442695
    %v334 = vpow.pop %v333
    %v335 = vmul.f32 %v309, 1.442695
    %v336 = vpow.pop %v335
    %v337 = vmul.f32 %v310, 1.442695
    %v338 = vpow.pop %v337
    %v339 = vmul.f32 %v311, 1.442695
    %v340 = vpow.pop %v339
    %v341 = vmul.f32 %v312, 1.442695
    %v342 = vpow.pop %v341
    %v343 = vmul.f32 %v313, 1.442695
    %v344 = vpow.pop %v343
    %v345 = vmul.f32 %v314, 1.442695
    %v346 = vpow.pop %v345
    %v347 = vmul.f32 %v315, 1.442695
    %v348 = vpow.pop %v347
    %v349 = vmul.f32 %v316, 1.442695
    %v350 = vpow.pop %v349
    %v351 = vmul.f32 %v318, %v225
    %v352 = vmul.f32 %v320, %v226
    %v353 = vmul.f32 %v322, %v227
    %v354 = vmul.f32 %v324, %v228
    %v355 = vmul.f32 %v326, %v229
    %v356 = vmul.f32 %v328, %v230
    %v357 = vmul.f32 %v330, %v231
    %v358 = vmul.f32 %v332, %v232
    %v359 = vmul.f32 %v334, %v233
    %v360 = vmul.f32 %v336, %v234
    %v361 = vmul.f32 %v338, %v235
    %v362 = vmul.f32 %v340, %v236
    %v363 = vmul.f32 %v342, %v237
    %v364 = vmul.f32 %v344, %v238
    %v365 = vmul.f32 %v346, %v239
    %v366 = vmul.f32 %v348, %v240
    %v367 = vmul.f32 %v350, %v241
    %v368 = vsel %vm259, %v351, 0.0
    %v369 = vsel %vm259, %v352, 0.0
    %v370 = vadd.f32 %v368, %v369
    %v371 = vsel %vm259, %v353, 0.0
    %v372 = vadd.f32 %v370, %v371
    %v373 = vsel %vm259, %v354, 0.0
    %v374 = vadd.f32 %v372, %v373
    %v375 = vsel %vm259, %v355, 0.0
    %v376 = vadd.f32 %v374, %v375
    %v377 = vsel %vm259, %v356, 0.0
    %v378 = vadd.f32 %v376, %v377
    %v379 = vsel %vm259, %v357, 0.0
    %v380 = vadd.f32 %v378, %v379
    %v381 = vsel %vm259, %v358, 0.0
    %v382 = vadd.f32 %v380, %v381
    %v383 = vsel %vm259, %v359, 0.0
    %v384 = vadd.f32 %v382, %v383
    %v385 = vsel %vm259, %v360, 0.0
    %v386 = vadd.f32 %v384, %v385
    %v387 = vsel %vm259, %v361, 0.0
    %v388 = vadd.f32 %v386, %v387
    %v389 = vsel %vm259, %v362, 0.0
    %v390 = vadd.f32 %v388, %v389
    %v391 = vsel %vm259, %v363, 0.0
    %v392 = vadd.f32 %v390, %v391
    %v393 = vsel %vm259, %v364, 0.0
    %v394 = vadd.f32 %v392, %v393
    %v395 = vsel %vm259, %v365, 0.0
    %v396 = vadd.f32 %v394, %v395
    %v397 = vsel %vm259, %v366, 0.0
    %v398 = vadd.f32 %v396, %v397
    %v399 = vsel %vm288, %v367, 0.0
    %v400 = vadd.f32 %v398, %v399
    %v401 = vrot.slane %v400, 4
    %v402 = vadd.f32 %v400, %v401
    %v403 = vrot.slane %v402, 2
    %v404 = vadd.f32 %v402, %v403
    %v405 = vrot.slane %v404, 1
    %v406 = vadd.f32 %v404, %v405
    %v407 = vmul.f32 %v318, %v242
    %v408 = vmul.f32 %v320, %v243
    %v409 = vmul.f32 %v322, %v244
    %v410 = vmul.f32 %v324, %v245
    %v411 = vmul.f32 %v326, %v246
    %v412 = vmul.f32 %v328, %v247
    %v413 = vmul.f32 %v330, %v248
    %v414 = vmul.f32 %v332, %v249
    %v415 = vmul.f32 %v334, %v250
    %v416 = vmul.f32 %v336, %v251
    %v417 = vmul.f32 %v338, %v252
    %v418 = vmul.f32 %v340, %v253
    %v419 = vmul.f32 %v342, %v254
    %v420 = vmul.f32 %v344, %v255
    %v421 = vmul.f32 %v346, %v256
    %v422 = vmul.f32 %v348, %v257
    %v423 = vmul.f32 %v350, %v258
    %v424 = vsel %vm259, %v407, 0.0
    %v425 = vsel %vm259, %v408, 0.0
    %v426 = vadd.f32 %v424, %v425
    %v427 = vsel %vm259, %v409, 0.0
    %v428 = vadd.f32 %v426, %v427
    %v429 = vsel %vm259, %v410, 0.0
    %v430 = vadd.f32 %v428, %v429
    %v431 = vsel %vm259, %v411, 0.0
    %v432 = vadd.f32 %v430, %v431
    %v433 = vsel %vm259, %v412, 0.0
    %v434 = vadd.f32 %v432, %v433
    %v435 = vsel %vm259, %v413, 0.0
    %v436 = vadd.f32 %v434, %v435
    %v437 = vsel %vm259, %v414, 0.0
    %v438 = vadd.f32 %v436, %v437
    %v439 = vsel %vm259, %v415, 0.0
    %v440 = vadd.f32 %v438, %v439
    %v441 = vsel %vm259, %v416, 0.0
    %v442 = vadd.f32 %v440, %v441
    %v443 = vsel %vm259, %v417, 0.0
    %v444 = vadd.f32 %v442, %v443
    %v445 = vsel %vm259, %v418, 0.0
    %v446 = vadd.f32 %v444, %v445
    %v447 = vsel %vm259, %v419, 0.0
    %v448 = vadd.f32 %v446, %v447
    %v449 = vsel %vm259, %v420, 0.0
    %v450 = vadd.f32 %v448, %v449
    %v451 = vsel %vm259, %v421, 0.0
    %v452 = vadd.f32 %v450, %v451
    %v453 = vsel %vm259, %v422, 0.0
    %v454 = vadd.f32 %v452, %v453
    %v455 = vsel %vm288, %v423, 0.0
    %v456 = vadd.f32 %v454, %v455
    %v457 = vrot.slane %v456, 4
    %v458 = vadd.f32 %v456, %v457
    %v459 = vrot.slane %v458, 2
    %v460 = vadd.f32 %v458, %v459
    %v461 = vrot.slane %v460, 1
    %v462 = vadd.f32 %v460, %v461
    %v463 = vmul.f32 %v225, %v406
    %v464 = vmul.f32 %v226, %v406
    %v465 = vmul.f32 %v227, %v406
    %v466 = vmul.f32 %v228, %v406
    %v467 = vmul.f32 %v229, %v406
    %v468 = vmul.f32 %v230, %v406
    %v469 = vmul.f32 %v231, %v406
    %v470 = vmul.f32 %v232, %v406
    %v471 = vmul.f32 %v233, %v406
    %v472 = vmul.f32 %v234, %v406
    %v473 = vmul.f32 %v235, %v406
    %v474 = vmul.f32 %v236, %v406
    %v475 = vmul.f32 %v237, %v406
    %v476 = vmul.f32 %v238, %v406
    %v477 = vmul.f32 %v239, %v406
    %v478 = vmul.f32 %v240, %v406
    %v479 = vmul.f32 %v241, %v406
    %v480 = vmul.f32 %v242, %v462
    %v481 = vmul.f32 %v243, %v462
    %v482 = vmul.f32 %v244, %v462
    %v483 = vmul.f32 %v245, %v462
    %v484 = vmul.f32 %v246, %v462
    %v485 = vmul.f32 %v247, %v462
    %v486 = vmul.f32 %v248, %v462
    %v487 = vmul.f32 %v249, %v462
    %v488 = vmul.f32 %v250, %v462
    %v489 = vmul.f32 %v251, %v462
    %v490 = vmul.f32 %v252, %v462
    %v491 = vmul.f32 %v253, %v462
    %v492 = vmul.f32 %v254, %v462
    %v493 = vmul.f32 %v255, %v462
    %v494 = vmul.f32 %v256, %v462
    %v495 = vmul.f32 %v257, %v462
    %v496 = vmul.f32 %v258, %v462
    %v497 = vadd.f32 %v463, %v480
    %v498 = vadd.f32 %v464, %v481
    %v499 = vadd.f32 %v465, %v482
    %v500 = vadd.f32 %v466, %v483
    %v501 = vadd.f32 %v467, %v484
    %v502 = vadd.f32 %v468, %v485
    %v503 = vadd.f32 %v469, %v486
    %v504 = vadd.f32 %v470, %v487
    %v505 = vadd.f32 %v471, %v488
    %v506 = vadd.f32 %v472, %v489
    %v507 = vadd.f32 %v473, %v490
    %v508 = vadd.f32 %v474, %v491
    %v509 = vadd.f32 %v475, %v492
    %v510 = vadd.f32 %v476, %v493
    %v511 = vadd.f32 %v477, %v494
    %v512 = vadd.f32 %v478, %v495
    %v513 = vadd.f32 %v479, %v496
    %v514 = vrcp.pop %v497
    %v515 = vmul.f32 %v497, %v514
    %v516 = vsub.f32 1.0, %v515
    %v517 = vmul.f32 %v514, %v516
    %v518 = vadd.f32 %v514, %v517
    %vm519 = vweird.f32 %v497
    %vm520 = vweird.f32 %v514
    %vm521 = vmor %vm519, %vm520
    %v522 = vsel %vm521, %v514, %v518
    %v523 = vand.u32 2147483647, %v497
    %vm524 = vcmp.eq.f32.partialorder %v523, 8.507059e+37
    %v525 = vand.u32 %v497, 2147483648
    %v526 = vor.u32 1.1754944e-38, %v525
    %v527 = vsel %vm524, %v526, %v522
    %v528 = vmul.f32 %v318, %v527
    %v529 = vrcp.pop %v498
    %v530 = vmul.f32 %v498, %v529
    %v531 = vsub.f32 1.0, %v530
    %v532 = vmul.f32 %v529, %v531
    %v533 = vadd.f32 %v529, %v532
    %vm534 = vweird.f32 %v498
    %vm535 = vweird.f32 %v529
    %vm536 = vmor %vm534, %vm535
    %v537 = vsel %vm536, %v529, %v533
    %v538 = vand.u32 2147483647, %v498
    %vm539 = vcmp.eq.f32.partialorder %v538, 8.507059e+37
    %v540 = vand.u32 %v498, 2147483648
    %v541 = vor.u32 1.1754944e-38, %v540
    %v542 = vsel %vm539, %v541, %v537
    %v543 = vmul.f32 %v320, %v542
    %v544 = vrcp.pop %v499
    %v545 = vmul.f32 %v499, %v544
    %v546 = vsub.f32 1.0, %v545
    %v547 = vmul.f32 %v544, %v546
    %v548 = vadd.f32 %v544, %v547
    %vm549 = vweird.f32 %v499
    %vm550 = vweird.f32 %v544
    %vm551 = vmor %vm549, %vm550
    %v552 = vsel %vm551, %v544, %v548
    %v553 = vand.u32 2147483647, %v499
    %vm554 = vcmp.eq.f32.partialorder %v553, 8.507059e+37
    %v555 = vand.u32 %v499, 2147483648
    %v556 = vor.u32 1.1754944e-38, %v555
    %v557 = vsel %vm554, %v556, %v552
    %v558 = vmul.f32 %v322, %v557
    %v559 = vrcp.pop %v500
    %v560 = vmul.f32 %v500, %v559
    %v561 = vsub.f32 1.0, %v560
    %v562 = vmul.f32 %v559, %v561
    %v563 = vadd.f32 %v559, %v562
    %vm564 = vweird.f32 %v500
    %vm565 = vweird.f32 %v559
    %vm566 = vmor %vm564, %vm565
    %v567 = vsel %vm566, %v559, %v563
    %v568 = vand.u32 2147483647, %v500
    %vm569 = vcmp.eq.f32.partialorder %v568, 8.507059e+37
    %v570 = vand.u32 %v500, 2147483648
    %v571 = vor.u32 1.1754944e-38, %v570
    %v572 = vsel %vm569, %v571, %v567
    %v573 = vmul.f32 %v324, %v572
    %v574 = vrcp.pop %v501
    %v575 = vmul.f32 %v501, %v574
    %v576 = vsub.f32 1.0, %v575
    %v577 = vmul.f32 %v574, %v576
    %v578 = vadd.f32 %v574, %v577
    %vm579 = vweird.f32 %v501
    %vm580 = vweird.f32 %v574
    %vm581 = vmor %vm579, %vm580
    %v582 = vsel %vm581, %v574, %v578
    %v583 = vand.u32 2147483647, %v501
    %vm584 = vcmp.eq.f32.partialorder %v583, 8.507059e+37
    %v585 = vand.u32 %v501, 2147483648
    %v586 = vor.u32 1.1754944e-38, %v585
    %v587 = vsel %vm584, %v586, %v582
    %v588 = vmul.f32 %v326, %v587
    %v589 = vrcp.pop %v502
    %v590 = vmul.f32 %v502, %v589
    %v591 = vsub.f32 1.0, %v590
    %v592 = vmul.f32 %v589, %v591
    %v593 = vadd.f32 %v589, %v592
    %vm594 = vweird.f32 %v502
    %vm595 = vweird.f32 %v589
    %vm596 = vmor %vm594, %vm595
    %v597 = vsel %vm596, %v589, %v593
    %v598 = vand.u32 2147483647, %v502
    %vm599 = vcmp.eq.f32.partialorder %v598, 8.507059e+37
    %v600 = vand.u32 %v502, 2147483648
    %v601 = vor.u32 1.1754944e-38, %v600
    %v602 = vsel %vm599, %v601, %v597
    %v603 = vmul.f32 %v328, %v602
    %v604 = vrcp.pop %v503
    %v605 = vmul.f32 %v503, %v604
    %v606 = vsub.f32 1.0, %v605
    %v607 = vmul.f32 %v604, %v606
    %v608 = vadd.f32 %v604, %v607
    %vm609 = vweird.f32 %v503
    %vm610 = vweird.f32 %v604
    %vm611 = vmor %vm609, %vm610
    %v612 = vsel %vm611, %v604, %v608
    %v613 = vand.u32 2147483647, %v503
    %vm614 = vcmp.eq.f32.partialorder %v613, 8.507059e+37
    %v615 = vand.u32 %v503, 2147483648
    %v616 = vor.u32 1.1754944e-38, %v615
    %v617 = vsel %vm614, %v616, %v612
    %v618 = vmul.f32 %v330, %v617
    %v619 = vrcp.pop %v504
    %v620 = vmul.f32 %v504, %v619
    %v621 = vsub.f32 1.0, %v620
    %v622 = vmul.f32 %v619, %v621
    %v623 = vadd.f32 %v619, %v622
    %vm624 = vweird.f32 %v504
    %vm625 = vweird.f32 %v619
    %vm626 = vmor %vm624, %vm625
    %v627 = vsel %vm626, %v619, %v623
    %v628 = vand.u32 2147483647, %v504
    %vm629 = vcmp.eq.f32.partialorder %v628, 8.507059e+37
    %v630 = vand.u32 %v504, 2147483648
    %v631 = vor.u32 1.1754944e-38, %v630
    %v632 = vsel %vm629, %v631, %v627
    %v633 = vmul.f32 %v332, %v632
    %v634 = vrcp.pop %v505
    %v635 = vmul.f32 %v505, %v634
    %v636 = vsub.f32 1.0, %v635
    %v637 = vmul.f32 %v634, %v636
    %v638 = vadd.f32 %v634, %v637
    %vm639 = vweird.f32 %v505
    %vm640 = vweird.f32 %v634
    %vm641 = vmor %vm639, %vm640
    %v642 = vsel %vm641, %v634, %v638
    %v643 = vand.u32 2147483647, %v505
    %vm644 = vcmp.eq.f32.partialorder %v643, 8.507059e+37
    %v645 = vand.u32 %v505, 2147483648
    %v646 = vor.u32 1.1754944e-38, %v645
    %v647 = vsel %vm644, %v646, %v642
    %v648 = vmul.f32 %v334, %v647
    %v649 = vrcp.pop %v506
    %v650 = vmul.f32 %v506, %v649
    %v651 = vsub.f32 1.0, %v650
    %v652 = vmul.f32 %v649, %v651
    %v653 = vadd.f32 %v649, %v652
    %vm654 = vweird.f32 %v506
    %vm655 = vweird.f32 %v649
    %vm656 = vmor %vm654, %vm655
    %v657 = vsel %vm656, %v649, %v653
    %v658 = vand.u32 2147483647, %v506
    %vm659 = vcmp.eq.f32.partialorder %v658, 8.507059e+37
    %v660 = vand.u32 %v506, 2147483648
    %v661 = vor.u32 1.1754944e-38, %v660
    %v662 = vsel %vm659, %v661, %v657
    %v663 = vmul.f32 %v336, %v662
    %v664 = vrcp.pop %v507
    %v665 = vmul.f32 %v507, %v664
    %v666 = vsub.f32 1.0, %v665
    %v667 = vmul.f32 %v664, %v666
    %v668 = vadd.f32 %v664, %v667
    %vm669 = vweird.f32 %v507
    %vm670 = vweird.f32 %v664
    %vm671 = vmor %vm669, %vm670
    %v672 = vsel %vm671, %v664, %v668
    %v673 = vand.u32 2147483647, %v507
    %vm674 = vcmp.eq.f32.partialorder %v673, 8.507059e+37
    %v675 = vand.u32 %v507, 2147483648
    %v676 = vor.u32 1.1754944e-38, %v675
    %v677 = vsel %vm674, %v676, %v672
    %v678 = vmul.f32 %v338, %v677
    %v679 = vrcp.pop %v508
    %v680 = vmul.f32 %v508, %v679
    %v681 = vsub.f32 1.0, %v680
    %v682 = vmul.f32 %v679, %v681
    %v683 = vadd.f32 %v679, %v682
    %vm684 = vweird.f32 %v508
    %vm685 = vweird.f32 %v679
    %vm686 = vmor %vm684, %vm685
    %v687 = vsel %vm686, %v679, %v683
    %v688 = vand.u32 2147483647, %v508
    %vm689 = vcmp.eq.f32.partialorder %v688, 8.507059e+37
    %v690 = vand.u32 %v508, 2147483648
    %v691 = vor.u32 1.1754944e-38, %v690
    %v692 = vsel %vm689, %v691, %v687
    %v693 = vmul.f32 %v340, %v692
    %v694 = vrcp.pop %v509
    %v695 = vmul.f32 %v509, %v694
    %v696 = vsub.f32 1.0, %v695
    %v697 = vmul.f32 %v694, %v696
    %v698 = vadd.f32 %v694, %v697
    %vm699 = vweird.f32 %v509
    %vm700 = vweird.f32 %v694
    %vm701 = vmor %vm699, %vm700
    %v702 = vsel %vm701, %v694, %v698
    %v703 = vand.u32 2147483647, %v509
    %vm704 = vcmp.eq.f32.partialorder %v703, 8.507059e+37
    %v705 = vand.u32 %v509, 2147483648
    %v706 = vor.u32 1.1754944e-38, %v705
    %v707 = vsel %vm704, %v706, %v702
    %v708 = vmul.f32 %v342, %v707
    %v709 = vrcp.pop %v510
    %v710 = vmul.f32 %v510, %v709
    %v711 = vsub.f32 1.0, %v710
    %v712 = vmul.f32 %v709, %v711
    %v713 = vadd.f32 %v709, %v712
    %vm714 = vweird.f32 %v510
    %vm715 = vweird.f32 %v709
    %vm716 = vmor %vm714, %vm715
    %v717 = vsel %vm716, %v709, %v713
    %v718 = vand.u32 2147483647, %v510
    %vm719 = vcmp.eq.f32.partialorder %v718, 8.507059e+37
    %v720 = vand.u32 %v510, 2147483648
    %v721 = vor.u32 1.1754944e-38, %v720
    %v722 = vsel %vm719, %v721, %v717
    %v723 = vmul.f32 %v344, %v722
    %v724 = vrcp.pop %v511
    %v725 = vmul.f32 %v511, %v724
    %v726 = vsub.f32 1.0, %v725
    %v727 = vmul.f32 %v724, %v726
    %v728 = vadd.f32 %v724, %v727
    %vm729 = vweird.f32 %v511
    %vm730 = vweird.f32 %v724
    %vm731 = vmor %vm729, %vm730
    %v732 = vsel %vm731, %v724, %v728
    %v733 = vand.u32 2147483647, %v511
    %vm734 = vcmp.eq.f32.partialorder %v733, 8.507059e+37
    %v735 = vand.u32 %v511, 2147483648
    %v736 = vor.u32 1.1754944e-38, %v735
    %v737 = vsel %vm734, %v736, %v732
    %v738 = vmul.f32 %v346, %v737
    %v739 = vrcp.pop %v512
    %v740 = vmul.f32 %v512, %v739
    %v741 = vsub.f32 1.0, %v740
    %v742 = vmul.f32 %v739, %v741
    %v743 = vadd.f32 %v739, %v742
    %vm744 = vweird.f32 %v512
    %vm745 = vweird.f32 %v739
    %vm746 = vmor %vm744, %vm745
    %v747 = vsel %vm746, %v739, %v743
    %v748 = vand.u32 2147483647, %v512
    %vm749 = vcmp.eq.f32.partialorder %v748, 8.507059e+37
    %v750 = vand.u32 %v512, 2147483648
    %v751 = vor.u32 1.1754944e-38, %v750
    %v752 = vsel %vm749, %v751, %v747
    %v753 = vmul.f32 %v348, %v752
    %v754 = vrcp.pop %v513
    %v755 = vmul.f32 %v513, %v754
    %v756 = vsub.f32 1.0, %v755
    %v757 = vmul.f32 %v754, %v756
    %v758 = vadd.f32 %v754, %v757
    %vm759 = vweird.f32 %v513
    %vm760 = vweird.f32 %v754
    %vm761 = vmor %vm759, %vm760
    %v762 = vsel %vm761, %v754, %v758
    %v763 = vand.u32 2147483647, %v513
    %vm764 = vcmp.eq.f32.partialorder %v763, 8.507059e+37
    %v765 = vand.u32 %v513, 2147483648
    %v766 = vor.u32 1.1754944e-38, %v765
    %v767 = vsel %vm764, %v766, %v762
    %v768 = vmul.f32 %v350, %v767
    %v769 = vpack.c.bf16 %v132, %v130
    %v770 = vpack.c.bf16 %v137, %v135
    %v771 = vpack.c.bf16 %v142, %v140
    %v772 = vpack.c.bf16 %v147, %v145
    %v773 = vpack.c.bf16 %v152, %v150
    %v774 = vpack.c.bf16 %v157, %v155
    %v775 = vpack.c.bf16 %v162, %v160
    %v776 = vpack.c.bf16 %v167, %v165
    %v777 = vpack.c.bf16 %v170, %v170
    %v778 = vmul.f32 %v528, %v225
    %v779 = vmul.f32 %v543, %v226
    %v780 = vmul.f32 %v558, %v227
    %v781 = vmul.f32 %v573, %v228
    %v782 = vmul.f32 %v588, %v229
    %v783 = vmul.f32 %v603, %v230
    %v784 = vmul.f32 %v618, %v231
    %v785 = vmul.f32 %v633, %v232
    %v786 = vmul.f32 %v648, %v233
    %v787 = vmul.f32 %v663, %v234
    %v788 = vmul.f32 %v678, %v235
    %v789 = vmul.f32 %v693, %v236
    %v790 = vmul.f32 %v708, %v237
    %v791 = vmul.f32 %v723, %v238
    %v792 = vmul.f32 %v738, %v239
    %v793 = vmul.f32 %v753, %v240
    %v794 = vmul.f32 %v768, %v241
    %v795 = vpack.c.bf16 %v779, %v778
    %v796 = vpack.c.bf16 %v781, %v780
    %v797 = vpack.c.bf16 %v783, %v782
    %v798 = vpack.c.bf16 %v785, %v784
    %v799 = vpack.c.bf16 %v787, %v786
    %v800 = vpack.c.bf16 %v789, %v788
    %v801 = vpack.c.bf16 %v791, %v790
    %v802 = vpack.c.bf16 %v793, %v792
    %v803 = vpack.c.bf16 %v794, %v794
    %813 = vrot.lane.b32.xlu0 %v795, 96
    %v814 = vpop.permute.xlu0 %813
    %815 = vrot.lane.b32.xlu0 %v796, 96
    %v816 = vpop.permute.xlu0 %815
    %817 = vrot.lane.b32.xlu0 %v797, 96
    %v818 = vpop.permute.xlu0 %817
    %819 = vrot.lane.b32.xlu0 %v798, 96
    %v820 = vpop.permute.xlu0 %819
    %821 = vrot.lane.b32.xlu0 %v799, 96
    %v822 = vpop.permute.xlu0 %821
    %823 = vrot.lane.b32.xlu0 %v800, 96
    %v824 = vpop.permute.xlu0 %823
    %825 = vrot.lane.b32.xlu0 %v801, 96
    %v826 = vpop.permute.xlu0 %825
    %827 = vrot.lane.b32.xlu0 %v802, 96
    %v828 = vpop.permute.xlu0 %827
    %829 = vrot.lane.b32.xlu0 %v803, 96
    %v830 = vpop.permute.xlu0 %829
    %840 = vxpose.xlu0.c.b16.start [1/8] %v814, 128
    %841 = vxpose.xlu0.c.b16.cont [2/8] %v816, 128
    %842 = vxpose.xlu0.c.b16.cont [3/8] %v818, 128
    %843 = vxpose.xlu0.c.b16.cont [4/8] %v820, 128
    %844 = vxpose.xlu0.c.b16.cont [5/8] %v822, 128
    %845 = vxpose.xlu0.c.b16.cont [6/8] %v824, 128
    %846 = vxpose.xlu0.c.b16.cont [7/8] %v826, 128
    %847 = vxpose.xlu0.c.b16.end [8/8] %v828, 128
    %v848 = vpop.trf.xlu0
    %v849 = vpop.trf.xlu0
    %v850 = vpop.trf.xlu0
    %v851 = vpop.trf.xlu0
    %v852 = vpop.trf.xlu0
    %v853 = vpop.trf.xlu0
    %v854 = vpop.trf.xlu0
    %v855 = vpop.trf.xlu0
    %856 = vxpose.xlu0.c.b16.start [1/8] %v830, 128
    %857 = vxpose.xlu0.c.b16.cont [2/8] 0, 128
    %858 = vxpose.xlu0.c.b16.cont [3/8] 0, 128
    %859 = vxpose.xlu0.c.b16.cont [4/8] 0, 128
    %860 = vxpose.xlu0.c.b16.cont [5/8] 0, 128
    %861 = vxpose.xlu0.c.b16.cont [6/8] 0, 128
    %862 = vxpose.xlu0.c.b16.cont [7/8] 0, 128
    %863 = vxpose.xlu0.c.b16.end [8/8] 0, 128
    %v864 = vpop.trf.xlu0
    %v865 = vpop.trf.xlu0
    %v866 = vpop.trf.xlu0
    %v867 = vpop.trf.xlu0
    %v868 = vpop.trf.xlu0
    %v869 = vpop.trf.xlu0
    %v870 = vpop.trf.xlu0
    %v871 = vpop.trf.xlu0
    %881 = vrot.lane.b32.xlu0 %v769, 64
    %v882 = vpop.permute.xlu0 %881
    %883 = vrot.lane.b32.xlu0 %v770, 64
    %v884 = vpop.permute.xlu0 %883
    %885 = vrot.lane.b32.xlu0 %v771, 64
    %v886 = vpop.permute.xlu0 %885
    %887 = vrot.lane.b32.xlu0 %v772, 64
    %v888 = vpop.permute.xlu0 %887
    %889 = vrot.lane.b32.xlu0 %v773, 64
    %v890 = vpop.permute.xlu0 %889
    %891 = vrot.lane.b32.xlu0 %v774, 64
    %v892 = vpop.permute.xlu0 %891
    %893 = vrot.lane.b32.xlu0 %v775, 64
    %v894 = vpop.permute.xlu0 %893
    %895 = vrot.lane.b32.xlu0 %v776, 64
    %v896 = vpop.permute.xlu0 %895
    %897 = vrot.lane.b32.xlu0 %v777, 64
    %v898 = vpop.permute.xlu0 %897
    %vm907 = vcmask 15360
    %v909 = vsel %vm907, %v864, 0
    %v912 = vsel %vm907, %v865, 0
    %vm914 = vcmask 1040384
    %v916 = vsel %vm914, %v898, 0
    %918 = vmatpush.bf16.msra.mxu0 %v896
    %919 = vmatpush.bf16.msra.mxu0 %v894
    %920 = vmatpush.bf16.msra.mxu0 %v892
    %921 = vmatpush.bf16.msra.mxu0 %v890
    %922 = vmatpush.bf16.msra.mxu0 %v888
    %923 = vmatpush.bf16.msra.mxu0 %v886
    %924 = vmatpush.bf16.msra.mxu0 %v884
    %925 = vmatpush.bf16.msra.mxu0 %v882
    %926 = vmatmul.bf16.gmra.mxu0 %v848
    %v927 = vpop.f32.mrf.mxu0
    %v928 = vadd.f32 0.0, %v927
    %v929 = vpop.f32.mrf.mxu0
    %v930 = vadd.f32 0.0, %v929
    %931 = vmatmul.bf16.gmra.mxu0 %v849
    %v932 = vpop.f32.mrf.mxu0
    %v933 = vadd.f32 0.0, %v932
    %v934 = vpop.f32.mrf.mxu0
    %v935 = vadd.f32 0.0, %v934
    %936 = vdwg.mxu0
    %937 = vmatpush.bf16.msra.mxu0 0
    %938 = vmatpush.bf16.msra.mxu0 0
    %939 = vmatpush.bf16.msra.mxu0 0
    %940 = vmatpush.bf16.msra.mxu0 0
    %941 = vmatpush.bf16.msra.mxu0 0
    %942 = vmatpush.bf16.msra.mxu0 0
    %943 = vmatpush.bf16.msra.mxu0 0
    %944 = vmatpush.bf16.msra.mxu0 %v916
    %945 = vmatmul.bf16.gmra.mxu0 %v909
    %v946 = vpop.f32.mrf.mxu0
    %v947 = vadd.f32 %v928, %v946
    %v948 = vpop.f32.mrf.mxu0
    %v949 = vadd.f32 %v930, %v948
    %950 = vmatmul.bf16.gmra.mxu0 %v912
    %v951 = vpop.f32.mrf.mxu0
    %v952 = vadd.f32 %v933, %v951
    %v953 = vpop.f32.mrf.mxu0
    %v954 = vadd.f32 %v935, %v953
    %955 = vdwg.mxu0
    %v956 = vmul.f32 %v528, %v242
    %v957 = vmul.f32 %v543, %v243
    %v958 = vmul.f32 %v558, %v244
    %v959 = vmul.f32 %v573, %v245
    %v960 = vmul.f32 %v588, %v246
    %v961 = vmul.f32 %v603, %v247
    %v962 = vmul.f32 %v618, %v248
    %v963 = vmul.f32 %v633, %v249
    %v964 = vmul.f32 %v648, %v250
    %v965 = vmul.f32 %v663, %v251
    %v966 = vmul.f32 %v678, %v252
    %v967 = vmul.f32 %v693, %v253
    %v968 = vmul.f32 %v708, %v254
    %v969 = vmul.f32 %v723, %v255
    %v970 = vmul.f32 %v738, %v256
    %v971 = vmul.f32 %v753, %v257
    %v972 = vmul.f32 %v768, %v258
    %v973 = vpack.c.bf16 %v957, %v956
    %v974 = vpack.c.bf16 %v959, %v958
    %v975 = vpack.c.bf16 %v961, %v960
    %v976 = vpack.c.bf16 %v963, %v962
    %v977 = vpack.c.bf16 %v965, %v964
    %v978 = vpack.c.bf16 %v967, %v966
    %v979 = vpack.c.bf16 %v969, %v968
    %v980 = vpack.c.bf16 %v971, %v970
    %v981 = vpack.c.bf16 %v972, %v972
    %991 = vrot.lane.b32.xlu0 %v973, 96
    %v992 = vpop.permute.xlu0 %991
    %993 = vrot.lane.b32.xlu0 %v974, 96
    %v994 = vpop.permute.xlu0 %993
    %995 = vrot.lane.b32.xlu0 %v975, 96
    %v996 = vpop.permute.xlu0 %995
    %997 = vrot.lane.b32.xlu0 %v976, 96
    %v998 = vpop.permute.xlu0 %997
    %999 = vrot.lane.b32.xlu0 %v977, 96
    %v1000 = vpop.permute.xlu0 %999
    %1001 = vrot.lane.b32.xlu0 %v978, 96
    %v1002 = vpop.permute.xlu0 %1001
    %1003 = vrot.lane.b32.xlu0 %v979, 96
    %v1004 = vpop.permute.xlu0 %1003
    %1005 = vrot.lane.b32.xlu0 %v980, 96
    %v1006 = vpop.permute.xlu0 %1005
    %1007 = vrot.lane.b32.xlu0 %v981, 96
    %v1008 = vpop.permute.xlu0 %1007
    %1018 = vxpose.xlu0.c.b16.start [1/8] %v992, 128
    %1019 = vxpose.xlu0.c.b16.cont [2/8] %v994, 128
    %1020 = vxpose.xlu0.c.b16.cont [3/8] %v996, 128
    %1021 = vxpose.xlu0.c.b16.cont [4/8] %v998, 128
    %1022 = vxpose.xlu0.c.b16.cont [5/8] %v1000, 128
    %1023 = vxpose.xlu0.c.b16.cont [6/8] %v1002, 128
    %1024 = vxpose.xlu0.c.b16.cont [7/8] %v1004, 128
    %1025 = vxpose.xlu0.c.b16.end [8/8] %v1006, 128
    %v1026 = vpop.trf.xlu0
    %v1027 = vpop.trf.xlu0
    %v1028 = vpop.trf.xlu0
    %v1029 = vpop.trf.xlu0
    %v1030 = vpop.trf.xlu0
    %v1031 = vpop.trf.xlu0
    %v1032 = vpop.trf.xlu0
    %v1033 = vpop.trf.xlu0
    %1034 = vxpose.xlu0.c.b16.start [1/8] %v1008, 128
    %1035 = vxpose.xlu0.c.b16.cont [2/8] 0, 128
    %1036 = vxpose.xlu0.c.b16.cont [3/8] 0, 128
    %1037 = vxpose.xlu0.c.b16.cont [4/8] 0, 128
    %1038 = vxpose.xlu0.c.b16.cont [5/8] 0, 128
    %1039 = vxpose.xlu0.c.b16.cont [6/8] 0, 128
    %1040 = vxpose.xlu0.c.b16.cont [7/8] 0, 128
    %1041 = vxpose.xlu0.c.b16.end [8/8] 0, 128
    %v1042 = vpop.trf.xlu0
    %v1043 = vpop.trf.xlu0
    %v1044 = vpop.trf.xlu0
    %v1045 = vpop.trf.xlu0
    %v1046 = vpop.trf.xlu0
    %v1047 = vpop.trf.xlu0
    %v1048 = vpop.trf.xlu0
    %v1049 = vpop.trf.xlu0
    %v1051 = vsel %vm907, %v1042, 0
    %v1054 = vsel %vm907, %v1043, 0
    %1056 = vmatpush.bf16.msra.mxu0 %v896
    %1057 = vmatpush.bf16.msra.mxu0 %v894
    %1058 = vmatpush.bf16.msra.mxu0 %v892
    %1059 = vmatpush.bf16.msra.mxu0 %v890
    %1060 = vmatpush.bf16.msra.mxu0 %v888
    %1061 = vmatpush.bf16.msra.mxu0 %v886
    %1062 = vmatpush.bf16.msra.mxu0 %v884
    %1063 = vmatpush.bf16.msra.mxu0 %v882
    %1064 = vmatmul.bf16.gmra.mxu0 %v1026
    %v1065 = vpop.f32.mrf.mxu0
    %v1066 = vadd.f32 0.0, %v1065
    %v1067 = vpop.f32.mrf.mxu0
    %v1068 = vadd.f32 0.0, %v1067
    %1069 = vmatmul.bf16.gmra.mxu0 %v1027
    %v1070 = vpop.f32.mrf.mxu0
    %v1071 = vadd.f32 0.0, %v1070
    %v1072 = vpop.f32.mrf.mxu0
    %v1073 = vadd.f32 0.0, %v1072
    %1074 = vdwg.mxu0
    %1075 = vmatpush.bf16.msra.mxu0 0
    %1076 = vmatpush.bf16.msra.mxu0 0
    %1077 = vmatpush.bf16.msra.mxu0 0
    %1078 = vmatpush.bf16.msra.mxu0 0
    %1079 = vmatpush.bf16.msra.mxu0 0
    %1080 = vmatpush.bf16.msra.mxu0 0
    %1081 = vmatpush.bf16.msra.mxu0 0
    %1082 = vmatpush.bf16.msra.mxu0 %v916
    %1083 = vmatmul.bf16.gmra.mxu0 %v1051
    %v1084 = vpop.f32.mrf.mxu0
    %v1085 = vadd.f32 %v1066, %v1084
    %v1086 = vpop.f32.mrf.mxu0
    %v1087 = vadd.f32 %v1068, %v1086
    %1088 = vmatmul.bf16.gmra.mxu0 %v1054
    %v1089 = vpop.f32.mrf.mxu0
    %v1090 = vadd.f32 %v1071, %v1089
    %v1091 = vpop.f32.mrf.mxu0
    %v1092 = vadd.f32 %v1073, %v1091
    %1093 = vdwg.mxu0
    %v1094 = vld [vmem:[%s7] sm:$0xff]
    %v1095 = vld [vmem:[%s7 + $0x8] sm:$0xff]
    %v1096 = vld [vmem:[%s7 + $0x10] sm:$0xff]
    %v1097 = vld [vmem:[%s7 + $0x18] sm:$0xff]
    %v1098 = vmul.f32 %v947, %v1094
    %v1099 = vmul.f32 %v949, %v1095
    %v1100 = vmul.f32 %v952, %v1096
    %v1101 = vmul.f32 %v954, %v1097
    %v1102 = vpack.c.bf16 %v1099, %v1098
    %v1103 = vpack.c.bf16 %v1101, %v1100
    %v1105 = vsel %vm92, %v769, 0
    %v1108 = vsel %vm92, %v770, 0
    %v1111 = vsel %vm92, %v771, 0
    %v1114 = vsel %vm92, %v772, 0
    %v1117 = vsel %vm92, %v773, 0
    %v1120 = vsel %vm92, %v774, 0
    %v1123 = vsel %vm92, %v775, 0
    %v1126 = vsel %vm92, %v776, 0
    %v1129 = vsel %vm92, %v777, 0
    %1131 = vmatpush.bf16.msra.mxu0 0
    %1132 = vmatpush.bf16.msra.mxu0 0
    %1133 = vmatpush.bf16.msra.mxu0 0
    %1134 = vmatpush.bf16.msra.mxu0 0
    %1135 = vmatpush.bf16.msra.mxu0 0
    %1136 = vmatpush.bf16.msra.mxu0 0
    %1137 = vmatpush.bf16.msra.mxu0 %v1103
    %1138 = vmatpush.bf16.msra.mxu0 %v1102
    %1139 = vmatmul.bf16.gmra.mxu0 %v1105
    %v1140 = vpop.f32.mrf.mxu0
    %v1141 = vadd.f32 0.0, %v1140
    %v1142 = vpop.f32.mrf.mxu0
    %v1143 = vadd.f32 0.0, %v1142
    %1144 = vmatmul.bf16.gmra.mxu0 %v1108
    %v1145 = vpop.f32.mrf.mxu0
    %v1146 = vadd.f32 0.0, %v1145
    %v1147 = vpop.f32.mrf.mxu0
    %v1148 = vadd.f32 0.0, %v1147
    %1149 = vmatmul.bf16.gmra.mxu0 %v1111
    %v1150 = vpop.f32.mrf.mxu0
    %v1151 = vadd.f32 0.0, %v1150
    %v1152 = vpop.f32.mrf.mxu0
    %v1153 = vadd.f32 0.0, %v1152
    %1154 = vmatmul.bf16.gmra.mxu0 %v1114
    %v1155 = vpop.f32.mrf.mxu0
    %v1156 = vadd.f32 0.0, %v1155
    %v1157 = vpop.f32.mrf.mxu0
    %v1158 = vadd.f32 0.0, %v1157
    %1159 = vmatmul.bf16.gmra.mxu0 %v1117
    %v1160 = vpop.f32.mrf.mxu0
    %v1161 = vadd.f32 0.0, %v1160
    %v1162 = vpop.f32.mrf.mxu0
    %v1163 = vadd.f32 0.0, %v1162
    %1164 = vmatmul.bf16.gmra.mxu0 %v1120
    %v1165 = vpop.f32.mrf.mxu0
    %v1166 = vadd.f32 0.0, %v1165
    %v1167 = vpop.f32.mrf.mxu0
    %v1168 = vadd.f32 0.0, %v1167
    %1169 = vmatmul.bf16.gmra.mxu0 %v1123
    %v1170 = vpop.f32.mrf.mxu0
    %v1171 = vadd.f32 0.0, %v1170
    %v1172 = vpop.f32.mrf.mxu0
    %v1173 = vadd.f32 0.0, %v1172
    %1174 = vmatmul.bf16.gmra.mxu0 %v1126
    %v1175 = vpop.f32.mrf.mxu0
    %v1176 = vadd.f32 0.0, %v1175
    %v1177 = vpop.f32.mrf.mxu0
    %v1178 = vadd.f32 0.0, %v1177
    %1179 = vmatmul.bf16.gmra.mxu0 %v1129
    %v1180 = vpop.f32.mrf.mxu0
    %v1181 = vadd.f32 0.0, %v1180
    %v1182 = vpop.f32.mrf.mxu0
    %1183 = vdwg.mxu0
    %v1184 = vmul.f32 %v1085, %v1094
    %v1185 = vmul.f32 %v1087, %v1095
    %v1186 = vmul.f32 %v1090, %v1096
    %v1187 = vmul.f32 %v1092, %v1097
    %v1188 = vpack.c.bf16 %v1185, %v1184
    %v1189 = vpack.c.bf16 %v1187, %v1186
    %1190 = vmatpush.bf16.msra.mxu0 0
    %1191 = vmatpush.bf16.msra.mxu0 0
    %1192 = vmatpush.bf16.msra.mxu0 0
    %1193 = vmatpush.bf16.msra.mxu0 0
    %1194 = vmatpush.bf16.msra.mxu0 0
    %1195 = vmatpush.bf16.msra.mxu0 0
    %1196 = vmatpush.bf16.msra.mxu0 %v1189
    %1197 = vmatpush.bf16.msra.mxu0 %v1188
    %1198 = vmatmul.bf16.gmra.mxu0 %v1105
    %v1199 = vpop.f32.mrf.mxu0
    %v1200 = vadd.f32 0.0, %v1199
    %v1201 = vpop.f32.mrf.mxu0
    %v1202 = vadd.f32 0.0, %v1201
    %1203 = vmatmul.bf16.gmra.mxu0 %v1108
    %v1204 = vpop.f32.mrf.mxu0
    %v1205 = vadd.f32 0.0, %v1204
    %v1206 = vpop.f32.mrf.mxu0
    %v1207 = vadd.f32 0.0, %v1206
    %1208 = vmatmul.bf16.gmra.mxu0 %v1111
    %v1209 = vpop.f32.mrf.mxu0
    %v1210 = vadd.f32 0.0, %v1209
    %v1211 = vpop.f32.mrf.mxu0
    %v1212 = vadd.f32 0.0, %v1211
    %1213 = vmatmul.bf16.gmra.mxu0 %v1114
    %v1214 = vpop.f32.mrf.mxu0
    %v1215 = vadd.f32 0.0, %v1214
    %v1216 = vpop.f32.mrf.mxu0
    %v1217 = vadd.f32 0.0, %v1216
    %1218 = vmatmul.bf16.gmra.mxu0 %v1117
    %v1219 = vpop.f32.mrf.mxu0
    %v1220 = vadd.f32 0.0, %v1219
    %v1221 = vpop.f32.mrf.mxu0
    %v1222 = vadd.f32 0.0, %v1221
    %1223 = vmatmul.bf16.gmra.mxu0 %v1120
    %v1224 = vpop.f32.mrf.mxu0
    %v1225 = vadd.f32 0.0, %v1224
    %v1226 = vpop.f32.mrf.mxu0
    %v1227 = vadd.f32 0.0, %v1226
    %1228 = vmatmul.bf16.gmra.mxu0 %v1123
    %v1229 = vpop.f32.mrf.mxu0
    %v1230 = vadd.f32 0.0, %v1229
    %v1231 = vpop.f32.mrf.mxu0
    %v1232 = vadd.f32 0.0, %v1231
    %1233 = vmatmul.bf16.gmra.mxu0 %v1126
    %v1234 = vpop.f32.mrf.mxu0
    %v1235 = vadd.f32 0.0, %v1234
    %v1236 = vpop.f32.mrf.mxu0
    %v1237 = vadd.f32 0.0, %v1236
    %1238 = vmatmul.bf16.gmra.mxu0 %v1129
    %v1239 = vpop.f32.mrf.mxu0
    %v1240 = vadd.f32 0.0, %v1239
    %v1241 = vpop.f32.mrf.mxu0
    %1242 = vdwg.mxu0
    %vm1243 = vcmp.gt.f32.partialorder %v225, 0.5
    %vm1244 = vcmp.gt.f32.partialorder %v226, 0.5
    %vm1245 = vcmp.gt.f32.partialorder %v227, 0.5
    %vm1246 = vcmp.gt.f32.partialorder %v228, 0.5
    %vm1247 = vcmp.gt.f32.partialorder %v229, 0.5
    %vm1248 = vcmp.gt.f32.partialorder %v230, 0.5
    %vm1249 = vcmp.gt.f32.partialorder %v231, 0.5
    %vm1250 = vcmp.gt.f32.partialorder %v232, 0.5
    %vm1251 = vcmp.gt.f32.partialorder %v233, 0.5
    %vm1252 = vcmp.gt.f32.partialorder %v234, 0.5
    %vm1253 = vcmp.gt.f32.partialorder %v235, 0.5
    %vm1254 = vcmp.gt.f32.partialorder %v236, 0.5
    %vm1255 = vcmp.gt.f32.partialorder %v237, 0.5
    %vm1256 = vcmp.gt.f32.partialorder %v238, 0.5
    %vm1257 = vcmp.gt.f32.partialorder %v239, 0.5
    %vm1258 = vcmp.gt.f32.partialorder %v240, 0.5
    %vm1259 = vcmp.gt.f32.partialorder %v241, 0.5
    %v1260 = vsel %vm1243, %v1141, %v1200
    %v1261 = vsel %vm1244, %v1143, %v1202
    %v1262 = vsel %vm1245, %v1146, %v1205
    %v1263 = vsel %vm1246, %v1148, %v1207
    %v1264 = vsel %vm1247, %v1151, %v1210
    %v1265 = vsel %vm1248, %v1153, %v1212
    %v1266 = vsel %vm1249, %v1156, %v1215
    %v1267 = vsel %vm1250, %v1158, %v1217
    %v1268 = vsel %vm1251, %v1161, %v1220
    %v1269 = vsel %vm1252, %v1163, %v1222
    %v1270 = vsel %vm1253, %v1166, %v1225
    %v1271 = vsel %vm1254, %v1168, %v1227
    %v1272 = vsel %vm1255, %v1171, %v1230
    %v1273 = vsel %vm1256, %v1173, %v1232
    %v1274 = vsel %vm1257, %v1176, %v1235
    %v1275 = vsel %vm1258, %v1178, %v1237
    %v1276 = vsel %vm1259, %v1181, %v1240
    %v1277 = vld [vmem:[%s3] sm:$0xf]
    %v1278 = vld [vmem:[%s3 + $0x4] sm:$0xf]
    %v1279 = vld [vmem:[%s3 + $0x8] sm:$0xf]
    %v1280 = vld [vmem:[%s3 + $0xc] sm:$0xf]
    %v1281 = vpack.c.bf16 %v1261, %v1260
    %v1282 = vpack.c.bf16 %v1263, %v1262
    %v1283 = vpack.c.bf16 %v1265, %v1264
    %v1284 = vpack.c.bf16 %v1267, %v1266
    %v1285 = vpack.c.bf16 %v1269, %v1268
    %v1286 = vpack.c.bf16 %v1271, %v1270
    %v1287 = vpack.c.bf16 %v1273, %v1272
    %v1288 = vpack.c.bf16 %v1275, %v1274
    %v1289 = vpack.c.bf16 %v1276, %v1276
    %v1290 = vld [vmem:[%s4] sm:$0x1]
    %v1292 = vperm.slane %v1290, 0
    %v1298 = vunpack.c.l.b16 %v1277
    %v1299 = vunpack.c.l.b16 %v1278
    %v1300 = vunpack.c.l.b16 %v1279
    %v1301 = vunpack.c.l.b16 %v1280
    %v1302 = vpack.c.b16 %v1299, %v1298
    %v1303 = vpack.c.b16 %v1301, %v1300
    %v1307 = vsel %vm92, %v1281, 0
    %v1310 = vsel %vm92, %v1282, 0
    %v1313 = vsel %vm92, %v1283, 0
    %v1316 = vsel %vm92, %v1284, 0
    %v1319 = vsel %vm92, %v1285, 0
    %v1322 = vsel %vm92, %v1286, 0
    %v1325 = vsel %vm92, %v1287, 0
    %v1328 = vsel %vm92, %v1288, 0
    %v1331 = vsel %vm92, %v1289, 0
    %1333 = vmatpush.bf16.msra.mxu0 0
    %1334 = vmatpush.bf16.msra.mxu0 0
    %1335 = vmatpush.bf16.msra.mxu0 0
    %1336 = vmatpush.bf16.msra.mxu0 0
    %1337 = vmatpush.bf16.msra.mxu0 0
    %1338 = vmatpush.bf16.msra.mxu0 0
    %1339 = vmatpush.bf16.msra.mxu0 %v1303
    %1340 = vmatpush.bf16.msra.mxu0 %v1302
    %1341 = vmatmul.bf16.gmra.mxu0 %v1307
    %v1342 = vpop.f32.mrf.mxu0
    %v1343 = vadd.f32 %v1292, %v1342
    %v1344 = vpop.f32.mrf.mxu0
    %v1345 = vadd.f32 %v1292, %v1344
    %1346 = vmatmul.bf16.gmra.mxu0 %v1310
    %v1347 = vpop.f32.mrf.mxu0
    %v1348 = vadd.f32 %v1292, %v1347
    %v1349 = vpop.f32.mrf.mxu0
    %v1350 = vadd.f32 %v1292, %v1349
    %1351 = vmatmul.bf16.gmra.mxu0 %v1313
    %v1352 = vpop.f32.mrf.mxu0
    %v1353 = vadd.f32 %v1292, %v1352
    %v1354 = vpop.f32.mrf.mxu0
    %v1355 = vadd.f32 %v1292, %v1354
    %1356 = vmatmul.bf16.gmra.mxu0 %v1316
    %v1357 = vpop.f32.mrf.mxu0
    %v1358 = vadd.f32 %v1292, %v1357
    %v1359 = vpop.f32.mrf.mxu0
    %v1360 = vadd.f32 %v1292, %v1359
    %1361 = vmatmul.bf16.gmra.mxu0 %v1319
    %v1362 = vpop.f32.mrf.mxu0
    %v1363 = vadd.f32 %v1292, %v1362
    %v1364 = vpop.f32.mrf.mxu0
    %v1365 = vadd.f32 %v1292, %v1364
    %1366 = vmatmul.bf16.gmra.mxu0 %v1322
    %v1367 = vpop.f32.mrf.mxu0
    %v1368 = vadd.f32 %v1292, %v1367
    %v1369 = vpop.f32.mrf.mxu0
    %v1370 = vadd.f32 %v1292, %v1369
    %1371 = vmatmul.bf16.gmra.mxu0 %v1325
    %v1372 = vpop.f32.mrf.mxu0
    %v1373 = vadd.f32 %v1292, %v1372
    %v1374 = vpop.f32.mrf.mxu0
    %v1375 = vadd.f32 %v1292, %v1374
    %1376 = vmatmul.bf16.gmra.mxu0 %v1328
    %v1377 = vpop.f32.mrf.mxu0
    %v1378 = vadd.f32 %v1292, %v1377
    %v1379 = vpop.f32.mrf.mxu0
    %v1380 = vadd.f32 %v1292, %v1379
    %1381 = vmatmul.bf16.gmra.mxu0 %v1331
    %v1382 = vpop.f32.mrf.mxu0
    %v1383 = vadd.f32 %v1292, %v1382
    %v1384 = vpop.f32.mrf.mxu0
    %1385 = vdwg.mxu0
    %1386 = vst.msk [vmem:[%s8] sm:$0xff] %vm92, %v1343
    %1387 = vst.msk [vmem:[%s8 + $0x8] sm:$0xff] %vm92, %v1345
    %1388 = vst.msk [vmem:[%s8 + $0x10] sm:$0xff] %vm92, %v1348
    %1389 = vst.msk [vmem:[%s8 + $0x18] sm:$0xff] %vm92, %v1350
    %1390 = vst.msk [vmem:[%s8 + $0x20] sm:$0xff] %vm92, %v1353
    %1391 = vst.msk [vmem:[%s8 + $0x28] sm:$0xff] %vm92, %v1355
    %1392 = vst.msk [vmem:[%s8 + $0x30] sm:$0xff] %vm92, %v1358
    %1393 = vst.msk [vmem:[%s8 + $0x38] sm:$0xff] %vm92, %v1360
    %1394 = vst.msk [vmem:[%s8 + $0x40] sm:$0xff] %vm92, %v1363
    %1395 = vst.msk [vmem:[%s8 + $0x48] sm:$0xff] %vm92, %v1365
    %1396 = vst.msk [vmem:[%s8 + $0x50] sm:$0xff] %vm92, %v1368
    %1397 = vst.msk [vmem:[%s8 + $0x58] sm:$0xff] %vm92, %v1370
    %1398 = vst.msk [vmem:[%s8 + $0x60] sm:$0xff] %vm92, %v1373
    %1399 = vst.msk [vmem:[%s8 + $0x68] sm:$0xff] %vm92, %v1375
    %1400 = vst.msk [vmem:[%s8 + $0x70] sm:$0xff] %vm92, %v1378
    %1401 = vst.msk [vmem:[%s8 + $0x78] sm:$0xff] %vm92, %v1380
    %vm1402 = vcmask 254976
    %1403 = vst.msk [vmem:[%s8 + $0x80] sm:$0x3] %vm1402, %v1383
    %vm1413 = vcmask 1046528
    %v1414 = vrot.slane %v150, 1
    %v1415 = vrot.slane %v152, 1
    %v1416 = vsel %vm1413, %v1414, %v1415
    %v1417 = vrot.slane %v155, 1
    %v1418 = vsel %vm1413, %v1415, %v1417
    %v1419 = vrot.slane %v157, 1
    %v1420 = vsel %vm1413, %v1417, %v1419
    %v1421 = vrot.slane %v160, 1
    %v1422 = vsel %vm1413, %v1419, %v1421
    %v1423 = vrot.slane %v162, 1
    %v1424 = vsel %vm1413, %v1421, %v1423
    %v1425 = vrot.slane %v165, 1
    %v1426 = vsel %vm1413, %v1423, %v1425
    %v1427 = vrot.slane %v167, 1
    %v1428 = vsel %vm1413, %v1425, %v1427
    %v1429 = vrot.slane %v170, 1
    %v1430 = vsel %vm1413, %v1427, %v1429
    %1431 = vrot.lane.b32.xlu0 %v1416, 32
    %v1432 = vpop.permute.xlu0 %1431
    %1433 = vrot.lane.b32.xlu0 %v1418, 32
    %v1434 = vpop.permute.xlu0 %1433
    %1435 = vrot.lane.b32.xlu0 %v1420, 32
    %v1436 = vpop.permute.xlu0 %1435
    %1437 = vrot.lane.b32.xlu0 %v1422, 32
    %v1438 = vpop.permute.xlu0 %1437
    %1439 = vrot.lane.b32.xlu0 %v1424, 32
    %v1440 = vpop.permute.xlu0 %1439
    %1441 = vrot.lane.b32.xlu0 %v1426, 32
    %v1442 = vpop.permute.xlu0 %1441
    %1443 = vrot.lane.b32.xlu0 %v1428, 32
    %v1444 = vpop.permute.xlu0 %1443
    %1445 = vrot.lane.b32.xlu0 %v1430, 32
    %v1446 = vpop.permute.xlu0 %1445
    %1447 = vrot.lane.b32.xlu0 %v1429, 32
    %v1448 = vpop.permute.xlu0 %1447
    %v1458 = vsel %vm92, %v130, %v1432
    %v1459 = vsel %vm92, %v132, %v1434
    %v1460 = vsel %vm92, %v135, %v1436
    %v1461 = vsel %vm92, %v137, %v1438
    %v1462 = vsel %vm92, %v140, %v1440
    %v1463 = vsel %vm92, %v142, %v1442
    %v1464 = vsel %vm92, %v145, %v1444
    %v1465 = vsel %vm92, %v147, %v1446
    %v1466 = vsel %vm92, %v150, %v1448
    %v1476 = vrot.slane %v1458, 1
    %v1477 = vrot.slane %v1459, 1
    %v1478 = vsel %vm1413, %v1476, %v1477
    %v1479 = vrot.slane %v1460, 1
    %v1480 = vsel %vm1413, %v1477, %v1479
    %v1481 = vrot.slane %v1461, 1
    %v1482 = vsel %vm1413, %v1479, %v1481
    %v1483 = vrot.slane %v1462, 1
    %v1484 = vsel %vm1413, %v1481, %v1483
    %v1485 = vrot.slane %v1463, 1
    %v1486 = vsel %vm1413, %v1483, %v1485
    %v1487 = vrot.slane %v1464, 1
    %v1488 = vsel %vm1413, %v1485, %v1487
    %v1489 = vrot.slane %v1465, 1
    %v1490 = vsel %vm1413, %v1487, %v1489
    %v1491 = vrot.slane %v1466, 1
    %v1492 = vsel %vm1413, %v1489, %v1491
    %1509 = vrot.lane.b32.xlu0 %v130, 64
    %v1510 = vpop.permute.xlu0 %1509
    %1511 = vrot.lane.b32.xlu0 %v132, 64
    %v1512 = vpop.permute.xlu0 %1511
    %1513 = vrot.lane.b32.xlu0 %v135, 64
    %v1514 = vpop.permute.xlu0 %1513
    %1515 = vrot.lane.b32.xlu0 %v137, 64
    %v1516 = vpop.permute.xlu0 %1515
    %1517 = vrot.lane.b32.xlu0 %v140, 64
    %v1518 = vpop.permute.xlu0 %1517
    %1519 = vrot.lane.b32.xlu0 %v142, 64
    %v1520 = vpop.permute.xlu0 %1519
    %1521 = vrot.lane.b32.xlu0 %v145, 64
    %v1522 = vpop.permute.xlu0 %1521
    %1523 = vrot.lane.b32.xlu0 %v147, 64
    %v1524 = vpop.permute.xlu0 %1523
    %1525 = vrot.lane.b32.xlu0 %v150, 64
    %v1526 = vpop.permute.xlu0 %1525
    %1536 = vrot.lane.b32.xlu0 %v1416, 96
    %v1537 = vpop.permute.xlu0 %1536
    %1538 = vrot.lane.b32.xlu0 %v1418, 96
    %v1539 = vpop.permute.xlu0 %1538
    %1540 = vrot.lane.b32.xlu0 %v1420, 96
    %v1541 = vpop.permute.xlu0 %1540
    %1542 = vrot.lane.b32.xlu0 %v1422, 96
    %v1543 = vpop.permute.xlu0 %1542
    %1544 = vrot.lane.b32.xlu0 %v1424, 96
    %v1545 = vpop.permute.xlu0 %1544
    %1546 = vrot.lane.b32.xlu0 %v1426, 96
    %v1547 = vpop.permute.xlu0 %1546
    %1548 = vrot.lane.b32.xlu0 %v1428, 96
    %v1549 = vpop.permute.xlu0 %1548
    %1550 = vrot.lane.b32.xlu0 %v1430, 96
    %v1551 = vpop.permute.xlu0 %1550
    %1552 = vrot.lane.b32.xlu0 %v1429, 96
    %v1553 = vpop.permute.xlu0 %1552
    %v1563 = vsel %vm92, %v1510, %v1537
    %v1564 = vsel %vm92, %v1512, %v1539
    %v1565 = vsel %vm92, %v1514, %v1541
    %v1566 = vsel %vm92, %v1516, %v1543
    %v1567 = vsel %vm92, %v1518, %v1545
    %v1568 = vsel %vm92, %v1520, %v1547
    %v1569 = vsel %vm92, %v1522, %v1549
    %v1570 = vsel %vm92, %v1524, %v1551
    %v1571 = vsel %vm92, %v1526, %v1553
    %v1581 = vrot.slane %v1563, 1
    %v1582 = vrot.slane %v1564, 1
    %v1583 = vsel %vm1413, %v1581, %v1582
    %v1584 = vrot.slane %v1565, 1
    %v1585 = vsel %vm1413, %v1582, %v1584
    %v1586 = vrot.slane %v1566, 1
    %v1587 = vsel %vm1413, %v1584, %v1586
    %v1588 = vrot.slane %v1567, 1
    %v1589 = vsel %vm1413, %v1586, %v1588
    %v1590 = vrot.slane %v1568, 1
    %v1591 = vsel %vm1413, %v1588, %v1590
    %v1592 = vrot.slane %v1569, 1
    %v1593 = vsel %vm1413, %v1590, %v1592
    %v1594 = vrot.slane %v1570, 1
    %v1595 = vsel %vm1413, %v1592, %v1594
    %v1596 = vrot.slane %v1571, 1
    %v1597 = vsel %vm1413, %v1594, %v1596
    %vm1606 = vcmask 523264
    %1607 = vst.msk [vmem:[#allocation2] sm:$0xff] %vm1606, 0.0
    %1608 = vst.msk [vmem:[#allocation2 + $0x8] sm:$0xff] %vm1606, 0.0
    %1609 = vst.msk [vmem:[#allocation2 + $0x10] sm:$0xff] %vm1606, 0.0
    %1610 = vst.msk [vmem:[#allocation2 + $0x18] sm:$0xff] %vm1606, 0.0
    %1611 = vst.msk [vmem:[#allocation2 + $0x20] sm:$0xff] %vm1606, 0.0
    %1612 = vst.msk [vmem:[#allocation2 + $0x28] sm:$0xff] %vm1606, 0.0
    %1613 = vst.msk [vmem:[#allocation2 + $0x30] sm:$0xff] %vm1606, 0.0
    %1614 = vst.msk [vmem:[#allocation2 + $0x38] sm:$0xff] %vm1606, 0.0
    %1615 = vst.msk [vmem:[#allocation2 + $0x40] sm:$0xff] %vm1606, 0.0
    %1616 = vst.msk [vmem:[#allocation2 + $0x48] sm:$0xff] %vm1606, 0.0
    %1617 = vst.msk [vmem:[#allocation2 + $0x50] sm:$0xff] %vm1606, 0.0
    %1618 = vst.msk [vmem:[#allocation2 + $0x58] sm:$0xff] %vm1606, 0.0
    %1619 = vst.msk [vmem:[#allocation2 + $0x60] sm:$0xff] %vm1606, 0.0
    %1620 = vst.msk [vmem:[#allocation2 + $0x68] sm:$0xff] %vm1606, 0.0
    %1621 = vst.msk [vmem:[#allocation2 + $0x70] sm:$0xff] %vm1606, 0.0
    %1622 = vst.msk [vmem:[#allocation2 + $0x78] sm:$0xff] %vm1606, 0.0
    %1623 = vst.msk [vmem:[#allocation2 + $0x80] sm:$0xff] %vm1606, 0.0
    %1624 = vst.msk [vmem:[#allocation2 + $0x88] sm:$0xff] %vm1606, 0.0
    %1625 = vst.msk [vmem:[#allocation2 + $0x90] sm:$0xff] %vm1606, 0.0
    %1626 = vst.msk [vmem:[#allocation2 + $0x98] sm:$0xff] %vm1606, 0.0
    %1627 = vst.msk [vmem:[#allocation2 + $0xa0] sm:$0xff] %vm1606, 0.0
    %1628 = vst.msk [vmem:[#allocation2 + $0xa8] sm:$0xff] %vm1606, 0.0
    %1629 = vst.msk [vmem:[#allocation2 + $0xb0] sm:$0xff] %vm1606, 0.0
    %1630 = vst.msk [vmem:[#allocation2 + $0xb8] sm:$0xff] %vm1606, 0.0
    %1631 = vst.msk [vmem:[#allocation2 + $0xc0] sm:$0xff] %vm1606, 0.0
    %1632 = vst.msk [vmem:[#allocation2 + $0xc8] sm:$0xff] %vm1606, 0.0
    %1633 = vst.msk [vmem:[#allocation2 + $0xd0] sm:$0xff] %vm1606, 0.0
    %1634 = vst.msk [vmem:[#allocation2 + $0xd8] sm:$0xff] %vm1606, 0.0
    %s1635 = scalar_lea.vmem [#allocation2], 48
    %1636 = vst.msk [vmem:[%s1635 + $0x3] sm:$0xff] %vm1606, %v1583
    %1637 = vst.msk [vmem:[%s1635 + $0x13] sm:$0xff] %vm1606, %v1585
    %1638 = vst.msk [vmem:[%s1635 + $0x23] sm:$0xff] %vm1606, %v1587
    %1639 = vst.msk [vmem:[%s1635 + $0x33] sm:$0xff] %vm1606, %v1589
    %1640 = vst.msk [vmem:[%s1635 + $0x43] sm:$0xff] %vm1606, %v1591
    %1641 = vst.msk [vmem:[%s1635 + $0x53] sm:$0xff] %vm1606, %v1593
    %1642 = vst.msk [vmem:[%s1635 + $0x63] sm:$0xff] %vm1606, %v1595
    %1643 = vst.msk [vmem:[%s1635 + $0x73] sm:$0xff] %vm1606, %v1597
    %v1644 = vld [vmem:[%s6] sm:$0xff]
    %v1645 = vld [vmem:[#allocation2] sm:$0xff]
    %v1646 = vld [vmem:[#allocation2 + $0x10] sm:$0xff]
    %v1647 = vld [vmem:[#allocation2 + $0x20] sm:$0xff]
    %v1648 = vld [vmem:[#allocation2 + $0x30] sm:$0xff]
    %v1649 = vld [vmem:[#allocation2 + $0x40] sm:$0xff]
    %v1650 = vld [vmem:[#allocation2 + $0x50] sm:$0xff]
    %v1651 = vld [vmem:[#allocation2 + $0x60] sm:$0xff]
    %v1652 = vld [vmem:[#allocation2 + $0x70] sm:$0xff]
    %v1653 = vld [vmem:[#allocation2 + $0x80] sm:$0xff]
    %v1654 = vld [vmem:[#allocation2 + $0x90] sm:$0xff]
    %v1655 = vld [vmem:[#allocation2 + $0xa0] sm:$0xff]
    %v1656 = vld [vmem:[#allocation2 + $0xb0] sm:$0xff]
    %v1657 = vld [vmem:[#allocation2 + $0xc0] sm:$0xff]
    %v1658 = vld [vmem:[#allocation2 + $0xd0] sm:$0xff]
    %v1659 = vld [vmem:[#allocation3] sm:$0xff]
    %v1660 = vmul.f32 %v1645, %v1659
    %v1661 = vmul.f32 %v1646, %v1659
    %v1662 = vmul.f32 %v1647, %v1659
    %v1663 = vmul.f32 %v1648, %v1659
    %v1664 = vmul.f32 %v1649, %v1659
    %v1665 = vmul.f32 %v1650, %v1659
    %v1666 = vmul.f32 %v1651, %v1659
    %v1667 = vmul.f32 %v1652, %v1659
    %v1668 = vadd.f32 %v1644, %v1660
    %v1669 = vadd.f32 %v1644, %v1661
    %v1670 = vadd.f32 %v1644, %v1662
    %v1671 = vadd.f32 %v1644, %v1663
    %v1672 = vadd.f32 %v1644, %v1664
    %v1673 = vadd.f32 %v1644, %v1665
    %v1674 = vadd.f32 %v1644, %v1666
    %v1675 = vadd.f32 %v1644, %v1667
    %s1676 = scalar_lea.vmem [#allocation3], 56
    %v1677 = vld [vmem:[%s1676] sm:$0xff]
    %v1678 = vmul.f32 %v1646, %v1677
    %v1679 = vmul.f32 %v1647, %v1677
    %v1680 = vmul.f32 %v1648, %v1677
    %v1681 = vmul.f32 %v1649, %v1677
    %v1682 = vmul.f32 %v1650, %v1677
    %v1683 = vmul.f32 %v1651, %v1677
    %v1684 = vmul.f32 %v1652, %v1677
    %v1685 = vmul.f32 %v1653, %v1677
    %v1686 = vadd.f32 %v1668, %v1678
    %v1687 = vadd.f32 %v1669, %v1679
    %v1688 = vadd.f32 %v1670, %v1680
    %v1689 = vadd.f32 %v1671, %v1681
    %v1690 = vadd.f32 %v1672, %v1682
    %v1691 = vadd.f32 %v1673, %v1683
    %v1692 = vadd.f32 %v1674, %v1684
    %v1693 = vadd.f32 %v1675, %v1685
    %s1694 = scalar_lea.vmem [#allocation3], 112
    %v1695 = vld [vmem:[%s1694] sm:$0xff]
    %v1696 = vmul.f32 %v1647, %v1695
    %v1697 = vmul.f32 %v1648, %v1695
    %v1698 = vmul.f32 %v1649, %v1695
    %v1699 = vmul.f32 %v1650, %v1695
    %v1700 = vmul.f32 %v1651, %v1695
    %v1701 = vmul.f32 %v1652, %v1695
    %v1702 = vmul.f32 %v1653, %v1695
    %v1703 = vmul.f32 %v1654, %v1695
    %v1704 = vadd.f32 %v1686, %v1696
    %v1705 = vadd.f32 %v1687, %v1697
    %v1706 = vadd.f32 %v1688, %v1698
    %v1707 = vadd.f32 %v1689, %v1699
    %v1708 = vadd.f32 %v1690, %v1700
    %v1709 = vadd.f32 %v1691, %v1701
    %v1710 = vadd.f32 %v1692, %v1702
    %v1711 = vadd.f32 %v1693, %v1703
    %s1712 = scalar_lea.vmem [#allocation3], 168
    %v1713 = vld [vmem:[%s1712] sm:$0xff]
    %v1714 = vmul.f32 %v1648, %v1713
    %v1715 = vmul.f32 %v1649, %v1713
    %v1716 = vmul.f32 %v1650, %v1713
    %v1717 = vmul.f32 %v1651, %v1713
    %v1718 = vmul.f32 %v1652, %v1713
    %v1719 = vmul.f32 %v1653, %v1713
    %v1720 = vmul.f32 %v1654, %v1713
    %v1721 = vmul.f32 %v1655, %v1713
    %v1722 = vadd.f32 %v1704, %v1714
    %v1723 = vadd.f32 %v1705, %v1715
    %v1724 = vadd.f32 %v1706, %v1716
    %v1725 = vadd.f32 %v1707, %v1717
    %v1726 = vadd.f32 %v1708, %v1718
    %v1727 = vadd.f32 %v1709, %v1719
    %v1728 = vadd.f32 %v1710, %v1720
    %v1729 = vadd.f32 %v1711, %v1721
    %s1730 = scalar_lea.vmem [#allocation3], 224
    %v1731 = vld [vmem:[%s1730] sm:$0xff]
    %v1732 = vmul.f32 %v1649, %v1731
    %v1733 = vmul.f32 %v1650, %v1731
    %v1734 = vmul.f32 %v1651, %v1731
    %v1735 = vmul.f32 %v1652, %v1731
    %v1736 = vmul.f32 %v1653, %v1731
    %v1737 = vmul.f32 %v1654, %v1731
    %v1738 = vmul.f32 %v1655, %v1731
    %v1739 = vmul.f32 %v1656, %v1731
    %v1740 = vadd.f32 %v1722, %v1732
    %v1741 = vadd.f32 %v1723, %v1733
    %v1742 = vadd.f32 %v1724, %v1734
    %v1743 = vadd.f32 %v1725, %v1735
    %v1744 = vadd.f32 %v1726, %v1736
    %v1745 = vadd.f32 %v1727, %v1737
    %v1746 = vadd.f32 %v1728, %v1738
    %v1747 = vadd.f32 %v1729, %v1739
    %s1748 = scalar_lea.vmem [#allocation3], 280
    %v1749 = vld [vmem:[%s1748] sm:$0xff]
    %v1750 = vmul.f32 %v1650, %v1749
    %v1751 = vmul.f32 %v1651, %v1749
    %v1752 = vmul.f32 %v1652, %v1749
    %v1753 = vmul.f32 %v1653, %v1749
    %v1754 = vmul.f32 %v1654, %v1749
    %v1755 = vmul.f32 %v1655, %v1749
    %v1756 = vmul.f32 %v1656, %v1749
    %v1757 = vmul.f32 %v1657, %v1749
    %v1758 = vadd.f32 %v1740, %v1750
    %v1759 = vadd.f32 %v1741, %v1751
    %v1760 = vadd.f32 %v1742, %v1752
    %v1761 = vadd.f32 %v1743, %v1753
    %v1762 = vadd.f32 %v1744, %v1754
    %v1763 = vadd.f32 %v1745, %v1755
    %v1764 = vadd.f32 %v1746, %v1756
    %v1765 = vadd.f32 %v1747, %v1757
    %s1766 = scalar_lea.vmem [#allocation3], 336
    %v1767 = vld [vmem:[%s1766] sm:$0xff]
    %v1768 = vmul.f32 %v1651, %v1767
    %v1769 = vmul.f32 %v1652, %v1767
    %v1770 = vmul.f32 %v1653, %v1767
    %v1771 = vmul.f32 %v1654, %v1767
    %v1772 = vmul.f32 %v1655, %v1767
    %v1773 = vmul.f32 %v1656, %v1767
    %v1774 = vmul.f32 %v1657, %v1767
    %v1775 = vmul.f32 %v1658, %v1767
    %v1776 = vadd.f32 %v1758, %v1768
    %v1777 = vadd.f32 %v1759, %v1769
    %v1778 = vadd.f32 %v1760, %v1770
    %v1779 = vadd.f32 %v1761, %v1771
    %v1780 = vadd.f32 %v1762, %v1772
    %v1781 = vadd.f32 %v1763, %v1773
    %v1782 = vadd.f32 %v1764, %v1774
    %v1783 = vadd.f32 %v1765, %v1775
    %v1784 = vld [vmem:[#allocation2 + $0x1] sm:$0xff]
    %v1785 = vld [vmem:[#allocation2 + $0x11] sm:$0xff]
    %v1786 = vld [vmem:[#allocation2 + $0x21] sm:$0xff]
    %v1787 = vld [vmem:[#allocation2 + $0x31] sm:$0xff]
    %v1788 = vld [vmem:[#allocation2 + $0x41] sm:$0xff]
    %v1789 = vld [vmem:[#allocation2 + $0x51] sm:$0xff]
    %v1790 = vld [vmem:[#allocation2 + $0x61] sm:$0xff]
    %v1791 = vld [vmem:[#allocation2 + $0x71] sm:$0xff]
    %v1792 = vld [vmem:[#allocation2 + $0x81] sm:$0xff]
    %v1793 = vld [vmem:[#allocation2 + $0x91] sm:$0xff]
    %v1794 = vld [vmem:[#allocation2 + $0xa1] sm:$0xff]
    %v1795 = vld [vmem:[#allocation2 + $0xb1] sm:$0xff]
    %v1796 = vld [vmem:[#allocation2 + $0xc1] sm:$0xff]
    %v1797 = vld [vmem:[#allocation2 + $0xd1] sm:$0xff]
    %s1798 = scalar_lea.vmem [#allocation3], 8
    %v1799 = vld [vmem:[%s1798] sm:$0xff]
    %v1800 = vmul.f32 %v1784, %v1799
    %v1801 = vmul.f32 %v1785, %v1799
    %v1802 = vmul.f32 %v1786, %v1799
    %v1803 = vmul.f32 %v1787, %v1799
    %v1804 = vmul.f32 %v1788, %v1799
    %v1805 = vmul.f32 %v1789, %v1799
    %v1806 = vmul.f32 %v1790, %v1799
    %v1807 = vmul.f32 %v1791, %v1799
    %v1808 = vadd.f32 %v1776, %v1800
    %v1809 = vadd.f32 %v1777, %v1801
    %v1810 = vadd.f32 %v1778, %v1802
    %v1811 = vadd.f32 %v1779, %v1803
    %v1812 = vadd.f32 %v1780, %v1804
    %v1813 = vadd.f32 %v1781, %v1805
    %v1814 = vadd.f32 %v1782, %v1806
    %v1815 = vadd.f32 %v1783, %v1807
    %s1816 = scalar_lea.vmem [#allocation3], 64
    %v1817 = vld [vmem:[%s1816] sm:$0xff]
    %v1818 = vmul.f32 %v1785, %v1817
    %v1819 = vmul.f32 %v1786, %v1817
    %v1820 = vmul.f32 %v1787, %v1817
    %v1821 = vmul.f32 %v1788, %v1817
    %v1822 = vmul.f32 %v1789, %v1817
    %v1823 = vmul.f32 %v1790, %v1817
    %v1824 = vmul.f32 %v1791, %v1817
    %v1825 = vmul.f32 %v1792, %v1817
    %v1826 = vadd.f32 %v1808, %v1818
    %v1827 = vadd.f32 %v1809, %v1819
    %v1828 = vadd.f32 %v1810, %v1820
    %v1829 = vadd.f32 %v1811, %v1821
    %v1830 = vadd.f32 %v1812, %v1822
    %v1831 = vadd.f32 %v1813, %v1823
    %v1832 = vadd.f32 %v1814, %v1824
    %v1833 = vadd.f32 %v1815, %v1825
    %s1834 = scalar_lea.vmem [#allocation3], 120
    %v1835 = vld [vmem:[%s1834] sm:$0xff]
    %v1836 = vmul.f32 %v1786, %v1835
    %v1837 = vmul.f32 %v1787, %v1835
    %v1838 = vmul.f32 %v1788, %v1835
    %v1839 = vmul.f32 %v1789, %v1835
    %v1840 = vmul.f32 %v1790, %v1835
    %v1841 = vmul.f32 %v1791, %v1835
    %v1842 = vmul.f32 %v1792, %v1835
    %v1843 = vmul.f32 %v1793, %v1835
    %v1844 = vadd.f32 %v1826, %v1836
    %v1845 = vadd.f32 %v1827, %v1837
    %v1846 = vadd.f32 %v1828, %v1838
    %v1847 = vadd.f32 %v1829, %v1839
    %v1848 = vadd.f32 %v1830, %v1840
    %v1849 = vadd.f32 %v1831, %v1841
    %v1850 = vadd.f32 %v1832, %v1842
    %v1851 = vadd.f32 %v1833, %v1843
    %s1852 = scalar_lea.vmem [#allocation3], 176
    %v1853 = vld [vmem:[%s1852] sm:$0xff]
    %v1854 = vmul.f32 %v1787, %v1853
    %v1855 = vmul.f32 %v1788, %v1853
    %v1856 = vmul.f32 %v1789, %v1853
    %v1857 = vmul.f32 %v1790, %v1853
    %v1858 = vmul.f32 %v1791, %v1853
    %v1859 = vmul.f32 %v1792, %v1853
    %v1860 = vmul.f32 %v1793, %v1853
    %v1861 = vmul.f32 %v1794, %v1853
    %v1862 = vadd.f32 %v1844, %v1854
    %v1863 = vadd.f32 %v1845, %v1855
    %v1864 = vadd.f32 %v1846, %v1856
    %v1865 = vadd.f32 %v1847, %v1857
    %v1866 = vadd.f32 %v1848, %v1858
    %v1867 = vadd.f32 %v1849, %v1859
    %v1868 = vadd.f32 %v1850, %v1860
    %v1869 = vadd.f32 %v1851, %v1861
    %s1870 = scalar_lea.vmem [#allocation3], 232
    %v1871 = vld [vmem:[%s1870] sm:$0xff]
    %v1872 = vmul.f32 %v1788, %v1871
    %v1873 = vmul.f32 %v1789, %v1871
    %v1874 = vmul.f32 %v1790, %v1871
    %v1875 = vmul.f32 %v1791, %v1871
    %v1876 = vmul.f32 %v1792, %v1871
    %v1877 = vmul.f32 %v1793, %v1871
    %v1878 = vmul.f32 %v1794, %v1871
    %v1879 = vmul.f32 %v1795, %v1871
    %v1880 = vadd.f32 %v1862, %v1872
    %v1881 = vadd.f32 %v1863, %v1873
    %v1882 = vadd.f32 %v1864, %v1874
    %v1883 = vadd.f32 %v1865, %v1875
    %v1884 = vadd.f32 %v1866, %v1876
    %v1885 = vadd.f32 %v1867, %v1877
    %v1886 = vadd.f32 %v1868, %v1878
    %v1887 = vadd.f32 %v1869, %v1879
    %s1888 = scalar_lea.vmem [#allocation3], 288
    %v1889 = vld [vmem:[%s1888] sm:$0xff]
    %v1890 = vmul.f32 %v1789, %v1889
    %v1891 = vmul.f32 %v1790, %v1889
    %v1892 = vmul.f32 %v1791, %v1889
    %v1893 = vmul.f32 %v1792, %v1889
    %v1894 = vmul.f32 %v1793, %v1889
    %v1895 = vmul.f32 %v1794, %v1889
    %v1896 = vmul.f32 %v1795, %v1889
    %v1897 = vmul.f32 %v1796, %v1889
    %v1898 = vadd.f32 %v1880, %v1890
    %v1899 = vadd.f32 %v1881, %v1891
    %v1900 = vadd.f32 %v1882, %v1892
    %v1901 = vadd.f32 %v1883, %v1893
    %v1902 = vadd.f32 %v1884, %v1894
    %v1903 = vadd.f32 %v1885, %v1895
    %v1904 = vadd.f32 %v1886, %v1896
    %v1905 = vadd.f32 %v1887, %v1897
    %s1906 = scalar_lea.vmem [#allocation3], 344
    %v1907 = vld [vmem:[%s1906] sm:$0xff]
    %v1908 = vmul.f32 %v1790, %v1907
    %v1909 = vmul.f32 %v1791, %v1907
    %v1910 = vmul.f32 %v1792, %v1907
    %v1911 = vmul.f32 %v1793, %v1907
    %v1912 = vmul.f32 %v1794, %v1907
    %v1913 = vmul.f32 %v1795, %v1907
    %v1914 = vmul.f32 %v1796, %v1907
    %v1915 = vmul.f32 %v1797, %v1907
    %v1916 = vadd.f32 %v1898, %v1908
    %v1917 = vadd.f32 %v1899, %v1909
    %v1918 = vadd.f32 %v1900, %v1910
    %v1919 = vadd.f32 %v1901, %v1911
    %v1920 = vadd.f32 %v1902, %v1912
    %v1921 = vadd.f32 %v1903, %v1913
    %v1922 = vadd.f32 %v1904, %v1914
    %v1923 = vadd.f32 %v1905, %v1915
    %v1924 = vld [vmem:[#allocation2 + $0x2] sm:$0xff]
    %v1925 = vld [vmem:[#allocation2 + $0x12] sm:$0xff]
    %v1926 = vld [vmem:[#allocation2 + $0x22] sm:$0xff]
    %v1927 = vld [vmem:[#allocation2 + $0x32] sm:$0xff]
    %v1928 = vld [vmem:[#allocation2 + $0x42] sm:$0xff]
    %v1929 = vld [vmem:[#allocation2 + $0x52] sm:$0xff]
    %v1930 = vld [vmem:[#allocation2 + $0x62] sm:$0xff]
    %v1931 = vld [vmem:[#allocation2 + $0x72] sm:$0xff]
    %v1932 = vld [vmem:[#allocation2 + $0x82] sm:$0xff]
    %v1933 = vld [vmem:[#allocation2 + $0x92] sm:$0xff]
    %v1934 = vld [vmem:[#allocation2 + $0xa2] sm:$0xff]
    %v1935 = vld [vmem:[#allocation2 + $0xb2] sm:$0xff]
    %v1936 = vld [vmem:[#allocation2 + $0xc2] sm:$0xff]
    %v1937 = vld [vmem:[#allocation2 + $0xd2] sm:$0xff]
    %s1938 = scalar_lea.vmem [#allocation3], 16
    %v1939 = vld [vmem:[%s1938] sm:$0xff]
    %v1940 = vmul.f32 %v1924, %v1939
    %v1941 = vmul.f32 %v1925, %v1939
    %v1942 = vmul.f32 %v1926, %v1939
    %v1943 = vmul.f32 %v1927, %v1939
    %v1944 = vmul.f32 %v1928, %v1939
    %v1945 = vmul.f32 %v1929, %v1939
    %v1946 = vmul.f32 %v1930, %v1939
    %v1947 = vmul.f32 %v1931, %v1939
    %v1948 = vadd.f32 %v1916, %v1940
    %v1949 = vadd.f32 %v1917, %v1941
    %v1950 = vadd.f32 %v1918, %v1942
    %v1951 = vadd.f32 %v1919, %v1943
    %v1952 = vadd.f32 %v1920, %v1944
    %v1953 = vadd.f32 %v1921, %v1945
    %v1954 = vadd.f32 %v1922, %v1946
    %v1955 = vadd.f32 %v1923, %v1947
    %s1956 = scalar_lea.vmem [#allocation3], 72
    %v1957 = vld [vmem:[%s1956] sm:$0xff]
    %v1958 = vmul.f32 %v1925, %v1957
    %v1959 = vmul.f32 %v1926, %v1957
    %v1960 = vmul.f32 %v1927, %v1957
    %v1961 = vmul.f32 %v1928, %v1957
    %v1962 = vmul.f32 %v1929, %v1957
    %v1963 = vmul.f32 %v1930, %v1957
    %v1964 = vmul.f32 %v1931, %v1957
    %v1965 = vmul.f32 %v1932, %v1957
    %v1966 = vadd.f32 %v1948, %v1958
    %v1967 = vadd.f32 %v1949, %v1959
    %v1968 = vadd.f32 %v1950, %v1960
    %v1969 = vadd.f32 %v1951, %v1961
    %v1970 = vadd.f32 %v1952, %v1962
    %v1971 = vadd.f32 %v1953, %v1963
    %v1972 = vadd.f32 %v1954, %v1964
    %v1973 = vadd.f32 %v1955, %v1965
    %s1974 = scalar_lea.vmem [#allocation3], 128
    %v1975 = vld [vmem:[%s1974] sm:$0xff]
    %v1976 = vmul.f32 %v1926, %v1975
    %v1977 = vmul.f32 %v1927, %v1975
    %v1978 = vmul.f32 %v1928, %v1975
    %v1979 = vmul.f32 %v1929, %v1975
    %v1980 = vmul.f32 %v1930, %v1975
    %v1981 = vmul.f32 %v1931, %v1975
    %v1982 = vmul.f32 %v1932, %v1975
    %v1983 = vmul.f32 %v1933, %v1975
    %v1984 = vadd.f32 %v1966, %v1976
    %v1985 = vadd.f32 %v1967, %v1977
    %v1986 = vadd.f32 %v1968, %v1978
    %v1987 = vadd.f32 %v1969, %v1979
    %v1988 = vadd.f32 %v1970, %v1980
    %v1989 = vadd.f32 %v1971, %v1981
    %v1990 = vadd.f32 %v1972, %v1982
    %v1991 = vadd.f32 %v1973, %v1983
    %s1992 = scalar_lea.vmem [#allocation3], 184
    %v1993 = vld [vmem:[%s1992] sm:$0xff]
    %v1994 = vmul.f32 %v1927, %v1993
    %v1995 = vmul.f32 %v1928, %v1993
    %v1996 = vmul.f32 %v1929, %v1993
    %v1997 = vmul.f32 %v1930, %v1993
    %v1998 = vmul.f32 %v1931, %v1993
    %v1999 = vmul.f32 %v1932, %v1993
    %v2000 = vmul.f32 %v1933, %v1993
    %v2001 = vmul.f32 %v1934, %v1993
    %v2002 = vadd.f32 %v1984, %v1994
    %v2003 = vadd.f32 %v1985, %v1995
    %v2004 = vadd.f32 %v1986, %v1996
    %v2005 = vadd.f32 %v1987, %v1997
    %v2006 = vadd.f32 %v1988, %v1998
    %v2007 = vadd.f32 %v1989, %v1999
    %v2008 = vadd.f32 %v1990, %v2000
    %v2009 = vadd.f32 %v1991, %v2001
    %s2010 = scalar_lea.vmem [#allocation3], 240
    %v2011 = vld [vmem:[%s2010] sm:$0xff]
    %v2012 = vmul.f32 %v1928, %v2011
    %v2013 = vmul.f32 %v1929, %v2011
    %v2014 = vmul.f32 %v1930, %v2011
    %v2015 = vmul.f32 %v1931, %v2011
    %v2016 = vmul.f32 %v1932, %v2011
    %v2017 = vmul.f32 %v1933, %v2011
    %v2018 = vmul.f32 %v1934, %v2011
    %v2019 = vmul.f32 %v1935, %v2011
    %v2020 = vadd.f32 %v2002, %v2012
    %v2021 = vadd.f32 %v2003, %v2013
    %v2022 = vadd.f32 %v2004, %v2014
    %v2023 = vadd.f32 %v2005, %v2015
    %v2024 = vadd.f32 %v2006, %v2016
    %v2025 = vadd.f32 %v2007, %v2017
    %v2026 = vadd.f32 %v2008, %v2018
    %v2027 = vadd.f32 %v2009, %v2019
    %s2028 = scalar_lea.vmem [#allocation3], 296
    %v2029 = vld [vmem:[%s2028] sm:$0xff]
    %v2030 = vmul.f32 %v1929, %v2029
    %v2031 = vmul.f32 %v1930, %v2029
    %v2032 = vmul.f32 %v1931, %v2029
    %v2033 = vmul.f32 %v1932, %v2029
    %v2034 = vmul.f32 %v1933, %v2029
    %v2035 = vmul.f32 %v1934, %v2029
    %v2036 = vmul.f32 %v1935, %v2029
    %v2037 = vmul.f32 %v1936, %v2029
    %v2038 = vadd.f32 %v2020, %v2030
    %v2039 = vadd.f32 %v2021, %v2031
    %v2040 = vadd.f32 %v2022, %v2032
    %v2041 = vadd.f32 %v2023, %v2033
    %v2042 = vadd.f32 %v2024, %v2034
    %v2043 = vadd.f32 %v2025, %v2035
    %v2044 = vadd.f32 %v2026, %v2036
    %v2045 = vadd.f32 %v2027, %v2037
    %s2046 = scalar_lea.vmem [#allocation3], 352
    %v2047 = vld [vmem:[%s2046] sm:$0xff]
    %v2048 = vmul.f32 %v1930, %v2047
    %v2049 = vmul.f32 %v1931, %v2047
    %v2050 = vmul.f32 %v1932, %v2047
    %v2051 = vmul.f32 %v1933, %v2047
    %v2052 = vmul.f32 %v1934, %v2047
    %v2053 = vmul.f32 %v1935, %v2047
    %v2054 = vmul.f32 %v1936, %v2047
    %v2055 = vmul.f32 %v1937, %v2047
    %v2056 = vadd.f32 %v2038, %v2048
    %v2057 = vadd.f32 %v2039, %v2049
    %v2058 = vadd.f32 %v2040, %v2050
    %v2059 = vadd.f32 %v2041, %v2051
    %v2060 = vadd.f32 %v2042, %v2052
    %v2061 = vadd.f32 %v2043, %v2053
    %v2062 = vadd.f32 %v2044, %v2054
    %v2063 = vadd.f32 %v2045, %v2055
    %v2064 = vld [vmem:[#allocation2 + $0x3] sm:$0xff]
    %v2065 = vld [vmem:[#allocation2 + $0x13] sm:$0xff]
    %v2066 = vld [vmem:[#allocation2 + $0x23] sm:$0xff]
    %v2067 = vld [vmem:[#allocation2 + $0x33] sm:$0xff]
    %v2068 = vld [vmem:[#allocation2 + $0x43] sm:$0xff]
    %v2069 = vld [vmem:[#allocation2 + $0x53] sm:$0xff]
    %v2070 = vld [vmem:[#allocation2 + $0x63] sm:$0xff]
    %v2071 = vld [vmem:[#allocation2 + $0x73] sm:$0xff]
    %v2072 = vld [vmem:[#allocation2 + $0x83] sm:$0xff]
    %v2073 = vld [vmem:[#allocation2 + $0x93] sm:$0xff]
    %v2074 = vld [vmem:[#allocation2 + $0xa3] sm:$0xff]
    %v2075 = vld [vmem:[#allocation2 + $0xb3] sm:$0xff]
    %v2076 = vld [vmem:[#allocation2 + $0xc3] sm:$0xff]
    %v2077 = vld [vmem:[#allocation2 + $0xd3] sm:$0xff]
    %s2078 = scalar_lea.vmem [#allocation3], 24
    %v2079 = vld [vmem:[%s2078] sm:$0xff]
    %v2080 = vmul.f32 %v2064, %v2079
    %v2081 = vmul.f32 %v2065, %v2079
    %v2082 = vmul.f32 %v2066, %v2079
    %v2083 = vmul.f32 %v2067, %v2079
    %v2084 = vmul.f32 %v2068, %v2079
    %v2085 = vmul.f32 %v2069, %v2079
    %v2086 = vmul.f32 %v2070, %v2079
    %v2087 = vmul.f32 %v2071, %v2079
    %v2088 = vadd.f32 %v2056, %v2080
    %v2089 = vadd.f32 %v2057, %v2081
    %v2090 = vadd.f32 %v2058, %v2082
    %v2091 = vadd.f32 %v2059, %v2083
    %v2092 = vadd.f32 %v2060, %v2084
    %v2093 = vadd.f32 %v2061, %v2085
    %v2094 = vadd.f32 %v2062, %v2086
    %v2095 = vadd.f32 %v2063, %v2087
    %s2096 = scalar_lea.vmem [#allocation3], 80
    %v2097 = vld [vmem:[%s2096] sm:$0xff]
    %v2098 = vmul.f32 %v2065, %v2097
    %v2099 = vmul.f32 %v2066, %v2097
    %v2100 = vmul.f32 %v2067, %v2097
    %v2101 = vmul.f32 %v2068, %v2097
    %v2102 = vmul.f32 %v2069, %v2097
    %v2103 = vmul.f32 %v2070, %v2097
    %v2104 = vmul.f32 %v2071, %v2097
    %v2105 = vmul.f32 %v2072, %v2097
    %v2106 = vadd.f32 %v2088, %v2098
    %v2107 = vadd.f32 %v2089, %v2099
    %v2108 = vadd.f32 %v2090, %v2100
    %v2109 = vadd.f32 %v2091, %v2101
    %v2110 = vadd.f32 %v2092, %v2102
    %v2111 = vadd.f32 %v2093, %v2103
    %v2112 = vadd.f32 %v2094, %v2104
    %v2113 = vadd.f32 %v2095, %v2105
    %s2114 = scalar_lea.vmem [#allocation3], 136
    %v2115 = vld [vmem:[%s2114] sm:$0xff]
    %v2116 = vmul.f32 %v2066, %v2115
    %v2117 = vmul.f32 %v2067, %v2115
    %v2118 = vmul.f32 %v2068, %v2115
    %v2119 = vmul.f32 %v2069, %v2115
    %v2120 = vmul.f32 %v2070, %v2115
    %v2121 = vmul.f32 %v2071, %v2115
    %v2122 = vmul.f32 %v2072, %v2115
    %v2123 = vmul.f32 %v2073, %v2115
    %v2124 = vadd.f32 %v2106, %v2116
    %v2125 = vadd.f32 %v2107, %v2117
    %v2126 = vadd.f32 %v2108, %v2118
    %v2127 = vadd.f32 %v2109, %v2119
    %v2128 = vadd.f32 %v2110, %v2120
    %v2129 = vadd.f32 %v2111, %v2121
    %v2130 = vadd.f32 %v2112, %v2122
    %v2131 = vadd.f32 %v2113, %v2123
    %s2132 = scalar_lea.vmem [#allocation3], 192
    %v2133 = vld [vmem:[%s2132] sm:$0xff]
    %v2134 = vmul.f32 %v2067, %v2133
    %v2135 = vmul.f32 %v2068, %v2133
    %v2136 = vmul.f32 %v2069, %v2133
    %v2137 = vmul.f32 %v2070, %v2133
    %v2138 = vmul.f32 %v2071, %v2133
    %v2139 = vmul.f32 %v2072, %v2133
    %v2140 = vmul.f32 %v2073, %v2133
    %v2141 = vmul.f32 %v2074, %v2133
    %v2142 = vadd.f32 %v2124, %v2134
    %v2143 = vadd.f32 %v2125, %v2135
    %v2144 = vadd.f32 %v2126, %v2136
    %v2145 = vadd.f32 %v2127, %v2137
    %v2146 = vadd.f32 %v2128, %v2138
    %v2147 = vadd.f32 %v2129, %v2139
    %v2148 = vadd.f32 %v2130, %v2140
    %v2149 = vadd.f32 %v2131, %v2141
    %s2150 = scalar_lea.vmem [#allocation3], 248
    %v2151 = vld [vmem:[%s2150] sm:$0xff]
    %v2152 = vmul.f32 %v2068, %v2151
    %v2153 = vmul.f32 %v2069, %v2151
    %v2154 = vmul.f32 %v2070, %v2151
    %v2155 = vmul.f32 %v2071, %v2151
    %v2156 = vmul.f32 %v2072, %v2151
    %v2157 = vmul.f32 %v2073, %v2151
    %v2158 = vmul.f32 %v2074, %v2151
    %v2159 = vmul.f32 %v2075, %v2151
    %v2160 = vadd.f32 %v2142, %v2152
    %v2161 = vadd.f32 %v2143, %v2153
    %v2162 = vadd.f32 %v2144, %v2154
    %v2163 = vadd.f32 %v2145, %v2155
    %v2164 = vadd.f32 %v2146, %v2156
    %v2165 = vadd.f32 %v2147, %v2157
    %v2166 = vadd.f32 %v2148, %v2158
    %v2167 = vadd.f32 %v2149, %v2159
    %s2168 = scalar_lea.vmem [#allocation3], 304
    %v2169 = vld [vmem:[%s2168] sm:$0xff]
    %v2170 = vmul.f32 %v2069, %v2169
    %v2171 = vmul.f32 %v2070, %v2169
    %v2172 = vmul.f32 %v2071, %v2169
    %v2173 = vmul.f32 %v2072, %v2169
    %v2174 = vmul.f32 %v2073, %v2169
    %v2175 = vmul.f32 %v2074, %v2169
    %v2176 = vmul.f32 %v2075, %v2169
    %v2177 = vmul.f32 %v2076, %v2169
    %v2178 = vadd.f32 %v2160, %v2170
    %v2179 = vadd.f32 %v2161, %v2171
    %v2180 = vadd.f32 %v2162, %v2172
    %v2181 = vadd.f32 %v2163, %v2173
    %v2182 = vadd.f32 %v2164, %v2174
    %v2183 = vadd.f32 %v2165, %v2175
    %v2184 = vadd.f32 %v2166, %v2176
    %v2185 = vadd.f32 %v2167, %v2177
    %s2186 = scalar_lea.vmem [#allocation3], 360
    %v2187 = vld [vmem:[%s2186] sm:$0xff]
    %v2188 = vmul.f32 %v2070, %v2187
    %v2189 = vmul.f32 %v2071, %v2187
    %v2190 = vmul.f32 %v2072, %v2187
    %v2191 = vmul.f32 %v2073, %v2187
    %v2192 = vmul.f32 %v2074, %v2187
    %v2193 = vmul.f32 %v2075, %v2187
    %v2194 = vmul.f32 %v2076, %v2187
    %v2195 = vmul.f32 %v2077, %v2187
    %v2196 = vadd.f32 %v2178, %v2188
    %v2197 = vadd.f32 %v2179, %v2189
    %v2198 = vadd.f32 %v2180, %v2190
    %v2199 = vadd.f32 %v2181, %v2191
    %v2200 = vadd.f32 %v2182, %v2192
    %v2201 = vadd.f32 %v2183, %v2193
    %v2202 = vadd.f32 %v2184, %v2194
    %v2203 = vadd.f32 %v2185, %v2195
    %v2204 = vld [vmem:[#allocation2 + $0x4] sm:$0xff]
    %v2205 = vld [vmem:[#allocation2 + $0x14] sm:$0xff]
    %v2206 = vld [vmem:[#allocation2 + $0x24] sm:$0xff]
    %v2207 = vld [vmem:[#allocation2 + $0x34] sm:$0xff]
    %v2208 = vld [vmem:[#allocation2 + $0x44] sm:$0xff]
    %v2209 = vld [vmem:[#allocation2 + $0x54] sm:$0xff]
    %v2210 = vld [vmem:[#allocation2 + $0x64] sm:$0xff]
    %v2211 = vld [vmem:[#allocation2 + $0x74] sm:$0xff]
    %v2212 = vld [vmem:[#allocation2 + $0x84] sm:$0xff]
    %v2213 = vld [vmem:[#allocation2 + $0x94] sm:$0xff]
    %v2214 = vld [vmem:[#allocation2 + $0xa4] sm:$0xff]
    %v2215 = vld [vmem:[#allocation2 + $0xb4] sm:$0xff]
    %v2216 = vld [vmem:[#allocation2 + $0xc4] sm:$0xff]
    %v2217 = vld [vmem:[#allocation2 + $0xd4] sm:$0xff]
    %s2218 = scalar_lea.vmem [#allocation3], 32
    %v2219 = vld [vmem:[%s2218] sm:$0xff]
    %v2220 = vmul.f32 %v2204, %v2219
    %v2221 = vmul.f32 %v2205, %v2219
    %v2222 = vmul.f32 %v2206, %v2219
    %v2223 = vmul.f32 %v2207, %v2219
    %v2224 = vmul.f32 %v2208, %v2219
    %v2225 = vmul.f32 %v2209, %v2219
    %v2226 = vmul.f32 %v2210, %v2219
    %v2227 = vmul.f32 %v2211, %v2219
    %v2228 = vadd.f32 %v2196, %v2220
    %v2229 = vadd.f32 %v2197, %v2221
    %v2230 = vadd.f32 %v2198, %v2222
    %v2231 = vadd.f32 %v2199, %v2223
    %v2232 = vadd.f32 %v2200, %v2224
    %v2233 = vadd.f32 %v2201, %v2225
    %v2234 = vadd.f32 %v2202, %v2226
    %v2235 = vadd.f32 %v2203, %v2227
    %s2236 = scalar_lea.vmem [#allocation3], 88
    %v2237 = vld [vmem:[%s2236] sm:$0xff]
    %v2238 = vmul.f32 %v2205, %v2237
    %v2239 = vmul.f32 %v2206, %v2237
    %v2240 = vmul.f32 %v2207, %v2237
    %v2241 = vmul.f32 %v2208, %v2237
    %v2242 = vmul.f32 %v2209, %v2237
    %v2243 = vmul.f32 %v2210, %v2237
    %v2244 = vmul.f32 %v2211, %v2237
    %v2245 = vmul.f32 %v2212, %v2237
    %v2246 = vadd.f32 %v2228, %v2238
    %v2247 = vadd.f32 %v2229, %v2239
    %v2248 = vadd.f32 %v2230, %v2240
    %v2249 = vadd.f32 %v2231, %v2241
    %v2250 = vadd.f32 %v2232, %v2242
    %v2251 = vadd.f32 %v2233, %v2243
    %v2252 = vadd.f32 %v2234, %v2244
    %v2253 = vadd.f32 %v2235, %v2245
    %s2254 = scalar_lea.vmem [#allocation3], 144
    %v2255 = vld [vmem:[%s2254] sm:$0xff]
    %v2256 = vmul.f32 %v2206, %v2255
    %v2257 = vmul.f32 %v2207, %v2255
    %v2258 = vmul.f32 %v2208, %v2255
    %v2259 = vmul.f32 %v2209, %v2255
    %v2260 = vmul.f32 %v2210, %v2255
    %v2261 = vmul.f32 %v2211, %v2255
    %v2262 = vmul.f32 %v2212, %v2255
    %v2263 = vmul.f32 %v2213, %v2255
    %v2264 = vadd.f32 %v2246, %v2256
    %v2265 = vadd.f32 %v2247, %v2257
    %v2266 = vadd.f32 %v2248, %v2258
    %v2267 = vadd.f32 %v2249, %v2259
    %v2268 = vadd.f32 %v2250, %v2260
    %v2269 = vadd.f32 %v2251, %v2261
    %v2270 = vadd.f32 %v2252, %v2262
    %v2271 = vadd.f32 %v2253, %v2263
    %s2272 = scalar_lea.vmem [#allocation3], 200
    %v2273 = vld [vmem:[%s2272] sm:$0xff]
    %v2274 = vmul.f32 %v2207, %v2273
    %v2275 = vmul.f32 %v2208, %v2273
    %v2276 = vmul.f32 %v2209, %v2273
    %v2277 = vmul.f32 %v2210, %v2273
    %v2278 = vmul.f32 %v2211, %v2273
    %v2279 = vmul.f32 %v2212, %v2273
    %v2280 = vmul.f32 %v2213, %v2273
    %v2281 = vmul.f32 %v2214, %v2273
    %v2282 = vadd.f32 %v2264, %v2274
    %v2283 = vadd.f32 %v2265, %v2275
    %v2284 = vadd.f32 %v2266, %v2276
    %v2285 = vadd.f32 %v2267, %v2277
    %v2286 = vadd.f32 %v2268, %v2278
    %v2287 = vadd.f32 %v2269, %v2279
    %v2288 = vadd.f32 %v2270, %v2280
    %v2289 = vadd.f32 %v2271, %v2281
    %s2290 = scalar_lea.vmem [#allocation3], 256
    %v2291 = vld [vmem:[%s2290] sm:$0xff]
    %v2292 = vmul.f32 %v2208, %v2291
    %v2293 = vmul.f32 %v2209, %v2291
    %v2294 = vmul.f32 %v2210, %v2291
    %v2295 = vmul.f32 %v2211, %v2291
    %v2296 = vmul.f32 %v2212, %v2291
    %v2297 = vmul.f32 %v2213, %v2291
    %v2298 = vmul.f32 %v2214, %v2291
    %v2299 = vmul.f32 %v2215, %v2291
    %v2300 = vadd.f32 %v2282, %v2292
    %v2301 = vadd.f32 %v2283, %v2293
    %v2302 = vadd.f32 %v2284, %v2294
    %v2303 = vadd.f32 %v2285, %v2295
    %v2304 = vadd.f32 %v2286, %v2296
    %v2305 = vadd.f32 %v2287, %v2297
    %v2306 = vadd.f32 %v2288, %v2298
    %v2307 = vadd.f32 %v2289, %v2299
    %s2308 = scalar_lea.vmem [#allocation3], 312
    %v2309 = vld [vmem:[%s2308] sm:$0xff]
    %v2310 = vmul.f32 %v2209, %v2309
    %v2311 = vmul.f32 %v2210, %v2309
    %v2312 = vmul.f32 %v2211, %v2309
    %v2313 = vmul.f32 %v2212, %v2309
    %v2314 = vmul.f32 %v2213, %v2309
    %v2315 = vmul.f32 %v2214, %v2309
    %v2316 = vmul.f32 %v2215, %v2309
    %v2317 = vmul.f32 %v2216, %v2309
    %v2318 = vadd.f32 %v2300, %v2310
    %v2319 = vadd.f32 %v2301, %v2311
    %v2320 = vadd.f32 %v2302, %v2312
    %v2321 = vadd.f32 %v2303, %v2313
    %v2322 = vadd.f32 %v2304, %v2314
    %v2323 = vadd.f32 %v2305, %v2315
    %v2324 = vadd.f32 %v2306, %v2316
    %v2325 = vadd.f32 %v2307, %v2317
    %s2326 = scalar_lea.vmem [#allocation3], 368
    %v2327 = vld [vmem:[%s2326] sm:$0xff]
    %v2328 = vmul.f32 %v2210, %v2327
    %v2329 = vmul.f32 %v2211, %v2327
    %v2330 = vmul.f32 %v2212, %v2327
    %v2331 = vmul.f32 %v2213, %v2327
    %v2332 = vmul.f32 %v2214, %v2327
    %v2333 = vmul.f32 %v2215, %v2327
    %v2334 = vmul.f32 %v2216, %v2327
    %v2335 = vmul.f32 %v2217, %v2327
    %v2336 = vadd.f32 %v2318, %v2328
    %v2337 = vadd.f32 %v2319, %v2329
    %v2338 = vadd.f32 %v2320, %v2330
    %v2339 = vadd.f32 %v2321, %v2331
    %v2340 = vadd.f32 %v2322, %v2332
    %v2341 = vadd.f32 %v2323, %v2333
    %v2342 = vadd.f32 %v2324, %v2334
    %v2343 = vadd.f32 %v2325, %v2335
    %v2344 = vld [vmem:[#allocation2 + $0x5] sm:$0xff]
    %v2345 = vld [vmem:[#allocation2 + $0x15] sm:$0xff]
    %v2346 = vld [vmem:[#allocation2 + $0x25] sm:$0xff]
    %v2347 = vld [vmem:[#allocation2 + $0x35] sm:$0xff]
    %v2348 = vld [vmem:[#allocation2 + $0x45] sm:$0xff]
    %v2349 = vld [vmem:[#allocation2 + $0x55] sm:$0xff]
    %v2350 = vld [vmem:[#allocation2 + $0x65] sm:$0xff]
    %v2351 = vld [vmem:[#allocation2 + $0x75] sm:$0xff]
    %v2352 = vld [vmem:[#allocation2 + $0x85] sm:$0xff]
    %v2353 = vld [vmem:[#allocation2 + $0x95] sm:$0xff]
    %v2354 = vld [vmem:[#allocation2 + $0xa5] sm:$0xff]
    %v2355 = vld [vmem:[#allocation2 + $0xb5] sm:$0xff]
    %v2356 = vld [vmem:[#allocation2 + $0xc5] sm:$0xff]
    %v2357 = vld [vmem:[#allocation2 + $0xd5] sm:$0xff]
    %s2358 = scalar_lea.vmem [#allocation3], 40
    %v2359 = vld [vmem:[%s2358] sm:$0xff]
    %v2360 = vmul.f32 %v2344, %v2359
    %v2361 = vmul.f32 %v2345, %v2359
    %v2362 = vmul.f32 %v2346, %v2359
    %v2363 = vmul.f32 %v2347, %v2359
    %v2364 = vmul.f32 %v2348, %v2359
    %v2365 = vmul.f32 %v2349, %v2359
    %v2366 = vmul.f32 %v2350, %v2359
    %v2367 = vmul.f32 %v2351, %v2359
    %v2368 = vadd.f32 %v2336, %v2360
    %v2369 = vadd.f32 %v2337, %v2361
    %v2370 = vadd.f32 %v2338, %v2362
    %v2371 = vadd.f32 %v2339, %v2363
    %v2372 = vadd.f32 %v2340, %v2364
    %v2373 = vadd.f32 %v2341, %v2365
    %v2374 = vadd.f32 %v2342, %v2366
    %v2375 = vadd.f32 %v2343, %v2367
    %s2376 = scalar_lea.vmem [#allocation3], 96
    %v2377 = vld [vmem:[%s2376] sm:$0xff]
    %v2378 = vmul.f32 %v2345, %v2377
    %v2379 = vmul.f32 %v2346, %v2377
    %v2380 = vmul.f32 %v2347, %v2377
    %v2381 = vmul.f32 %v2348, %v2377
    %v2382 = vmul.f32 %v2349, %v2377
    %v2383 = vmul.f32 %v2350, %v2377
    %v2384 = vmul.f32 %v2351, %v2377
    %v2385 = vmul.f32 %v2352, %v2377
    %v2386 = vadd.f32 %v2368, %v2378
    %v2387 = vadd.f32 %v2369, %v2379
    %v2388 = vadd.f32 %v2370, %v2380
    %v2389 = vadd.f32 %v2371, %v2381
    %v2390 = vadd.f32 %v2372, %v2382
    %v2391 = vadd.f32 %v2373, %v2383
    %v2392 = vadd.f32 %v2374, %v2384
    %v2393 = vadd.f32 %v2375, %v2385
    %s2394 = scalar_lea.vmem [#allocation3], 152
    %v2395 = vld [vmem:[%s2394] sm:$0xff]
    %v2396 = vmul.f32 %v2346, %v2395
    %v2397 = vmul.f32 %v2347, %v2395
    %v2398 = vmul.f32 %v2348, %v2395
    %v2399 = vmul.f32 %v2349, %v2395
    %v2400 = vmul.f32 %v2350, %v2395
    %v2401 = vmul.f32 %v2351, %v2395
    %v2402 = vmul.f32 %v2352, %v2395
    %v2403 = vmul.f32 %v2353, %v2395
    %v2404 = vadd.f32 %v2386, %v2396
    %v2405 = vadd.f32 %v2387, %v2397
    %v2406 = vadd.f32 %v2388, %v2398
    %v2407 = vadd.f32 %v2389, %v2399
    %v2408 = vadd.f32 %v2390, %v2400
    %v2409 = vadd.f32 %v2391, %v2401
    %v2410 = vadd.f32 %v2392, %v2402
    %v2411 = vadd.f32 %v2393, %v2403
    %s2412 = scalar_lea.vmem [#allocation3], 208
    %v2413 = vld [vmem:[%s2412] sm:$0xff]
    %v2414 = vmul.f32 %v2347, %v2413
    %v2415 = vmul.f32 %v2348, %v2413
    %v2416 = vmul.f32 %v2349, %v2413
    %v2417 = vmul.f32 %v2350, %v2413
    %v2418 = vmul.f32 %v2351, %v2413
    %v2419 = vmul.f32 %v2352, %v2413
    %v2420 = vmul.f32 %v2353, %v2413
    %v2421 = vmul.f32 %v2354, %v2413
    %v2422 = vadd.f32 %v2404, %v2414
    %v2423 = vadd.f32 %v2405, %v2415
    %v2424 = vadd.f32 %v2406, %v2416
    %v2425 = vadd.f32 %v2407, %v2417
    %v2426 = vadd.f32 %v2408, %v2418
    %v2427 = vadd.f32 %v2409, %v2419
    %v2428 = vadd.f32 %v2410, %v2420
    %v2429 = vadd.f32 %v2411, %v2421
    %s2430 = scalar_lea.vmem [#allocation3], 264
    %v2431 = vld [vmem:[%s2430] sm:$0xff]
    %v2432 = vmul.f32 %v2348, %v2431
    %v2433 = vmul.f32 %v2349, %v2431
    %v2434 = vmul.f32 %v2350, %v2431
    %v2435 = vmul.f32 %v2351, %v2431
    %v2436 = vmul.f32 %v2352, %v2431
    %v2437 = vmul.f32 %v2353, %v2431
    %v2438 = vmul.f32 %v2354, %v2431
    %v2439 = vmul.f32 %v2355, %v2431
    %v2440 = vadd.f32 %v2422, %v2432
    %v2441 = vadd.f32 %v2423, %v2433
    %v2442 = vadd.f32 %v2424, %v2434
    %v2443 = vadd.f32 %v2425, %v2435
    %v2444 = vadd.f32 %v2426, %v2436
    %v2445 = vadd.f32 %v2427, %v2437
    %v2446 = vadd.f32 %v2428, %v2438
    %v2447 = vadd.f32 %v2429, %v2439
    %s2448 = scalar_lea.vmem [#allocation3], 320
    %v2449 = vld [vmem:[%s2448] sm:$0xff]
    %v2450 = vmul.f32 %v2349, %v2449
    %v2451 = vmul.f32 %v2350, %v2449
    %v2452 = vmul.f32 %v2351, %v2449
    %v2453 = vmul.f32 %v2352, %v2449
    %v2454 = vmul.f32 %v2353, %v2449
    %v2455 = vmul.f32 %v2354, %v2449
    %v2456 = vmul.f32 %v2355, %v2449
    %v2457 = vmul.f32 %v2356, %v2449
    %v2458 = vadd.f32 %v2440, %v2450
    %v2459 = vadd.f32 %v2441, %v2451
    %v2460 = vadd.f32 %v2442, %v2452
    %v2461 = vadd.f32 %v2443, %v2453
    %v2462 = vadd.f32 %v2444, %v2454
    %v2463 = vadd.f32 %v2445, %v2455
    %v2464 = vadd.f32 %v2446, %v2456
    %v2465 = vadd.f32 %v2447, %v2457
    %s2466 = scalar_lea.vmem [#allocation3], 376
    %v2467 = vld [vmem:[%s2466] sm:$0xff]
    %v2468 = vmul.f32 %v2350, %v2467
    %v2469 = vmul.f32 %v2351, %v2467
    %v2470 = vmul.f32 %v2352, %v2467
    %v2471 = vmul.f32 %v2353, %v2467
    %v2472 = vmul.f32 %v2354, %v2467
    %v2473 = vmul.f32 %v2355, %v2467
    %v2474 = vmul.f32 %v2356, %v2467
    %v2475 = vmul.f32 %v2357, %v2467
    %v2476 = vadd.f32 %v2458, %v2468
    %v2477 = vadd.f32 %v2459, %v2469
    %v2478 = vadd.f32 %v2460, %v2470
    %v2479 = vadd.f32 %v2461, %v2471
    %v2480 = vadd.f32 %v2462, %v2472
    %v2481 = vadd.f32 %v2463, %v2473
    %v2482 = vadd.f32 %v2464, %v2474
    %v2483 = vadd.f32 %v2465, %v2475
    %v2484 = vld [vmem:[#allocation2 + $0x6] sm:$0xff]
    %v2485 = vld [vmem:[#allocation2 + $0x16] sm:$0xff]
    %v2486 = vld [vmem:[#allocation2 + $0x26] sm:$0xff]
    %v2487 = vld [vmem:[#allocation2 + $0x36] sm:$0xff]
    %v2488 = vld [vmem:[#allocation2 + $0x46] sm:$0xff]
    %v2489 = vld [vmem:[#allocation2 + $0x56] sm:$0xff]
    %v2490 = vld [vmem:[#allocation2 + $0x66] sm:$0xff]
    %v2491 = vld [vmem:[#allocation2 + $0x76] sm:$0xff]
    %v2492 = vld [vmem:[#allocation2 + $0x86] sm:$0xff]
    %v2493 = vld [vmem:[#allocation2 + $0x96] sm:$0xff]
    %v2494 = vld [vmem:[#allocation2 + $0xa6] sm:$0xff]
    %v2495 = vld [vmem:[#allocation2 + $0xb6] sm:$0xff]
    %v2496 = vld [vmem:[#allocation2 + $0xc6] sm:$0xff]
    %v2497 = vld [vmem:[#allocation2 + $0xd6] sm:$0xff]
    %s2498 = scalar_lea.vmem [#allocation3], 48
    %v2499 = vld [vmem:[%s2498] sm:$0xff]
    %v2500 = vmul.f32 %v2484, %v2499
    %v2501 = vmul.f32 %v2485, %v2499
    %v2502 = vmul.f32 %v2486, %v2499
    %v2503 = vmul.f32 %v2487, %v2499
    %v2504 = vmul.f32 %v2488, %v2499
    %v2505 = vmul.f32 %v2489, %v2499
    %v2506 = vmul.f32 %v2490, %v2499
    %v2507 = vmul.f32 %v2491, %v2499
    %v2508 = vadd.f32 %v2476, %v2500
    %v2509 = vadd.f32 %v2477, %v2501
    %v2510 = vadd.f32 %v2478, %v2502
    %v2511 = vadd.f32 %v2479, %v2503
    %v2512 = vadd.f32 %v2480, %v2504
    %v2513 = vadd.f32 %v2481, %v2505
    %v2514 = vadd.f32 %v2482, %v2506
    %v2515 = vadd.f32 %v2483, %v2507
    %s2516 = scalar_lea.vmem [#allocation3], 104
    %v2517 = vld [vmem:[%s2516] sm:$0xff]
    %v2518 = vmul.f32 %v2485, %v2517
    %v2519 = vmul.f32 %v2486, %v2517
    %v2520 = vmul.f32 %v2487, %v2517
    %v2521 = vmul.f32 %v2488, %v2517
    %v2522 = vmul.f32 %v2489, %v2517
    %v2523 = vmul.f32 %v2490, %v2517
    %v2524 = vmul.f32 %v2491, %v2517
    %v2525 = vmul.f32 %v2492, %v2517
    %v2526 = vadd.f32 %v2508, %v2518
    %v2527 = vadd.f32 %v2509, %v2519
    %v2528 = vadd.f32 %v2510, %v2520
    %v2529 = vadd.f32 %v2511, %v2521
    %v2530 = vadd.f32 %v2512, %v2522
    %v2531 = vadd.f32 %v2513, %v2523
    %v2532 = vadd.f32 %v2514, %v2524
    %v2533 = vadd.f32 %v2515, %v2525
    %s2534 = scalar_lea.vmem [#allocation3], 160
    %v2535 = vld [vmem:[%s2534] sm:$0xff]
    %v2536 = vmul.f32 %v2486, %v2535
    %v2537 = vmul.f32 %v2487, %v2535
    %v2538 = vmul.f32 %v2488, %v2535
    %v2539 = vmul.f32 %v2489, %v2535
    %v2540 = vmul.f32 %v2490, %v2535
    %v2541 = vmul.f32 %v2491, %v2535
    %v2542 = vmul.f32 %v2492, %v2535
    %v2543 = vmul.f32 %v2493, %v2535
    %v2544 = vadd.f32 %v2526, %v2536
    %v2545 = vadd.f32 %v2527, %v2537
    %v2546 = vadd.f32 %v2528, %v2538
    %v2547 = vadd.f32 %v2529, %v2539
    %v2548 = vadd.f32 %v2530, %v2540
    %v2549 = vadd.f32 %v2531, %v2541
    %v2550 = vadd.f32 %v2532, %v2542
    %v2551 = vadd.f32 %v2533, %v2543
    %s2552 = scalar_lea.vmem [#allocation3], 216
    %v2553 = vld [vmem:[%s2552] sm:$0xff]
    %v2554 = vmul.f32 %v2487, %v2553
    %v2555 = vmul.f32 %v2488, %v2553
    %v2556 = vmul.f32 %v2489, %v2553
    %v2557 = vmul.f32 %v2490, %v2553
    %v2558 = vmul.f32 %v2491, %v2553
    %v2559 = vmul.f32 %v2492, %v2553
    %v2560 = vmul.f32 %v2493, %v2553
    %v2561 = vmul.f32 %v2494, %v2553
    %v2562 = vadd.f32 %v2544, %v2554
    %v2563 = vadd.f32 %v2545, %v2555
    %v2564 = vadd.f32 %v2546, %v2556
    %v2565 = vadd.f32 %v2547, %v2557
    %v2566 = vadd.f32 %v2548, %v2558
    %v2567 = vadd.f32 %v2549, %v2559
    %v2568 = vadd.f32 %v2550, %v2560
    %v2569 = vadd.f32 %v2551, %v2561
    %s2570 = scalar_lea.vmem [#allocation3], 272
    %v2571 = vld [vmem:[%s2570] sm:$0xff]
    %v2572 = vmul.f32 %v2488, %v2571
    %v2573 = vmul.f32 %v2489, %v2571
    %v2574 = vmul.f32 %v2490, %v2571
    %v2575 = vmul.f32 %v2491, %v2571
    %v2576 = vmul.f32 %v2492, %v2571
    %v2577 = vmul.f32 %v2493, %v2571
    %v2578 = vmul.f32 %v2494, %v2571
    %v2579 = vmul.f32 %v2495, %v2571
    %v2580 = vadd.f32 %v2562, %v2572
    %v2581 = vadd.f32 %v2563, %v2573
    %v2582 = vadd.f32 %v2564, %v2574
    %v2583 = vadd.f32 %v2565, %v2575
    %v2584 = vadd.f32 %v2566, %v2576
    %v2585 = vadd.f32 %v2567, %v2577
    %v2586 = vadd.f32 %v2568, %v2578
    %v2587 = vadd.f32 %v2569, %v2579
    %s2588 = scalar_lea.vmem [#allocation3], 328
    %v2589 = vld [vmem:[%s2588] sm:$0xff]
    %v2590 = vmul.f32 %v2489, %v2589
    %v2591 = vmul.f32 %v2490, %v2589
    %v2592 = vmul.f32 %v2491, %v2589
    %v2593 = vmul.f32 %v2492, %v2589
    %v2594 = vmul.f32 %v2493, %v2589
    %v2595 = vmul.f32 %v2494, %v2589
    %v2596 = vmul.f32 %v2495, %v2589
    %v2597 = vmul.f32 %v2496, %v2589
    %v2598 = vadd.f32 %v2580, %v2590
    %v2599 = vadd.f32 %v2581, %v2591
    %v2600 = vadd.f32 %v2582, %v2592
    %v2601 = vadd.f32 %v2583, %v2593
    %v2602 = vadd.f32 %v2584, %v2594
    %v2603 = vadd.f32 %v2585, %v2595
    %v2604 = vadd.f32 %v2586, %v2596
    %v2605 = vadd.f32 %v2587, %v2597
    %s2606 = scalar_lea.vmem [#allocation3], 384
    %v2607 = vld [vmem:[%s2606] sm:$0xff]
    %v2608 = vmul.f32 %v2490, %v2607
    %v2609 = vmul.f32 %v2491, %v2607
    %v2610 = vmul.f32 %v2492, %v2607
    %v2611 = vmul.f32 %v2493, %v2607
    %v2612 = vmul.f32 %v2494, %v2607
    %v2613 = vmul.f32 %v2495, %v2607
    %v2614 = vmul.f32 %v2496, %v2607
    %v2615 = vmul.f32 %v2497, %v2607
    %v2616 = vadd.f32 %v2598, %v2608
    %v2617 = vadd.f32 %v2599, %v2609
    %v2618 = vadd.f32 %v2600, %v2610
    %v2619 = vadd.f32 %v2601, %v2611
    %v2620 = vadd.f32 %v2602, %v2612
    %v2621 = vadd.f32 %v2603, %v2613
    %v2622 = vadd.f32 %v2604, %v2614
    %v2623 = vadd.f32 %v2605, %v2615
    %v2624 = vmul.f32 %v1478, %v2616
    %v2625 = vmul.f32 %v1480, %v2617
    %v2626 = vmul.f32 %v1482, %v2618
    %v2627 = vmul.f32 %v1484, %v2619
    %v2628 = vmul.f32 %v1486, %v2620
    %v2629 = vmul.f32 %v1488, %v2621
    %v2630 = vmul.f32 %v1490, %v2622
    %v2631 = vmul.f32 %v1492, %v2623
    %v2632 = vpack.c.bf16 %v2625, %v2624
    %v2633 = vpack.c.bf16 %v2627, %v2626
    %v2634 = vpack.c.bf16 %v2629, %v2628
    %v2635 = vpack.c.bf16 %v2631, %v2630
    %v2637 = vsel %vm92, %v2632, 0
    %v2640 = vsel %vm92, %v2633, 0
    %v2643 = vsel %vm92, %v2634, 0
    %v2646 = vsel %vm92, %v2635, 0
    %2648 = vmatpush.bf16.msra.mxu0 0
    %2649 = vmatpush.bf16.msra.mxu0 0
    %2650 = vmatpush.bf16.msra.mxu0 0
    %2651 = vmatpush.bf16.msra.mxu0 0
    %2652 = vmatpush.bf16.msra.mxu0 0
    %2653 = vmatpush.bf16.msra.mxu0 0
    %2654 = vmatpush.bf16.msra.mxu0 %v1303
    %2655 = vmatpush.bf16.msra.mxu0 %v1302
    %2656 = vmatmul.bf16.gmra.mxu0 %v2637
    %v2657 = vpop.f32.mrf.mxu0
    %v2658 = vadd.f32 0.0, %v2657
    %v2659 = vpop.f32.mrf.mxu0
    %v2660 = vadd.f32 0.0, %v2659
    %2661 = vmatmul.bf16.gmra.mxu0 %v2640
    %v2662 = vpop.f32.mrf.mxu0
    %v2663 = vadd.f32 0.0, %v2662
    %v2664 = vpop.f32.mrf.mxu0
    %v2665 = vadd.f32 0.0, %v2664
    %2666 = vmatmul.bf16.gmra.mxu0 %v2643
    %v2667 = vpop.f32.mrf.mxu0
    %v2668 = vadd.f32 0.0, %v2667
    %v2669 = vpop.f32.mrf.mxu0
    %v2670 = vadd.f32 0.0, %v2669
    %2671 = vmatmul.bf16.gmra.mxu0 %v2646
    %v2672 = vpop.f32.mrf.mxu0
    %v2673 = vadd.f32 0.0, %v2672
    %v2674 = vpop.f32.mrf.mxu0
    %v2675 = vadd.f32 0.0, %v2674
    %2676 = vdwg.mxu0
    %2681 = vrot.lane.b32.xlu0 %v2632, 96
    %v2682 = vpop.permute.xlu0 %2681
    %2683 = vrot.lane.b32.xlu0 %v2633, 96
    %v2684 = vpop.permute.xlu0 %2683
    %2685 = vrot.lane.b32.xlu0 %v2634, 96
    %v2686 = vpop.permute.xlu0 %2685
    %2687 = vrot.lane.b32.xlu0 %v2635, 96
    %v2688 = vpop.permute.xlu0 %2687
    %v2690 = vsel %vm92, %v2682, 0
    %v2693 = vsel %vm92, %v2684, 0
    %v2696 = vsel %vm92, %v2686, 0
    %v2699 = vsel %vm92, %v2688, 0
    %2701 = vmatpush.bf16.msra.mxu0 0
    %2702 = vmatpush.bf16.msra.mxu0 0
    %2703 = vmatpush.bf16.msra.mxu0 0
    %2704 = vmatpush.bf16.msra.mxu0 0
    %2705 = vmatpush.bf16.msra.mxu0 0
    %2706 = vmatpush.bf16.msra.mxu0 0
    %2707 = vmatpush.bf16.msra.mxu0 %v1303
    %2708 = vmatpush.bf16.msra.mxu0 %v1302
    %2709 = vmatmul.bf16.gmra.mxu0 %v2690
    %v2710 = vpop.f32.mrf.mxu0
    %v2711 = vadd.f32 0.0, %v2710
    %v2712 = vpop.f32.mrf.mxu0
    %v2713 = vadd.f32 0.0, %v2712
    %2714 = vmatmul.bf16.gmra.mxu0 %v2693
    %v2715 = vpop.f32.mrf.mxu0
    %v2716 = vadd.f32 0.0, %v2715
    %v2717 = vpop.f32.mrf.mxu0
    %v2718 = vadd.f32 0.0, %v2717
    %2719 = vmatmul.bf16.gmra.mxu0 %v2696
    %v2720 = vpop.f32.mrf.mxu0
    %v2721 = vadd.f32 0.0, %v2720
    %v2722 = vpop.f32.mrf.mxu0
    %v2723 = vadd.f32 0.0, %v2722
    %2724 = vmatmul.bf16.gmra.mxu0 %v2699
    %v2725 = vpop.f32.mrf.mxu0
    %v2726 = vadd.f32 0.0, %v2725
    %v2727 = vpop.f32.mrf.mxu0
    %v2728 = vadd.f32 0.0, %v2727
    %2729 = vdwg.mxu0
    %v2730 = vld [vmem:[%s8 + $0x1] sm:$0xff]
    %v2731 = vld [vmem:[%s8 + $0x9] sm:$0xff]
    %v2732 = vld [vmem:[%s8 + $0x11] sm:$0xff]
    %v2733 = vld [vmem:[%s8 + $0x19] sm:$0xff]
    %v2734 = vld [vmem:[%s8 + $0x21] sm:$0xff]
    %v2735 = vld [vmem:[%s8 + $0x29] sm:$0xff]
    %v2736 = vld [vmem:[%s8 + $0x31] sm:$0xff]
    %v2737 = vld [vmem:[%s8 + $0x39] sm:$0xff]
    %v2738 = vadd.f32 %v2730, %v2658
    %v2739 = vadd.f32 %v2731, %v2660
    %v2740 = vadd.f32 %v2732, %v2663
    %v2741 = vadd.f32 %v2733, %v2665
    %v2742 = vadd.f32 %v2734, %v2668
    %v2743 = vadd.f32 %v2735, %v2670
    %v2744 = vadd.f32 %v2736, %v2673
    %v2745 = vadd.f32 %v2737, %v2675
    %2746 = vst.msk [vmem:[%s8 + $0x1] sm:$0xff] %vm92, %v2738
    %2747 = vst.msk [vmem:[%s8 + $0x9] sm:$0xff] %vm92, %v2739
    %2748 = vst.msk [vmem:[%s8 + $0x11] sm:$0xff] %vm92, %v2740
    %2749 = vst.msk [vmem:[%s8 + $0x19] sm:$0xff] %vm92, %v2741
    %2750 = vst.msk [vmem:[%s8 + $0x21] sm:$0xff] %vm92, %v2742
    %2751 = vst.msk [vmem:[%s8 + $0x29] sm:$0xff] %vm92, %v2743
    %2752 = vst.msk [vmem:[%s8 + $0x31] sm:$0xff] %vm92, %v2744
    %2753 = vst.msk [vmem:[%s8 + $0x39] sm:$0xff] %vm92, %v2745
    %v2754 = vld [vmem:[%s8 + $0x42] sm:$0xff]
    %v2755 = vld [vmem:[%s8 + $0x4a] sm:$0xff]
    %v2756 = vld [vmem:[%s8 + $0x52] sm:$0xff]
    %v2757 = vld [vmem:[%s8 + $0x5a] sm:$0xff]
    %v2758 = vld [vmem:[%s8 + $0x62] sm:$0xff]
    %v2759 = vld [vmem:[%s8 + $0x6a] sm:$0xff]
    %v2760 = vld [vmem:[%s8 + $0x72] sm:$0xff]
    %v2761 = vld [vmem:[%s8 + $0x7a] sm:$0xff]
    %v2762 = vadd.f32 %v2754, %v2711
    %v2763 = vadd.f32 %v2755, %v2713
    %v2764 = vadd.f32 %v2756, %v2716
    %v2765 = vadd.f32 %v2757, %v2718
    %v2766 = vadd.f32 %v2758, %v2721
    %v2767 = vadd.f32 %v2759, %v2723
    %v2768 = vadd.f32 %v2760, %v2726
    %v2769 = vadd.f32 %v2761, %v2728
    %2770 = vst.msk [vmem:[%s8 + $0x42] sm:$0xff] %vm92, %v2762
    %2771 = vst.msk [vmem:[%s8 + $0x4a] sm:$0xff] %vm92, %v2763
    %2772 = vst.msk [vmem:[%s8 + $0x52] sm:$0xff] %vm92, %v2764
    %2773 = vst.msk [vmem:[%s8 + $0x5a] sm:$0xff] %vm92, %v2765
    %2774 = vst.msk [vmem:[%s8 + $0x62] sm:$0xff] %vm92, %v2766
    %2775 = vst.msk [vmem:[%s8 + $0x6a] sm:$0xff] %vm92, %v2767
    %2776 = vst.msk [vmem:[%s8 + $0x72] sm:$0xff] %vm92, %v2768
    %2777 = vst.msk [vmem:[%s8 + $0x7a] sm:$0xff] %vm92, %v2769
    // Predicated region
    $region38: #{tpu_custom_call.1} parent=1 // pred_check
      _
    $region39: #{tpu_custom_call.1} parent=1 // pred_check_branch
      %2779 = sbr.rel (0) target = $region41
    $region40: #{tpu_custom_call.1} parent=1 // pred_region
      _
    $region41: #{tpu_custom_call.1} parent=1 // pred_fallthru
      _
    // Predicated region
    $region42: #{tpu_custom_call.1} parent=1 // pred_check
      _
    $region43: #{tpu_custom_call.1} parent=1 // pred_check_branch
      %2781 = sbr.rel (0) target = $region45
    $region44: #{tpu_custom_call.1} parent=1 // pred_region
      _
    $region45: #{tpu_custom_call.1} parent=1 // pred_fallthru
      _
    %2782 = vsyncpa [#allocation4], 1

</llo_original>
